<compile_context>
chip_gen: v7x
topology: tpu7x:2x2x1
jax: 0.10.0
libtpu: 0.0.40
codegen_flags: <defaults>
</compile_context>

<pallas_src>
import functools
import jax
import jax.numpy as jnp
from jax.experimental import pallas as pl
from jax.experimental.pallas import tpu as pltpu


# ----------------------------- fused Pallas kernel ------------------------------

def _fused_generator_kernel(
        x_ref, eps_ref,
        w1_ref, b1_ref, w2_ref, b2_ref,
        wmu_ref, bmu_ref, wlv_ref, blv_ref,
        wd1_ref, bd1_ref, wd2_ref, bd2_ref, wd3_ref, bd3_ref,
        img_ref, mu_ref, lv_ref, z_ref):
    f32 = jnp.float32

    def dense(a, w_ref, b_ref):
        # bf16 inputs to the MXU, f32 accumulation, f32 bias/epilogue.
        return jnp.dot(a.astype(w_ref.dtype), w_ref[...],
                       preferred_element_type=f32) + b_ref[...]

    def leaky(v):
        # TODO(synk): LeakyReLU negative_slope assumed 0.2 (DCGAN convention);
        # the real Encoder definition is not given in the source.
        return jnp.where(v >= 0, v, 0.2 * v)

    x = x_ref[...].astype(f32)                          # (B, nc*16*16)

    # ---- encoder ----
    h = leaky(dense(x, w1_ref, b1_ref))                 # (B, ndf*8*8)
    h = leaky(dense(h, w2_ref, b2_ref))                 # (B, 2ndf*4*4)
    # both heads reuse h, which is already resident in vregs
    mu = dense(h, wmu_ref, bmu_ref)                     # (B, nz)
    lv = dense(h, wlv_ref, blv_ref)                     # (B, nz)

    # ---- reparameterize (fused; exp on EUP) ----
    z = mu + eps_ref[...] * jnp.exp(0.5 * lv)           # (B, nz)

    # ---- decoder ----
    d = jnp.maximum(dense(z, wd1_ref, bd1_ref), 0.0)    # (B, 2ngf*4*4)
    d = jnp.maximum(dense(d, wd2_ref, bd2_ref), 0.0)    # (B, ngf*8*8)
    o = jnp.tanh(dense(d, wd3_ref, bd3_ref))            # (B, nc*16*16) lane-dense

    img_ref[...] = o
    mu_ref[...] = mu
    lv_ref[...] = lv
    z_ref[...] = z


# -------------------- weight-only preprocessing (done once) ---------------------
# Exact dense-matrix forms of the conv / transposed-conv layers acting on the
# flattened NCHW activation.  Input independent; equivalent to precomputing a
# lowered weight format at model-load time.

def _conv_as_matrix(weight, bias, in_shape, stride, pad):
    """Conv2d (PyTorch semantics).  weight: (Cout, Cin, k, k)."""
    C, H, W = in_shape
    basis = jnp.eye(C * H * W, dtype=jnp.float32).reshape(C * H * W, C, H, W)
    out = jax.lax.conv_general_dilated(
        basis, weight, window_strides=(stride, stride),
        padding=[(pad, pad), (pad, pad)],
        dimension_numbers=("NCHW", "OIHW", "NCHW"))
    Cout, OH, OW = out.shape[1], out.shape[2], out.shape[3]
    Wm = out.reshape(C * H * W, Cout * OH * OW)
    bm = jnp.broadcast_to(bias[:, None, None], (Cout, OH, OW)).reshape(1, -1)
    return Wm, bm.astype(jnp.float32), (Cout, OH, OW)


def _convT_as_matrix(weight, bias, in_shape, stride, pad):
    """ConvTranspose2d (PyTorch semantics).  weight: (Cin, Cout, k, k)."""
    Cin, Cout, k, _ = weight.shape
    C, H, W = in_shape
    basis = jnp.eye(C * H * W, dtype=jnp.float32).reshape(C * H * W, C, H, W)
    w_conv = jnp.flip(weight, axis=(2, 3)).transpose(1, 0, 2, 3)   # (Cout,Cin,k,k)
    out = jax.lax.conv_general_dilated(
        basis, w_conv, window_strides=(1, 1),
        padding=[(k - 1 - pad, k - 1 - pad)] * 2,
        lhs_dilation=(stride, stride),
        dimension_numbers=("NCHW", "OIHW", "NCHW"))
    Cout_, OH, OW = out.shape[1], out.shape[2], out.shape[3]
    Wm = out.reshape(C * H * W, Cout_ * OH * OW)
    bm = jnp.broadcast_to(bias[:, None, None], (Cout_, OH, OW)).reshape(1, -1)
    return Wm, bm.astype(jnp.float32), (Cout_, OH, OW)


def prepare_fused_params(p, nc, ndf, ngf, nz, isize=16,
                         compute_dtype=jnp.bfloat16):
    w1, b1, s1 = _conv_as_matrix(p["e1_w"], p["e1_b"], (nc, isize, isize), 2, 1)
    w2, b2, s2 = _conv_as_matrix(p["e2_w"], p["e2_b"], s1, 2, 1)
    wmu, bmu, smu = _conv_as_matrix(p["mu_w"], p["mu_b"], s2, 1, 0)
    wlv, blv, _ = _conv_as_matrix(p["lv_w"], p["lv_b"], s2, 1, 0)
    assert smu == (nz, 1, 1)
    wd1, bd1, sd1 = _convT_as_matrix(p["d1_w"], p["d1_b"], (nz, 1, 1), 1, 0)
    wd2, bd2, sd2 = _convT_as_matrix(p["d2_w"], p["d2_b"], sd1, 2, 1)
    wd3, bd3, sd3 = _convT_as_matrix(p["d3_w"], p["d3_b"], sd2, 2, 1)
    cd = compute_dtype
    mats = (w1.astype(cd), b1, w2.astype(cd), b2,
            wmu.astype(cd), bmu, wlv.astype(cd), blv,
            wd1.astype(cd), bd1, wd2.astype(cd), bd2, wd3.astype(cd), bd3)
    return mats, sd3        # sd3 == (nc, isize, isize)


# ------------------------------ Generator forward -------------------------------

def init_params(key, nc, ndf, ngf, nz):
    def w(key, shape, scale=0.05):
        return scale * jax.random.normal(key, shape, jnp.float32)
    ks = jax.random.split(key, 7)
    return {
        # encoder (Conv2d weights: (Cout, Cin, k, k))
        "e1_w": w(ks[0], (ndf, nc, 4, 4)),       "e1_b": jnp.zeros((ndf,)),
        "e2_w": w(ks[1], (ndf * 2, ndf, 4, 4)),  "e2_b": jnp.zeros((ndf * 2,)),
        "mu_w": w(ks[2], (nz, ndf * 2, 4, 4)),   "mu_b": jnp.zeros((nz,)),
        "lv_w": w(ks[3], (nz, ndf * 2, 4, 4)),   "lv_b": jnp.zeros((nz,)),
        # decoder (ConvTranspose2d weights: (Cin, Cout, k, k))
        "d1_w": w(ks[4], (nz, ngf * 2, 4, 4)),   "d1_b": jnp.zeros((ngf * 2,)),
        "d2_w": w(ks[5], (ngf * 2, ngf, 4, 4)),  "d2_b": jnp.zeros((ngf,)),
        "d3_w": w(ks[6], (ngf, nc, 4, 4)),       "d3_b": jnp.zeros((nc,)),
    }


@functools.partial(jax.jit, static_argnames=("nc", "nz", "isize"))
def generator_forward(mats, x, eps, *, nc, nz, isize):
    B = x.shape[0]
    x_flat = x.reshape(B, nc * isize * isize).astype(jnp.float32)
    eps = eps.astype(jnp.float32)

    flops = 2 * B * sum(int(m.shape[0]) * int(m.shape[1]) for m in mats[::2])
    bytes_accessed = sum(int(a.size) * a.dtype.itemsize
                         for a in (x_flat, eps) + tuple(mats))
    bytes_accessed += (B * nc * isize * isize + 3 * B * nz) * 4

    vmem = pl.BlockSpec(memory_space=pltpu.MemorySpace.VMEM)
    img_flat, mu, lv, z = pl.pallas_call(
        _fused_generator_kernel,
        out_shape=(
            jax.ShapeDtypeStruct((B, nc * isize * isize), jnp.float32),
            jax.ShapeDtypeStruct((B, nz), jnp.float32),
            jax.ShapeDtypeStruct((B, nz), jnp.float32),
            jax.ShapeDtypeStruct((B, nz), jnp.float32),
        ),
        in_specs=[vmem] * (2 + len(mats)),
        out_specs=(vmem, vmem, vmem, vmem),
        cost_estimate=pl.CostEstimate(
            flops=flops,
            transcendentals=B * (nz + nc * isize * isize),
            bytes_accessed=bytes_accessed),
    )(x_flat, eps, *mats)

    output = img_flat.reshape(B, nc, isize, isize)
    return (output,
            z.reshape(B, nz, 1, 1),
            mu.reshape(B, nz, 1, 1),
            lv.reshape(B, nz, 1, 1))


# --------------------------------- main -------------------------------------

if __name__ == "__main__":
    B, nc, isize = 2, 3, 16
    ndf, ngf, nz = 8, 8, 16

    root = jax.random.PRNGKey(0)
    k_params, k_x, k_eps = jax.random.split(root, 3)

    params = init_params(k_params, nc, ndf, ngf, nz)
    mats, out_chw = prepare_fused_params(params, nc, ndf, ngf, nz, isize)
    assert out_chw == (nc, isize, isize)

    x = jax.random.normal(k_x, (B, nc, isize, isize), jnp.float32)
    eps = jax.random.normal(k_eps, (B, nz), jnp.float32)   # torch.randn_like(std)

    output, latent_z, mu, log_var = generator_forward(
        mats, x, eps, nc=nc, nz=nz, isize=isize)
    jax.block_until_ready((output, latent_z, mu, log_var))

    assert output.shape == (B, nc, isize, isize)
    assert latent_z.shape == (B, nz, 1, 1)
    assert mu.shape == (B, nz, 1, 1) and log_var.shape == (B, nz, 1, 1)
    assert bool(jnp.all(jnp.isfinite(output)))
    print("KERNEL_OK")
</pallas_src>

<mosaic_0001>
module attributes {stable_mosaic.version = 11 : i64} {
  func.func @_fused_generator_kernel(%arg0: memref<2x768xf32, #tpu.memory_space<vmem>>, %arg1: memref<2x16xf32, #tpu.memory_space<vmem>>, %arg2: memref<768x512xbf16, #tpu.memory_space<vmem>>, %arg3: memref<1x512xf32, #tpu.memory_space<vmem>>, %arg4: memref<512x256xbf16, #tpu.memory_space<vmem>>, %arg5: memref<1x256xf32, #tpu.memory_space<vmem>>, %arg6: memref<256x16xbf16, #tpu.memory_space<vmem>>, %arg7: memref<1x16xf32, #tpu.memory_space<vmem>>, %arg8: memref<256x16xbf16, #tpu.memory_space<vmem>>, %arg9: memref<1x16xf32, #tpu.memory_space<vmem>>, %arg10: memref<16x256xbf16, #tpu.memory_space<vmem>>, %arg11: memref<1x256xf32, #tpu.memory_space<vmem>>, %arg12: memref<256x512xbf16, #tpu.memory_space<vmem>>, %arg13: memref<1x512xf32, #tpu.memory_space<vmem>>, %arg14: memref<512x768xbf16, #tpu.memory_space<vmem>>, %arg15: memref<1x768xf32, #tpu.memory_space<vmem>>, %arg16: memref<2x768xf32, #tpu.memory_space<vmem>>, %arg17: memref<2x16xf32, #tpu.memory_space<vmem>>, %arg18: memref<2x16xf32, #tpu.memory_space<vmem>>, %arg19: memref<2x16xf32, #tpu.memory_space<vmem>>) attributes {dimension_semantics = [], scalar_prefetch = 0 : i64, scratch_operands = 0 : i64, tpu.core_type = #tpu.core_type<tc>} {
    %c0 = arith.constant 0 : index
    %c0_0 = arith.constant 0 : index
    %0 = vector.load %arg0[%c0, %c0_0] : memref<2x768xf32, #tpu.memory_space<vmem>>, vector<2x768xf32>
    %1 = arith.truncf %0 : vector<2x768xf32> to vector<2x768xbf16>
    %c0_1 = arith.constant 0 : index
    %c0_2 = arith.constant 0 : index
    %2 = vector.load %arg2[%c0_1, %c0_2] : memref<768x512xbf16, #tpu.memory_space<vmem>>, vector<768x512xbf16>
    %cst = arith.constant dense<0.000000e+00> : vector<2x512xf32>
    %3 = tpu.matmul %1, %2, %cst {dimension_numbers = #tpu.dot_dimension_numbers<[1], [0], [0], [1], [0, 0, 1, 1], [], []>} : vector<2x768xbf16>, vector<768x512xbf16>, vector<2x512xf32> -> vector<2x512xf32>
    %c0_3 = arith.constant 0 : index
    %c0_4 = arith.constant 0 : index
    %4 = vector.load %arg3[%c0_3, %c0_4] : memref<1x512xf32, #tpu.memory_space<vmem>>, vector<1x512xf32>
    %5 = vector.broadcast %4 : vector<1x512xf32> to vector<2x512xf32>
    %6 = arith.addf %3, %5 : vector<2x512xf32>
    %cst_5 = arith.constant 0.000000e+00 : f32
    %7 = vector.broadcast %cst_5 : f32 to vector<2x512xf32>
    %8 = arith.cmpf oge, %6, %7 : vector<2x512xf32>
    %cst_6 = arith.constant 2.000000e-01 : f32
    %9 = vector.broadcast %cst_6 : f32 to vector<2x512xf32>
    %10 = arith.mulf %9, %6 : vector<2x512xf32>
    %11 = arith.select %8, %6, %10 : vector<2x512xi1>, vector<2x512xf32>
    %12 = arith.truncf %11 : vector<2x512xf32> to vector<2x512xbf16>
    %c0_7 = arith.constant 0 : index
    %c0_8 = arith.constant 0 : index
    %13 = vector.load %arg4[%c0_7, %c0_8] : memref<512x256xbf16, #tpu.memory_space<vmem>>, vector<512x256xbf16>
    %cst_9 = arith.constant dense<0.000000e+00> : vector<2x256xf32>
    %14 = tpu.matmul %12, %13, %cst_9 {dimension_numbers = #tpu.dot_dimension_numbers<[1], [0], [0], [1], [0, 0, 1, 1], [], []>} : vector<2x512xbf16>, vector<512x256xbf16>, vector<2x256xf32> -> vector<2x256xf32>
    %c0_10 = arith.constant 0 : index
    %c0_11 = arith.constant 0 : index
    %15 = vector.load %arg5[%c0_10, %c0_11] : memref<1x256xf32, #tpu.memory_space<vmem>>, vector<1x256xf32>
    %16 = vector.broadcast %15 : vector<1x256xf32> to vector<2x256xf32>
    %17 = arith.addf %14, %16 : vector<2x256xf32>
    %cst_12 = arith.constant 0.000000e+00 : f32
    %18 = vector.broadcast %cst_12 : f32 to vector<2x256xf32>
    %19 = arith.cmpf oge, %17, %18 : vector<2x256xf32>
    %cst_13 = arith.constant 2.000000e-01 : f32
    %20 = vector.broadcast %cst_13 : f32 to vector<2x256xf32>
    %21 = arith.mulf %20, %17 : vector<2x256xf32>
    %22 = arith.select %19, %17, %21 : vector<2x256xi1>, vector<2x256xf32>
    %23 = arith.truncf %22 : vector<2x256xf32> to vector<2x256xbf16>
    %c0_14 = arith.constant 0 : index
    %c0_15 = arith.constant 0 : index
    %24 = vector.load %arg6[%c0_14, %c0_15] : memref<256x16xbf16, #tpu.memory_space<vmem>>, vector<256x16xbf16>
    %cst_16 = arith.constant dense<0.000000e+00> : vector<2x16xf32>
    %25 = tpu.matmul %23, %24, %cst_16 {dimension_numbers = #tpu.dot_dimension_numbers<[1], [0], [0], [1], [0, 0, 1, 1], [], []>} : vector<2x256xbf16>, vector<256x16xbf16>, vector<2x16xf32> -> vector<2x16xf32>
    %c0_17 = arith.constant 0 : index
    %c0_18 = arith.constant 0 : index
    %26 = vector.load %arg7[%c0_17, %c0_18] : memref<1x16xf32, #tpu.memory_space<vmem>>, vector<1x16xf32>
    %27 = vector.broadcast %26 : vector<1x16xf32> to vector<2x16xf32>
    %28 = arith.addf %25, %27 : vector<2x16xf32>
    %29 = arith.truncf %22 : vector<2x256xf32> to vector<2x256xbf16>
    %c0_19 = arith.constant 0 : index
    %c0_20 = arith.constant 0 : index
    %30 = vector.load %arg8[%c0_19, %c0_20] : memref<256x16xbf16, #tpu.memory_space<vmem>>, vector<256x16xbf16>
    %cst_21 = arith.constant dense<0.000000e+00> : vector<2x16xf32>
    %31 = tpu.matmul %29, %30, %cst_21 {dimension_numbers = #tpu.dot_dimension_numbers<[1], [0], [0], [1], [0, 0, 1, 1], [], []>} : vector<2x256xbf16>, vector<256x16xbf16>, vector<2x16xf32> -> vector<2x16xf32>
    %c0_22 = arith.constant 0 : index
    %c0_23 = arith.constant 0 : index
    %32 = vector.load %arg9[%c0_22, %c0_23] : memref<1x16xf32, #tpu.memory_space<vmem>>, vector<1x16xf32>
    %33 = vector.broadcast %32 : vector<1x16xf32> to vector<2x16xf32>
    %34 = arith.addf %31, %33 : vector<2x16xf32>
    %c0_24 = arith.constant 0 : index
    %c0_25 = arith.constant 0 : index
    %35 = vector.load %arg1[%c0_24, %c0_25] : memref<2x16xf32, #tpu.memory_space<vmem>>, vector<2x16xf32>
    %cst_26 = arith.constant 5.000000e-01 : f32
    %36 = vector.broadcast %cst_26 : f32 to vector<2x16xf32>
    %37 = arith.mulf %36, %34 : vector<2x16xf32>
    %38 = math.exp %37 : vector<2x16xf32>
    %39 = arith.mulf %35, %38 : vector<2x16xf32>
    %40 = arith.addf %28, %39 : vector<2x16xf32>
    %41 = arith.truncf %40 : vector<2x16xf32> to vector<2x16xbf16>
    %c0_27 = arith.constant 0 : index
    %c0_28 = arith.constant 0 : index
    %42 = vector.load %arg10[%c0_27, %c0_28] : memref<16x256xbf16, #tpu.memory_space<vmem>>, vector<16x256xbf16>
    %cst_29 = arith.constant dense<0.000000e+00> : vector<2x256xf32>
    %43 = tpu.matmul %41, %42, %cst_29 {dimension_numbers = #tpu.dot_dimension_numbers<[1], [0], [0], [1], [0, 0, 1, 1], [], []>} : vector<2x16xbf16>, vector<16x256xbf16>, vector<2x256xf32> -> vector<2x256xf32>
    %c0_30 = arith.constant 0 : index
    %c0_31 = arith.constant 0 : index
    %44 = vector.load %arg11[%c0_30, %c0_31] : memref<1x256xf32, #tpu.memory_space<vmem>>, vector<1x256xf32>
    %45 = vector.broadcast %44 : vector<1x256xf32> to vector<2x256xf32>
    %46 = arith.addf %43, %45 : vector<2x256xf32>
    %cst_32 = arith.constant 0.000000e+00 : f32
    %47 = vector.broadcast %cst_32 : f32 to vector<2x256xf32>
    %48 = arith.maximumf %46, %47 : vector<2x256xf32>
    %49 = arith.truncf %48 : vector<2x256xf32> to vector<2x256xbf16>
    %c0_33 = arith.constant 0 : index
    %c0_34 = arith.constant 0 : index
    %50 = vector.load %arg12[%c0_33, %c0_34] : memref<256x512xbf16, #tpu.memory_space<vmem>>, vector<256x512xbf16>
    %cst_35 = arith.constant dense<0.000000e+00> : vector<2x512xf32>
    %51 = tpu.matmul %49, %50, %cst_35 {dimension_numbers = #tpu.dot_dimension_numbers<[1], [0], [0], [1], [0, 0, 1, 1], [], []>} : vector<2x256xbf16>, vector<256x512xbf16>, vector<2x512xf32> -> vector<2x512xf32>
    %c0_36 = arith.constant 0 : index
    %c0_37 = arith.constant 0 : index
    %52 = vector.load %arg13[%c0_36, %c0_37] : memref<1x512xf32, #tpu.memory_space<vmem>>, vector<1x512xf32>
    %53 = vector.broadcast %52 : vector<1x512xf32> to vector<2x512xf32>
    %54 = arith.addf %51, %53 : vector<2x512xf32>
    %cst_38 = arith.constant 0.000000e+00 : f32
    %55 = vector.broadcast %cst_38 : f32 to vector<2x512xf32>
    %56 = arith.maximumf %54, %55 : vector<2x512xf32>
    %57 = arith.truncf %56 : vector<2x512xf32> to vector<2x512xbf16>
    %c0_39 = arith.constant 0 : index
    %c0_40 = arith.constant 0 : index
    %58 = vector.load %arg14[%c0_39, %c0_40] : memref<512x768xbf16, #tpu.memory_space<vmem>>, vector<512x768xbf16>
    %cst_41 = arith.constant dense<0.000000e+00> : vector<2x768xf32>
    %59 = tpu.matmul %57, %58, %cst_41 {dimension_numbers = #tpu.dot_dimension_numbers<[1], [0], [0], [1], [0, 0, 1, 1], [], []>} : vector<2x512xbf16>, vector<512x768xbf16>, vector<2x768xf32> -> vector<2x768xf32>
    %c0_42 = arith.constant 0 : index
    %c0_43 = arith.constant 0 : index
    %60 = vector.load %arg15[%c0_42, %c0_43] : memref<1x768xf32, #tpu.memory_space<vmem>>, vector<1x768xf32>
    %61 = vector.broadcast %60 : vector<1x768xf32> to vector<2x768xf32>
    %62 = arith.addf %59, %61 : vector<2x768xf32>
    %63 = math.tanh %62 : vector<2x768xf32>
    %c0_44 = arith.constant 0 : index
    %c0_45 = arith.constant 0 : index
    %64 = vector.load %arg16[%c0_44, %c0_45] : memref<2x768xf32, #tpu.memory_space<vmem>>, vector<2x768xf32>
    tpu.vector_store %arg16[%c0_44, %c0_45], %63 {strides = array<i32>} : memref<2x768xf32, #tpu.memory_space<vmem>>, vector<2x768xf32>,
    %c0_46 = arith.constant 0 : index
    %c0_47 = arith.constant 0 : index
    %65 = vector.load %arg17[%c0_46, %c0_47] : memref<2x16xf32, #tpu.memory_space<vmem>>, vector<2x16xf32>
    tpu.vector_store %arg17[%c0_46, %c0_47], %28 {strides = array<i32>} : memref<2x16xf32, #tpu.memory_space<vmem>>, vector<2x16xf32>,
    %c0_48 = arith.constant 0 : index
    %c0_49 = arith.constant 0 : index
    %66 = vector.load %arg18[%c0_48, %c0_49] : memref<2x16xf32, #tpu.memory_space<vmem>>, vector<2x16xf32>
    tpu.vector_store %arg18[%c0_48, %c0_49], %34 {strides = array<i32>} : memref<2x16xf32, #tpu.memory_space<vmem>>, vector<2x16xf32>,
    %c0_50 = arith.constant 0 : index
    %c0_51 = arith.constant 0 : index
    %67 = vector.load %arg19[%c0_50, %c0_51] : memref<2x16xf32, #tpu.memory_space<vmem>>, vector<2x16xf32>
    tpu.vector_store %arg19[%c0_50, %c0_51], %40 {strides = array<i32>} : memref<2x16xf32, #tpu.memory_space<vmem>>, vector<2x16xf32>,
    return
  }
}

</mosaic_0001>

<llo_original>
// kernel: generator_forward.1
$region0: #{generator_forward.1}
  #allocation0 [shape = 'u32[]', space=smem, size = 0x4, offset = 0x4, fixed_abs, tag = 'smem constant byte address 0x4 - core index']
  #allocation1 [shape = 'u32[144,128]{1,0:T(1,128)}', space=vmem, size = 0x12000, scoped, tag = 'internal scratch']
  %s0 = inlined_call_operand.vmem [shape: f32[2,768], index: 0, kind: input, shape index: {}]
  %s1 = inlined_call_operand.vmem [shape: f32[2,16], index: 1, kind: input, shape index: {}]
  %s2 = inlined_call_operand.hbm [shape: bf16[768,512], index: 2, kind: input, shape index: {}]
  %s3 = inlined_call_operand.vmem [shape: f32[1,512], index: 3, kind: input, shape index: {}]
  %s4 = inlined_call_operand.hbm [shape: bf16[512,256], index: 4, kind: input, shape index: {}]
  %s5 = inlined_call_operand.vmem [shape: f32[1,256], index: 5, kind: input, shape index: {}]
  %s6 = inlined_call_operand.vmem [shape: bf16[256,16], index: 6, kind: input, shape index: {}]
  %s7 = inlined_call_operand.vmem [shape: f32[1,16], index: 7, kind: input, shape index: {}]
  %s8 = inlined_call_operand.vmem [shape: bf16[256,16], index: 8, kind: input, shape index: {}]
  %s9 = inlined_call_operand.vmem [shape: f32[1,16], index: 9, kind: input, shape index: {}]
  %s10 = inlined_call_operand.vmem [shape: bf16[16,256], index: 10, kind: input, shape index: {}]
  %s11 = inlined_call_operand.vmem [shape: f32[1,256], index: 11, kind: input, shape index: {}]
  %s12 = inlined_call_operand.hbm [shape: bf16[256,512], index: 12, kind: input, shape index: {}]
  %s13 = inlined_call_operand.vmem [shape: f32[1,512], index: 13, kind: input, shape index: {}]
  %s14 = inlined_call_operand.hbm [shape: bf16[512,768], index: 14, kind: input, shape index: {}]
  %s15 = inlined_call_operand.vmem [shape: f32[1,768], index: 15, kind: input, shape index: {}]
  %s16 = inlined_call_operand.vmem [shape: f32[2,768], index: 16, kind: output, shape index: {0}]
  %s17 = inlined_call_operand.hbm [shape: f32[2,16], index: 17, kind: output, shape index: {1}]
  %s18 = inlined_call_operand.hbm [shape: f32[2,16], index: 18, kind: output, shape index: {2}]
  %s19 = inlined_call_operand.hbm [shape: f32[2,16], index: 19, kind: output, shape index: {3}]
  %20 = xla_tuple %s16, %s17, %s18, %s19
  %s21 = sld [smem:[#allocation0]]
  $region114: #{generator_forward.1} parent=0
    _
  %s23 = ssub.s32 1, %s21
  %s24 = scalar_select 0, %s23, %s21
  $region1: #{generator_forward.1} parent=0
    #allocation2 [shape = 'u8[786432]{0}', space=vmem, size = 0xc0000, scoped, tag = 'input window, operand 2, single buffered']
    #allocation3 [shape = 's32[1]{0}', space=sflag, size = 0x4, scoped, tag = 'scoped memory for generator_forward.1']
    #allocation4 [shape = 's32[1]{0}', space=sflag, size = 0x4, scoped, tag = 'scoped memory for generator_forward.1']
    #allocation5 [shape = 'u8[262144]{0}', space=vmem, size = 0x40000, scoped, tag = 'input window, operand 4, single buffered']
    #allocation6 [shape = 's32[1]{0}', space=sflag, size = 0x4, scoped, tag = 'scoped memory for generator_forward.1']
    #allocation7 [shape = 'u8[262144]{0}', space=vmem, size = 0x40000, scoped, tag = 'input window, operand 12, single buffered']
    #allocation8 [shape = 'u8[786432]{0}', space=vmem, size = 0xc0000, scoped, tag = 'input window, operand 14, single buffered']
    #allocation9 [shape = 's32[1]{0}', space=sflag, size = 0x4, scoped, tag = 'scoped memory for generator_forward.1']
    #allocation10 [shape = 'u8[1024]{0}', space=vmem, size = 0x400, scoped, tag = 'output window, operand 1, single buffered']
    #allocation11 [shape = 'u8[1024]{0}', space=vmem, size = 0x400, scoped, tag = 'output window, operand 2, single buffered']
    #allocation12 [shape = 's32[1]{0}', space=sflag, size = 0x4, scoped, tag = 'scoped memory for generator_forward.1']
    #allocation13 [shape = 'u8[1024]{0}', space=vmem, size = 0x400, scoped, tag = 'output window, operand 3, single buffered']
    %25 = vsyncpa [#allocation3], 0
    %26 = vsyncpa [#allocation6], 0
    %27 = vsyncpa [#allocation9], 0
    %28 = vsyncpa [#allocation4], 0
    %29 = vsyncpa [#allocation12], 0
    // Predicated region
    $region2: #{generator_forward.1} parent=1 // pred_check
      _
    $region3: #{generator_forward.1} parent=1 // pred_check_branch
      %31 = sbr.rel (0) target = $region5
    $region4: #{generator_forward.1} parent=1 // pred_region
      _
    $region5: #{generator_forward.1} parent=1 // pred_fallthru
      _
    // Predicated region
    $region6: #{generator_forward.1} parent=1 // pred_check
      _
    $region7: #{generator_forward.1} parent=1 // pred_check_branch
      %33 = sbr.rel (0) target = $region9
    $region8: #{generator_forward.1} parent=1 // pred_region
      _
    $region9: #{generator_forward.1} parent=1 // pred_fallthru
      _
    // Predicated region
    $region10: #{generator_forward.1} parent=1 // pred_check
      _
    $region11: #{generator_forward.1} parent=1 // pred_check_branch
      %35 = sbr.rel (0) target = $region13
    $region12: #{generator_forward.1} parent=1 // pred_region
      %s37 = ssub.s32 24576, 24576
      %38 = vsyncadd [#allocation3], %s37
      %s39 = sshll.u32 [#allocation2], 4
      %s40 = int_to_ptr.vmem [resolvable:$true] %s39
      %45 = dma.hbm_to_vmem [thread:$0]  %s2, 24576, %s40, [#allocation3], 256, 256, 16
    $region13: #{generator_forward.1} parent=1 // pred_fallthru
      _
    // Predicated region
    $region14: #{generator_forward.1} parent=1 // pred_check
      _
    $region15: #{generator_forward.1} parent=1 // pred_check_branch
      %47 = sbr.rel (0) target = $region17
    $region16: #{generator_forward.1} parent=1 // pred_region
      _
    $region17: #{generator_forward.1} parent=1 // pred_fallthru
      _
    // Predicated region
    $region18: #{generator_forward.1} parent=1 // pred_check
      _
    $region19: #{generator_forward.1} parent=1 // pred_check_branch
      %49 = sbr.rel (0) target = $region21
    $region20: #{generator_forward.1} parent=1 // pred_region
      %s51 = ssub.s32 8192, 8192
      %52 = vsyncadd [#allocation6], %s51
      %s53 = sshll.u32 [#allocation5], 4
      %s54 = int_to_ptr.vmem [resolvable:$true] %s53
      %59 = dma.hbm_to_vmem [thread:$0]  %s4, 8192, %s54, [#allocation6], 128, 128, 8
    $region21: #{generator_forward.1} parent=1 // pred_fallthru
      _
    // Predicated region
    $region22: #{generator_forward.1} parent=1 // pred_check
      _
    $region23: #{generator_forward.1} parent=1 // pred_check_branch
      %61 = sbr.rel (0) target = $region25
    $region24: #{generator_forward.1} parent=1 // pred_region
      _
    $region25: #{generator_forward.1} parent=1 // pred_fallthru
      _
    // Predicated region
    $region26: #{generator_forward.1} parent=1 // pred_check
      _
    $region27: #{generator_forward.1} parent=1 // pred_check_branch
      %63 = sbr.rel (0) target = $region29
    $region28: #{generator_forward.1} parent=1 // pred_region
      _
    $region29: #{generator_forward.1} parent=1 // pred_fallthru
      _
    // Predicated region
    $region30: #{generator_forward.1} parent=1 // pred_check
      _
    $region31: #{generator_forward.1} parent=1 // pred_check_branch
      %65 = sbr.rel (0) target = $region33
    $region32: #{generator_forward.1} parent=1 // pred_region
      _
    $region33: #{generator_forward.1} parent=1 // pred_fallthru
      _
    // Predicated region
    $region34: #{generator_forward.1} parent=1 // pred_check
      _
    $region35: #{generator_forward.1} parent=1 // pred_check_branch
      %67 = sbr.rel (0) target = $region37
    $region36: #{generator_forward.1} parent=1 // pred_region
      _
    $region37: #{generator_forward.1} parent=1 // pred_fallthru
      _
    // Predicated region
    $region38: #{generator_forward.1} parent=1 // pred_check
      _
    $region39: #{generator_forward.1} parent=1 // pred_check_branch
      %69 = sbr.rel (0) target = $region41
    $region40: #{generator_forward.1} parent=1 // pred_region
      _
    $region41: #{generator_forward.1} parent=1 // pred_fallthru
      _
    // Predicated region
    $region42: #{generator_forward.1} parent=1 // pred_check
      _
    $region43: #{generator_forward.1} parent=1 // pred_check_branch
      %71 = sbr.rel (0) target = $region45
    $region44: #{generator_forward.1} parent=1 // pred_region
      _
    $region45: #{generator_forward.1} parent=1 // pred_fallthru
      _
    // Predicated region
    $region46: #{generator_forward.1} parent=1 // pred_check
      _
    $region47: #{generator_forward.1} parent=1 // pred_check_branch
      %73 = sbr.rel (0) target = $region49
    $region48: #{generator_forward.1} parent=1 // pred_region
      _
    $region49: #{generator_forward.1} parent=1 // pred_fallthru
      _
    // Predicated region
    $region50: #{generator_forward.1} parent=1 // pred_check
      _
    $region51: #{generator_forward.1} parent=1 // pred_check_branch
      %75 = sbr.rel (0) target = $region53
    $region52: #{generator_forward.1} parent=1 // pred_region
      %s77 = ssub.s32 8192, 8192
      %78 = vsyncadd [#allocation6], %s77
      %s79 = sshll.u32 [#allocation7], 4
      %s80 = int_to_ptr.vmem [resolvable:$true] %s79
      %85 = dma.hbm_to_vmem [thread:$0]  %s12, 8192, %s80, [#allocation6], 256, 256, 16
    $region53: #{generator_forward.1} parent=1 // pred_fallthru
      _
    // Predicated region
    $region54: #{generator_forward.1} parent=1 // pred_check
      _
    $region55: #{generator_forward.1} parent=1 // pred_check_branch
      %87 = sbr.rel (0) target = $region57
    $region56: #{generator_forward.1} parent=1 // pred_region
      _
    $region57: #{generator_forward.1} parent=1 // pred_fallthru
      _
    // Predicated region
    $region58: #{generator_forward.1} parent=1 // pred_check
      _
    $region59: #{generator_forward.1} parent=1 // pred_check_branch
      %89 = sbr.rel (0) target = $region61
    $region60: #{generator_forward.1} parent=1 // pred_region
      %s91 = ssub.s32 24576, 24576
      %92 = vsyncadd [#allocation9], %s91
      %s93 = sshll.u32 [#allocation8], 4
      %s94 = int_to_ptr.vmem [resolvable:$true] %s93
      %99 = dma.hbm_to_vmem [thread:$0]  %s14, 24576, %s94, [#allocation9], 384, 384, 24
    $region61: #{generator_forward.1} parent=1 // pred_fallthru
      _
    // Predicated region
    $region62: #{generator_forward.1} parent=1 // pred_check
      _
    $region63: #{generator_forward.1} parent=1 // pred_check_branch
      %101 = sbr.rel (0) target = $region65
    $region64: #{generator_forward.1} parent=1 // pred_region
      _
    $region65: #{generator_forward.1} parent=1 // pred_fallthru
      _
    // Predicated region
    $region66: #{generator_forward.1} parent=1 // pred_check
      _
    $region67: #{generator_forward.1} parent=1 // pred_check_branch
      %103 = sbr.rel (0) target = $region69
    $region68: #{generator_forward.1} parent=1 // pred_region
      %104 = dma.done [#allocation3], 24576
    $region69: #{generator_forward.1} parent=1 // pred_fallthru
      _
    // Predicated region
    $region70: #{generator_forward.1} parent=1 // pred_check
      _
    $region71: #{generator_forward.1} parent=1 // pred_check_branch
      %106 = sbr.rel (0) target = $region73
    $region72: #{generator_forward.1} parent=1 // pred_region
      %107 = dma.done [#allocation6], 8192
    $region73: #{generator_forward.1} parent=1 // pred_fallthru
      _
    // Predicated region
    $region74: #{generator_forward.1} parent=1 // pred_check
      _
    $region75: #{generator_forward.1} parent=1 // pred_check_branch
      %109 = sbr.rel (0) target = $region77
    $region76: #{generator_forward.1} parent=1 // pred_region
      %110 = dma.done [#allocation6], 8192
    $region77: #{generator_forward.1} parent=1 // pred_fallthru
      _
    // Predicated region
    $region78: #{generator_forward.1} parent=1 // pred_check
      _
    $region79: #{generator_forward.1} parent=1 // pred_check_branch
      %112 = sbr.rel (0) target = $region81
    $region80: #{generator_forward.1} parent=1 // pred_region
      %113 = dma.done [#allocation9], 24576
    $region81: #{generator_forward.1} parent=1 // pred_fallthru
      _
    %v115 = vld [vmem:[%s0] sm:$0xff]
    %v116 = vld [vmem:[%s0 + $0x8] sm:$0xf]
    %v119 = vcombine.high %v115, %v115
    %v121 = vunpack.c.l.s4 1983009808
    %v122 = vunpack.c.0.s8 %v121
    %v123 = vlaneseq
    %v124 = vshrl.u32 %v123, 7
    %v125 = vsub.s32 %v122, %v124
    %v126 = vrot.slane %v115, %v125
    %v128 = vunpack.c.l.s4 1983009808
    %v129 = vunpack.c.0.s8 %v128
    %v130 = vlaneseq
    %v131 = vshrl.u32 %v130, 7
    %v132 = vsub.s32 %v129, %v131
    %v133 = vrot.slane %v119, %v132
    %v134 = vcombine.high %v126, %v126
    %v135 = vcombine.high %v133, %v133
    %v137 = vunpack.c.l.s4 1983009808
    %v138 = vunpack.c.0.s8 %v137
    %v139 = vlaneseq
    %v140 = vshrl.u32 %v139, 7
    %v141 = vsub.s32 %v138, %v140
    %v142 = vrot.slane %v116, %v141
    %v143 = vcombine.high %v142, %v142
    %v150 = vpack.c.bf16 %v126, %v126
    %v151 = vpack.c.bf16 %v134, %v134
    %v152 = vpack.c.bf16 %v133, %v133
    %v153 = vpack.c.bf16 %v135, %v135
    %v154 = vpack.c.bf16 %v142, %v142
    %v155 = vpack.c.bf16 %v143, %v143
    %v156 = vld [vmem:[#allocation2] sm:$0xff]
    %v157 = vld [vmem:[#allocation2 + $0x8] sm:$0xff]
    %v158 = vld [vmem:[#allocation2 + $0x10] sm:$0xff]
    %v159 = vld [vmem:[#allocation2 + $0x18] sm:$0xff]
    %v160 = vld [vmem:[#allocation2 + $0x20] sm:$0xff]
    %v161 = vld [vmem:[#allocation2 + $0x28] sm:$0xff]
    %v162 = vld [vmem:[#allocation2 + $0x30] sm:$0xff]
    %v163 = vld [vmem:[#allocation2 + $0x38] sm:$0xff]
    %v164 = vld [vmem:[#allocation2 + $0x40] sm:$0xff]
    %v165 = vld [vmem:[#allocation2 + $0x48] sm:$0xff]
    %v166 = vld [vmem:[#allocation2 + $0x50] sm:$0xff]
    %v167 = vld [vmem:[#allocation2 + $0x58] sm:$0xff]
    %v168 = vld [vmem:[#allocation2 + $0x60] sm:$0xff]
    %v169 = vld [vmem:[#allocation2 + $0x68] sm:$0xff]
    %v170 = vld [vmem:[#allocation2 + $0x70] sm:$0xff]
    %v171 = vld [vmem:[#allocation2 + $0x78] sm:$0xff]
    %v172 = vld [vmem:[#allocation2 + $0x80] sm:$0xff]
    %v173 = vld [vmem:[#allocation2 + $0x88] sm:$0xff]
    %v174 = vld [vmem:[#allocation2 + $0x90] sm:$0xff]
    %v175 = vld [vmem:[#allocation2 + $0x98] sm:$0xff]
    %v176 = vld [vmem:[#allocation2 + $0xa0] sm:$0xff]
    %v177 = vld [vmem:[#allocation2 + $0xa8] sm:$0xff]
    %v178 = vld [vmem:[#allocation2 + $0xb0] sm:$0xff]
    %v179 = vld [vmem:[#allocation2 + $0xb8] sm:$0xff]
    %v180 = vld [vmem:[#allocation2 + $0xc0] sm:$0xff]
    %v181 = vld [vmem:[#allocation2 + $0xc8] sm:$0xff]
    %v182 = vld [vmem:[#allocation2 + $0xd0] sm:$0xff]
    %v183 = vld [vmem:[#allocation2 + $0xd8] sm:$0xff]
    %v184 = vld [vmem:[#allocation2 + $0xe0] sm:$0xff]
    %v185 = vld [vmem:[#allocation2 + $0xe8] sm:$0xff]
    %v186 = vld [vmem:[#allocation2 + $0xf0] sm:$0xff]
    %v187 = vld [vmem:[#allocation2 + $0xf8] sm:$0xff]
    %v188 = vld [vmem:[#allocation2 + $0x100] sm:$0xff]
    %v189 = vld [vmem:[#allocation2 + $0x108] sm:$0xff]
    %v190 = vld [vmem:[#allocation2 + $0x110] sm:$0xff]
    %v191 = vld [vmem:[#allocation2 + $0x118] sm:$0xff]
    %v192 = vld [vmem:[#allocation2 + $0x120] sm:$0xff]
    %v193 = vld [vmem:[#allocation2 + $0x128] sm:$0xff]
    %v194 = vld [vmem:[#allocation2 + $0x130] sm:$0xff]
    %v195 = vld [vmem:[#allocation2 + $0x138] sm:$0xff]
    %v196 = vld [vmem:[#allocation2 + $0x140] sm:$0xff]
    %v197 = vld [vmem:[#allocation2 + $0x148] sm:$0xff]
    %v198 = vld [vmem:[#allocation2 + $0x150] sm:$0xff]
    %v199 = vld [vmem:[#allocation2 + $0x158] sm:$0xff]
    %v200 = vld [vmem:[#allocation2 + $0x160] sm:$0xff]
    %v201 = vld [vmem:[#allocation2 + $0x168] sm:$0xff]
    %v202 = vld [vmem:[#allocation2 + $0x170] sm:$0xff]
    %v203 = vld [vmem:[#allocation2 + $0x178] sm:$0xff]
    %v204 = vld [vmem:[#allocation2 + $0x180] sm:$0xff]
    %v205 = vld [vmem:[#allocation2 + $0x188] sm:$0xff]
    %v206 = vld [vmem:[#allocation2 + $0x190] sm:$0xff]
    %v207 = vld [vmem:[#allocation2 + $0x198] sm:$0xff]
    %v208 = vld [vmem:[#allocation2 + $0x1a0] sm:$0xff]
    %v209 = vld [vmem:[#allocation2 + $0x1a8] sm:$0xff]
    %v210 = vld [vmem:[#allocation2 + $0x1b0] sm:$0xff]
    %v211 = vld [vmem:[#allocation2 + $0x1b8] sm:$0xff]
    %v212 = vld [vmem:[#allocation2 + $0x1c0] sm:$0xff]
    %v213 = vld [vmem:[#allocation2 + $0x1c8] sm:$0xff]
    %v214 = vld [vmem:[#allocation2 + $0x1d0] sm:$0xff]
    %v215 = vld [vmem:[#allocation2 + $0x1d8] sm:$0xff]
    %v216 = vld [vmem:[#allocation2 + $0x1e0] sm:$0xff]
    %v217 = vld [vmem:[#allocation2 + $0x1e8] sm:$0xff]
    %v218 = vld [vmem:[#allocation2 + $0x1f0] sm:$0xff]
    %v219 = vld [vmem:[#allocation2 + $0x1f8] sm:$0xff]
    %v220 = vld [vmem:[#allocation2 + $0x200] sm:$0xff]
    %v221 = vld [vmem:[#allocation2 + $0x208] sm:$0xff]
    %v222 = vld [vmem:[#allocation2 + $0x210] sm:$0xff]
    %v223 = vld [vmem:[#allocation2 + $0x218] sm:$0xff]
    %v224 = vld [vmem:[#allocation2 + $0x220] sm:$0xff]
    %v225 = vld [vmem:[#allocation2 + $0x228] sm:$0xff]
    %v226 = vld [vmem:[#allocation2 + $0x230] sm:$0xff]
    %v227 = vld [vmem:[#allocation2 + $0x238] sm:$0xff]
    %v228 = vld [vmem:[#allocation2 + $0x240] sm:$0xff]
    %v229 = vld [vmem:[#allocation2 + $0x248] sm:$0xff]
    %v230 = vld [vmem:[#allocation2 + $0x250] sm:$0xff]
    %v231 = vld [vmem:[#allocation2 + $0x258] sm:$0xff]
    %v232 = vld [vmem:[#allocation2 + $0x260] sm:$0xff]
    %v233 = vld [vmem:[#allocation2 + $0x268] sm:$0xff]
    %v234 = vld [vmem:[#allocation2 + $0x270] sm:$0xff]
    %v235 = vld [vmem:[#allocation2 + $0x278] sm:$0xff]
    %v236 = vld [vmem:[#allocation2 + $0x280] sm:$0xff]
    %v237 = vld [vmem:[#allocation2 + $0x288] sm:$0xff]
    %v238 = vld [vmem:[#allocation2 + $0x290] sm:$0xff]
    %v239 = vld [vmem:[#allocation2 + $0x298] sm:$0xff]
    %v240 = vld [vmem:[#allocation2 + $0x2a0] sm:$0xff]
    %v241 = vld [vmem:[#allocation2 + $0x2a8] sm:$0xff]
    %v242 = vld [vmem:[#allocation2 + $0x2b0] sm:$0xff]
    %v243 = vld [vmem:[#allocation2 + $0x2b8] sm:$0xff]
    %v244 = vld [vmem:[#allocation2 + $0x2c0] sm:$0xff]
    %v245 = vld [vmem:[#allocation2 + $0x2c8] sm:$0xff]
    %v246 = vld [vmem:[#allocation2 + $0x2d0] sm:$0xff]
    %v247 = vld [vmem:[#allocation2 + $0x2d8] sm:$0xff]
    %v248 = vld [vmem:[#allocation2 + $0x2e0] sm:$0xff]
    %v249 = vld [vmem:[#allocation2 + $0x2e8] sm:$0xff]
    %v250 = vld [vmem:[#allocation2 + $0x2f0] sm:$0xff]
    %v251 = vld [vmem:[#allocation2 + $0x2f8] sm:$0xff]
    %v252 = vld [vmem:[#allocation2 + $0x300] sm:$0xff]
    %v253 = vld [vmem:[#allocation2 + $0x308] sm:$0xff]
    %v254 = vld [vmem:[#allocation2 + $0x310] sm:$0xff]
    %v255 = vld [vmem:[#allocation2 + $0x318] sm:$0xff]
    %v256 = vld [vmem:[#allocation2 + $0x320] sm:$0xff]
    %v257 = vld [vmem:[#allocation2 + $0x328] sm:$0xff]
    %v258 = vld [vmem:[#allocation2 + $0x330] sm:$0xff]
    %v259 = vld [vmem:[#allocation2 + $0x338] sm:$0xff]
    %v260 = vld [vmem:[#allocation2 + $0x340] sm:$0xff]
    %v261 = vld [vmem:[#allocation2 + $0x348] sm:$0xff]
    %v262 = vld [vmem:[#allocation2 + $0x350] sm:$0xff]
    %v263 = vld [vmem:[#allocation2 + $0x358] sm:$0xff]
    %v264 = vld [vmem:[#allocation2 + $0x360] sm:$0xff]
    %v265 = vld [vmem:[#allocation2 + $0x368] sm:$0xff]
    %v266 = vld [vmem:[#allocation2 + $0x370] sm:$0xff]
    %v267 = vld [vmem:[#allocation2 + $0x378] sm:$0xff]
    %v268 = vld [vmem:[#allocation2 + $0x380] sm:$0xff]
    %v269 = vld [vmem:[#allocation2 + $0x388] sm:$0xff]
    %v270 = vld [vmem:[#allocation2 + $0x390] sm:$0xff]
    %v271 = vld [vmem:[#allocation2 + $0x398] sm:$0xff]
    %v272 = vld [vmem:[#allocation2 + $0x3a0] sm:$0xff]
    %v273 = vld [vmem:[#allocation2 + $0x3a8] sm:$0xff]
    %v274 = vld [vmem:[#allocation2 + $0x3b0] sm:$0xff]
    %v275 = vld [vmem:[#allocation2 + $0x3b8] sm:$0xff]
    %v276 = vld [vmem:[#allocation2 + $0x3c0] sm:$0xff]
    %v277 = vld [vmem:[#allocation2 + $0x3c8] sm:$0xff]
    %v278 = vld [vmem:[#allocation2 + $0x3d0] sm:$0xff]
    %v279 = vld [vmem:[#allocation2 + $0x3d8] sm:$0xff]
    %v280 = vld [vmem:[#allocation2 + $0x3e0] sm:$0xff]
    %v281 = vld [vmem:[#allocation2 + $0x3e8] sm:$0xff]
    %v282 = vld [vmem:[#allocation2 + $0x3f0] sm:$0xff]
    %v283 = vld [vmem:[#allocation2 + $0x3f8] sm:$0xff]
    %v284 = vld [vmem:[#allocation2 + $0x400] sm:$0xff]
    %v285 = vld [vmem:[#allocation2 + $0x408] sm:$0xff]
    %v286 = vld [vmem:[#allocation2 + $0x410] sm:$0xff]
    %v287 = vld [vmem:[#allocation2 + $0x418] sm:$0xff]
    %v288 = vld [vmem:[#allocation2 + $0x420] sm:$0xff]
    %v289 = vld [vmem:[#allocation2 + $0x428] sm:$0xff]
    %v290 = vld [vmem:[#allocation2 + $0x430] sm:$0xff]
    %v291 = vld [vmem:[#allocation2 + $0x438] sm:$0xff]
    %v292 = vld [vmem:[#allocation2 + $0x440] sm:$0xff]
    %v293 = vld [vmem:[#allocation2 + $0x448] sm:$0xff]
    %v294 = vld [vmem:[#allocation2 + $0x450] sm:$0xff]
    %v295 = vld [vmem:[#allocation2 + $0x458] sm:$0xff]
    %v296 = vld [vmem:[#allocation2 + $0x460] sm:$0xff]
    %v297 = vld [vmem:[#allocation2 + $0x468] sm:$0xff]
    %v298 = vld [vmem:[#allocation2 + $0x470] sm:$0xff]
    %v299 = vld [vmem:[#allocation2 + $0x478] sm:$0xff]
    %v300 = vld [vmem:[#allocation2 + $0x480] sm:$0xff]
    %v301 = vld [vmem:[#allocation2 + $0x488] sm:$0xff]
    %v302 = vld [vmem:[#allocation2 + $0x490] sm:$0xff]
    %v303 = vld [vmem:[#allocation2 + $0x498] sm:$0xff]
    %v304 = vld [vmem:[#allocation2 + $0x4a0] sm:$0xff]
    %v305 = vld [vmem:[#allocation2 + $0x4a8] sm:$0xff]
    %v306 = vld [vmem:[#allocation2 + $0x4b0] sm:$0xff]
    %v307 = vld [vmem:[#allocation2 + $0x4b8] sm:$0xff]
    %v308 = vld [vmem:[#allocation2 + $0x4c0] sm:$0xff]
    %v309 = vld [vmem:[#allocation2 + $0x4c8] sm:$0xff]
    %v310 = vld [vmem:[#allocation2 + $0x4d0] sm:$0xff]
    %v311 = vld [vmem:[#allocation2 + $0x4d8] sm:$0xff]
    %v312 = vld [vmem:[#allocation2 + $0x4e0] sm:$0xff]
    %v313 = vld [vmem:[#allocation2 + $0x4e8] sm:$0xff]
    %v314 = vld [vmem:[#allocation2 + $0x4f0] sm:$0xff]
    %v315 = vld [vmem:[#allocation2 + $0x4f8] sm:$0xff]
    %v316 = vld [vmem:[#allocation2 + $0x500] sm:$0xff]
    %v317 = vld [vmem:[#allocation2 + $0x508] sm:$0xff]
    %v318 = vld [vmem:[#allocation2 + $0x510] sm:$0xff]
    %v319 = vld [vmem:[#allocation2 + $0x518] sm:$0xff]
    %v320 = vld [vmem:[#allocation2 + $0x520] sm:$0xff]
    %v321 = vld [vmem:[#allocation2 + $0x528] sm:$0xff]
    %v322 = vld [vmem:[#allocation2 + $0x530] sm:$0xff]
    %v323 = vld [vmem:[#allocation2 + $0x538] sm:$0xff]
    %v324 = vld [vmem:[#allocation2 + $0x540] sm:$0xff]
    %v325 = vld [vmem:[#allocation2 + $0x548] sm:$0xff]
    %v326 = vld [vmem:[#allocation2 + $0x550] sm:$0xff]
    %v327 = vld [vmem:[#allocation2 + $0x558] sm:$0xff]
    %v328 = vld [vmem:[#allocation2 + $0x560] sm:$0xff]
    %v329 = vld [vmem:[#allocation2 + $0x568] sm:$0xff]
    %v330 = vld [vmem:[#allocation2 + $0x570] sm:$0xff]
    %v331 = vld [vmem:[#allocation2 + $0x578] sm:$0xff]
    %v332 = vld [vmem:[#allocation2 + $0x580] sm:$0xff]
    %v333 = vld [vmem:[#allocation2 + $0x588] sm:$0xff]
    %v334 = vld [vmem:[#allocation2 + $0x590] sm:$0xff]
    %v335 = vld [vmem:[#allocation2 + $0x598] sm:$0xff]
    %v336 = vld [vmem:[#allocation2 + $0x5a0] sm:$0xff]
    %v337 = vld [vmem:[#allocation2 + $0x5a8] sm:$0xff]
    %v338 = vld [vmem:[#allocation2 + $0x5b0] sm:$0xff]
    %v339 = vld [vmem:[#allocation2 + $0x5b8] sm:$0xff]
    %v340 = vld [vmem:[#allocation2 + $0x5c0] sm:$0xff]
    %v341 = vld [vmem:[#allocation2 + $0x5c8] sm:$0xff]
    %v342 = vld [vmem:[#allocation2 + $0x5d0] sm:$0xff]
    %v343 = vld [vmem:[#allocation2 + $0x5d8] sm:$0xff]
    %v344 = vld [vmem:[#allocation2 + $0x5e0] sm:$0xff]
    %v345 = vld [vmem:[#allocation2 + $0x5e8] sm:$0xff]
    %v346 = vld [vmem:[#allocation2 + $0x5f0] sm:$0xff]
    %v347 = vld [vmem:[#allocation2 + $0x5f8] sm:$0xff]
    %v348 = vld [vmem:[%s3] sm:$0xf]
    %v350 = vlaneseq
    %v351 = vshrl.u32 %v350, 7
    %v352 = vsub.s32 0, %v351
    %v353 = vrot.slane %v348, %v352
    %v354 = vlaneseq
    %v355 = vshrl.u32 %v354, 7
    %v356 = vsub.s32 1, %v355
    %v357 = vrot.slane %v348, %v356
    %v358 = vlaneseq
    %v359 = vshrl.u32 %v358, 7
    %v360 = vsub.s32 2, %v359
    %v361 = vrot.slane %v348, %v360
    %v362 = vlaneseq
    %v363 = vshrl.u32 %v362, 7
    %v364 = vsub.s32 3, %v363
    %v365 = vrot.slane %v348, %v364
    %v562 = vunpack.c.l.b16 %v156
    %v563 = vunpack.c.h.b16 %v156
    %v564 = vunpack.c.l.b16 %v157
    %v565 = vunpack.c.h.b16 %v157
    %v566 = vunpack.c.l.b16 %v158
    %v567 = vunpack.c.h.b16 %v158
    %v568 = vunpack.c.l.b16 %v159
    %v569 = vunpack.c.h.b16 %v159
    %v570 = vunpack.c.l.b16 %v160
    %v571 = vunpack.c.h.b16 %v160
    %v572 = vunpack.c.l.b16 %v161
    %v573 = vunpack.c.h.b16 %v161
    %v574 = vunpack.c.l.b16 %v162
    %v575 = vunpack.c.h.b16 %v162
    %v576 = vunpack.c.l.b16 %v163
    %v577 = vunpack.c.h.b16 %v163
    %v578 = vunpack.c.l.b16 %v164
    %v579 = vunpack.c.h.b16 %v164
    %v580 = vunpack.c.l.b16 %v165
    %v581 = vunpack.c.h.b16 %v165
    %v582 = vunpack.c.l.b16 %v166
    %v583 = vunpack.c.h.b16 %v166
    %v584 = vunpack.c.l.b16 %v167
    %v585 = vunpack.c.h.b16 %v167
    %v586 = vunpack.c.l.b16 %v168
    %v587 = vunpack.c.h.b16 %v168
    %v588 = vunpack.c.l.b16 %v169
    %v589 = vunpack.c.h.b16 %v169
    %v590 = vunpack.c.l.b16 %v170
    %v591 = vunpack.c.h.b16 %v170
    %v592 = vunpack.c.l.b16 %v171
    %v593 = vunpack.c.h.b16 %v171
    %v594 = vunpack.c.l.b16 %v172
    %v595 = vunpack.c.h.b16 %v172
    %v596 = vunpack.c.l.b16 %v173
    %v597 = vunpack.c.h.b16 %v173
    %v598 = vunpack.c.l.b16 %v174
    %v599 = vunpack.c.h.b16 %v174
    %v600 = vunpack.c.l.b16 %v175
    %v601 = vunpack.c.h.b16 %v175
    %v602 = vunpack.c.l.b16 %v176
    %v603 = vunpack.c.h.b16 %v176
    %v604 = vunpack.c.l.b16 %v177
    %v605 = vunpack.c.h.b16 %v177
    %v606 = vunpack.c.l.b16 %v178
    %v607 = vunpack.c.h.b16 %v178
    %v608 = vunpack.c.l.b16 %v179
    %v609 = vunpack.c.h.b16 %v179
    %v610 = vunpack.c.l.b16 %v180
    %v611 = vunpack.c.h.b16 %v180
    %v612 = vunpack.c.l.b16 %v181
    %v613 = vunpack.c.h.b16 %v181
    %v614 = vunpack.c.l.b16 %v182
    %v615 = vunpack.c.h.b16 %v182
    %v616 = vunpack.c.l.b16 %v183
    %v617 = vunpack.c.h.b16 %v183
    %v618 = vunpack.c.l.b16 %v184
    %v619 = vunpack.c.h.b16 %v184
    %v620 = vunpack.c.l.b16 %v185
    %v621 = vunpack.c.h.b16 %v185
    %v622 = vunpack.c.l.b16 %v186
    %v623 = vunpack.c.h.b16 %v186
    %v624 = vunpack.c.l.b16 %v187
    %v625 = vunpack.c.h.b16 %v187
    %v626 = vunpack.c.l.b16 %v188
    %v627 = vunpack.c.h.b16 %v188
    %v628 = vunpack.c.l.b16 %v189
    %v629 = vunpack.c.h.b16 %v189
    %v630 = vunpack.c.l.b16 %v190
    %v631 = vunpack.c.h.b16 %v190
    %v632 = vunpack.c.l.b16 %v191
    %v633 = vunpack.c.h.b16 %v191
    %v634 = vunpack.c.l.b16 %v192
    %v635 = vunpack.c.h.b16 %v192
    %v636 = vunpack.c.l.b16 %v193
    %v637 = vunpack.c.h.b16 %v193
    %v638 = vunpack.c.l.b16 %v194
    %v639 = vunpack.c.h.b16 %v194
    %v640 = vunpack.c.l.b16 %v195
    %v641 = vunpack.c.h.b16 %v195
    %v642 = vunpack.c.l.b16 %v196
    %v643 = vunpack.c.h.b16 %v196
    %v644 = vunpack.c.l.b16 %v197
    %v645 = vunpack.c.h.b16 %v197
    %v646 = vunpack.c.l.b16 %v198
    %v647 = vunpack.c.h.b16 %v198
    %v648 = vunpack.c.l.b16 %v199
    %v649 = vunpack.c.h.b16 %v199
    %v650 = vunpack.c.l.b16 %v200
    %v651 = vunpack.c.h.b16 %v200
    %v652 = vunpack.c.l.b16 %v201
    %v653 = vunpack.c.h.b16 %v201
    %v654 = vunpack.c.l.b16 %v202
    %v655 = vunpack.c.h.b16 %v202
    %v656 = vunpack.c.l.b16 %v203
    %v657 = vunpack.c.h.b16 %v203
    %v658 = vunpack.c.l.b16 %v204
    %v659 = vunpack.c.h.b16 %v204
    %v660 = vunpack.c.l.b16 %v205
    %v661 = vunpack.c.h.b16 %v205
    %v662 = vunpack.c.l.b16 %v206
    %v663 = vunpack.c.h.b16 %v206
    %v664 = vunpack.c.l.b16 %v207
    %v665 = vunpack.c.h.b16 %v207
    %v666 = vunpack.c.l.b16 %v208
    %v667 = vunpack.c.h.b16 %v208
    %v668 = vunpack.c.l.b16 %v209
    %v669 = vunpack.c.h.b16 %v209
    %v670 = vunpack.c.l.b16 %v210
    %v671 = vunpack.c.h.b16 %v210
    %v672 = vunpack.c.l.b16 %v211
    %v673 = vunpack.c.h.b16 %v211
    %v674 = vunpack.c.l.b16 %v212
    %v675 = vunpack.c.h.b16 %v212
    %v676 = vunpack.c.l.b16 %v213
    %v677 = vunpack.c.h.b16 %v213
    %v678 = vunpack.c.l.b16 %v214
    %v679 = vunpack.c.h.b16 %v214
    %v680 = vunpack.c.l.b16 %v215
    %v681 = vunpack.c.h.b16 %v215
    %v682 = vunpack.c.l.b16 %v216
    %v683 = vunpack.c.h.b16 %v216
    %v684 = vunpack.c.l.b16 %v217
    %v685 = vunpack.c.h.b16 %v217
    %v686 = vunpack.c.l.b16 %v218
    %v687 = vunpack.c.h.b16 %v218
    %v688 = vunpack.c.l.b16 %v219
    %v689 = vunpack.c.h.b16 %v219
    %v690 = vunpack.c.l.b16 %v220
    %v691 = vunpack.c.h.b16 %v220
    %v692 = vunpack.c.l.b16 %v221
    %v693 = vunpack.c.h.b16 %v221
    %v694 = vunpack.c.l.b16 %v222
    %v695 = vunpack.c.h.b16 %v222
    %v696 = vunpack.c.l.b16 %v223
    %v697 = vunpack.c.h.b16 %v223
    %v698 = vunpack.c.l.b16 %v224
    %v699 = vunpack.c.h.b16 %v224
    %v700 = vunpack.c.l.b16 %v225
    %v701 = vunpack.c.h.b16 %v225
    %v702 = vunpack.c.l.b16 %v226
    %v703 = vunpack.c.h.b16 %v226
    %v704 = vunpack.c.l.b16 %v227
    %v705 = vunpack.c.h.b16 %v227
    %v706 = vunpack.c.l.b16 %v228
    %v707 = vunpack.c.h.b16 %v228
    %v708 = vunpack.c.l.b16 %v229
    %v709 = vunpack.c.h.b16 %v229
    %v710 = vunpack.c.l.b16 %v230
    %v711 = vunpack.c.h.b16 %v230
    %v712 = vunpack.c.l.b16 %v231
    %v713 = vunpack.c.h.b16 %v231
    %v714 = vunpack.c.l.b16 %v232
    %v715 = vunpack.c.h.b16 %v232
    %v716 = vunpack.c.l.b16 %v233
    %v717 = vunpack.c.h.b16 %v233
    %v718 = vunpack.c.l.b16 %v234
    %v719 = vunpack.c.h.b16 %v234
    %v720 = vunpack.c.l.b16 %v235
    %v721 = vunpack.c.h.b16 %v235
    %v722 = vunpack.c.l.b16 %v236
    %v723 = vunpack.c.h.b16 %v236
    %v724 = vunpack.c.l.b16 %v237
    %v725 = vunpack.c.h.b16 %v237
    %v726 = vunpack.c.l.b16 %v238
    %v727 = vunpack.c.h.b16 %v238
    %v728 = vunpack.c.l.b16 %v239
    %v729 = vunpack.c.h.b16 %v239
    %v730 = vunpack.c.l.b16 %v240
    %v731 = vunpack.c.h.b16 %v240
    %v732 = vunpack.c.l.b16 %v241
    %v733 = vunpack.c.h.b16 %v241
    %v734 = vunpack.c.l.b16 %v242
    %v735 = vunpack.c.h.b16 %v242
    %v736 = vunpack.c.l.b16 %v243
    %v737 = vunpack.c.h.b16 %v243
    %v738 = vunpack.c.l.b16 %v244
    %v739 = vunpack.c.h.b16 %v244
    %v740 = vunpack.c.l.b16 %v245
    %v741 = vunpack.c.h.b16 %v245
    %v742 = vunpack.c.l.b16 %v246
    %v743 = vunpack.c.h.b16 %v246
    %v744 = vunpack.c.l.b16 %v247
    %v745 = vunpack.c.h.b16 %v247
    %v746 = vunpack.c.l.b16 %v248
    %v747 = vunpack.c.h.b16 %v248
    %v748 = vunpack.c.l.b16 %v249
    %v749 = vunpack.c.h.b16 %v249
    %v750 = vunpack.c.l.b16 %v250
    %v751 = vunpack.c.h.b16 %v250
    %v752 = vunpack.c.l.b16 %v251
    %v753 = vunpack.c.h.b16 %v251
    %v754 = vunpack.c.l.b16 %v252
    %v755 = vunpack.c.h.b16 %v252
    %v756 = vunpack.c.l.b16 %v253
    %v757 = vunpack.c.h.b16 %v253
    %v758 = vunpack.c.l.b16 %v254
    %v759 = vunpack.c.h.b16 %v254
    %v760 = vunpack.c.l.b16 %v255
    %v761 = vunpack.c.h.b16 %v255
    %v762 = vunpack.c.l.b16 %v256
    %v763 = vunpack.c.h.b16 %v256
    %v764 = vunpack.c.l.b16 %v257
    %v765 = vunpack.c.h.b16 %v257
    %v766 = vunpack.c.l.b16 %v258
    %v767 = vunpack.c.h.b16 %v258
    %v768 = vunpack.c.l.b16 %v259
    %v769 = vunpack.c.h.b16 %v259
    %v770 = vunpack.c.l.b16 %v260
    %v771 = vunpack.c.h.b16 %v260
    %v772 = vunpack.c.l.b16 %v261
    %v773 = vunpack.c.h.b16 %v261
    %v774 = vunpack.c.l.b16 %v262
    %v775 = vunpack.c.h.b16 %v262
    %v776 = vunpack.c.l.b16 %v263
    %v777 = vunpack.c.h.b16 %v263
    %v778 = vunpack.c.l.b16 %v264
    %v779 = vunpack.c.h.b16 %v264
    %v780 = vunpack.c.l.b16 %v265
    %v781 = vunpack.c.h.b16 %v265
    %v782 = vunpack.c.l.b16 %v266
    %v783 = vunpack.c.h.b16 %v266
    %v784 = vunpack.c.l.b16 %v267
    %v785 = vunpack.c.h.b16 %v267
    %v786 = vunpack.c.l.b16 %v268
    %v787 = vunpack.c.h.b16 %v268
    %v788 = vunpack.c.l.b16 %v269
    %v789 = vunpack.c.h.b16 %v269
    %v790 = vunpack.c.l.b16 %v270
    %v791 = vunpack.c.h.b16 %v270
    %v792 = vunpack.c.l.b16 %v271
    %v793 = vunpack.c.h.b16 %v271
    %v794 = vunpack.c.l.b16 %v272
    %v795 = vunpack.c.h.b16 %v272
    %v796 = vunpack.c.l.b16 %v273
    %v797 = vunpack.c.h.b16 %v273
    %v798 = vunpack.c.l.b16 %v274
    %v799 = vunpack.c.h.b16 %v274
    %v800 = vunpack.c.l.b16 %v275
    %v801 = vunpack.c.h.b16 %v275
    %v802 = vunpack.c.l.b16 %v276
    %v803 = vunpack.c.h.b16 %v276
    %v804 = vunpack.c.l.b16 %v277
    %v805 = vunpack.c.h.b16 %v277
    %v806 = vunpack.c.l.b16 %v278
    %v807 = vunpack.c.h.b16 %v278
    %v808 = vunpack.c.l.b16 %v279
    %v809 = vunpack.c.h.b16 %v279
    %v810 = vunpack.c.l.b16 %v280
    %v811 = vunpack.c.h.b16 %v280
    %v812 = vunpack.c.l.b16 %v281
    %v813 = vunpack.c.h.b16 %v281
    %v814 = vunpack.c.l.b16 %v282
    %v815 = vunpack.c.h.b16 %v282
    %v816 = vunpack.c.l.b16 %v283
    %v817 = vunpack.c.h.b16 %v283
    %v818 = vunpack.c.l.b16 %v284
    %v819 = vunpack.c.h.b16 %v284
    %v820 = vunpack.c.l.b16 %v285
    %v821 = vunpack.c.h.b16 %v285
    %v822 = vunpack.c.l.b16 %v286
    %v823 = vunpack.c.h.b16 %v286
    %v824 = vunpack.c.l.b16 %v287
    %v825 = vunpack.c.h.b16 %v287
    %v826 = vunpack.c.l.b16 %v288
    %v827 = vunpack.c.h.b16 %v288
    %v828 = vunpack.c.l.b16 %v289
    %v829 = vunpack.c.h.b16 %v289
    %v830 = vunpack.c.l.b16 %v290
    %v831 = vunpack.c.h.b16 %v290
    %v832 = vunpack.c.l.b16 %v291
    %v833 = vunpack.c.h.b16 %v291
    %v834 = vunpack.c.l.b16 %v292
    %v835 = vunpack.c.h.b16 %v292
    %v836 = vunpack.c.l.b16 %v293
    %v837 = vunpack.c.h.b16 %v293
    %v838 = vunpack.c.l.b16 %v294
    %v839 = vunpack.c.h.b16 %v294
    %v840 = vunpack.c.l.b16 %v295
    %v841 = vunpack.c.h.b16 %v295
    %v842 = vunpack.c.l.b16 %v296
    %v843 = vunpack.c.h.b16 %v296
    %v844 = vunpack.c.l.b16 %v297
    %v845 = vunpack.c.h.b16 %v297
    %v846 = vunpack.c.l.b16 %v298
    %v847 = vunpack.c.h.b16 %v298
    %v848 = vunpack.c.l.b16 %v299
    %v849 = vunpack.c.h.b16 %v299
    %v850 = vunpack.c.l.b16 %v300
    %v851 = vunpack.c.h.b16 %v300
    %v852 = vunpack.c.l.b16 %v301
    %v853 = vunpack.c.h.b16 %v301
    %v854 = vunpack.c.l.b16 %v302
    %v855 = vunpack.c.h.b16 %v302
    %v856 = vunpack.c.l.b16 %v303
    %v857 = vunpack.c.h.b16 %v303
    %v858 = vunpack.c.l.b16 %v304
    %v859 = vunpack.c.h.b16 %v304
    %v860 = vunpack.c.l.b16 %v305
    %v861 = vunpack.c.h.b16 %v305
    %v862 = vunpack.c.l.b16 %v306
    %v863 = vunpack.c.h.b16 %v306
    %v864 = vunpack.c.l.b16 %v307
    %v865 = vunpack.c.h.b16 %v307
    %v866 = vunpack.c.l.b16 %v308
    %v867 = vunpack.c.h.b16 %v308
    %v868 = vunpack.c.l.b16 %v309
    %v869 = vunpack.c.h.b16 %v309
    %v870 = vunpack.c.l.b16 %v310
    %v871 = vunpack.c.h.b16 %v310
    %v872 = vunpack.c.l.b16 %v311
    %v873 = vunpack.c.h.b16 %v311
    %v874 = vunpack.c.l.b16 %v312
    %v875 = vunpack.c.h.b16 %v312
    %v876 = vunpack.c.l.b16 %v313
    %v877 = vunpack.c.h.b16 %v313
    %v878 = vunpack.c.l.b16 %v314
    %v879 = vunpack.c.h.b16 %v314
    %v880 = vunpack.c.l.b16 %v315
    %v881 = vunpack.c.h.b16 %v315
    %v882 = vunpack.c.l.b16 %v316
    %v883 = vunpack.c.h.b16 %v316
    %v884 = vunpack.c.l.b16 %v317
    %v885 = vunpack.c.h.b16 %v317
    %v886 = vunpack.c.l.b16 %v318
    %v887 = vunpack.c.h.b16 %v318
    %v888 = vunpack.c.l.b16 %v319
    %v889 = vunpack.c.h.b16 %v319
    %v890 = vunpack.c.l.b16 %v320
    %v891 = vunpack.c.h.b16 %v320
    %v892 = vunpack.c.l.b16 %v321
    %v893 = vunpack.c.h.b16 %v321
    %v894 = vunpack.c.l.b16 %v322
    %v895 = vunpack.c.h.b16 %v322
    %v896 = vunpack.c.l.b16 %v323
    %v897 = vunpack.c.h.b16 %v323
    %v898 = vunpack.c.l.b16 %v324
    %v899 = vunpack.c.h.b16 %v324
    %v900 = vunpack.c.l.b16 %v325
    %v901 = vunpack.c.h.b16 %v325
    %v902 = vunpack.c.l.b16 %v326
    %v903 = vunpack.c.h.b16 %v326
    %v904 = vunpack.c.l.b16 %v327
    %v905 = vunpack.c.h.b16 %v327
    %v906 = vunpack.c.l.b16 %v328
    %v907 = vunpack.c.h.b16 %v328
    %v908 = vunpack.c.l.b16 %v329
    %v909 = vunpack.c.h.b16 %v329
    %v910 = vunpack.c.l.b16 %v330
    %v911 = vunpack.c.h.b16 %v330
    %v912 = vunpack.c.l.b16 %v331
    %v913 = vunpack.c.h.b16 %v331
    %v914 = vunpack.c.l.b16 %v332
    %v915 = vunpack.c.h.b16 %v332
    %v916 = vunpack.c.l.b16 %v333
    %v917 = vunpack.c.h.b16 %v333
    %v918 = vunpack.c.l.b16 %v334
    %v919 = vunpack.c.h.b16 %v334
    %v920 = vunpack.c.l.b16 %v335
    %v921 = vunpack.c.h.b16 %v335
    %v922 = vunpack.c.l.b16 %v336
    %v923 = vunpack.c.h.b16 %v336
    %v924 = vunpack.c.l.b16 %v337
    %v925 = vunpack.c.h.b16 %v337
    %v926 = vunpack.c.l.b16 %v338
    %v927 = vunpack.c.h.b16 %v338
    %v928 = vunpack.c.l.b16 %v339
    %v929 = vunpack.c.h.b16 %v339
    %v930 = vunpack.c.l.b16 %v340
    %v931 = vunpack.c.h.b16 %v340
    %v932 = vunpack.c.l.b16 %v341
    %v933 = vunpack.c.h.b16 %v341
    %v934 = vunpack.c.l.b16 %v342
    %v935 = vunpack.c.h.b16 %v342
    %v936 = vunpack.c.l.b16 %v343
    %v937 = vunpack.c.h.b16 %v343
    %v938 = vunpack.c.l.b16 %v344
    %v939 = vunpack.c.h.b16 %v344
    %v940 = vunpack.c.l.b16 %v345
    %v941 = vunpack.c.h.b16 %v345
    %v942 = vunpack.c.l.b16 %v346
    %v943 = vunpack.c.h.b16 %v346
    %v944 = vunpack.c.l.b16 %v347
    %v945 = vunpack.c.h.b16 %v347
    %v946 = vpack.c.b16 %v566, %v562
    %v947 = vpack.c.b16 %v567, %v563
    %v948 = vpack.c.b16 %v568, %v564
    %v949 = vpack.c.b16 %v569, %v565
    %v950 = vpack.c.b16 %v574, %v570
    %v951 = vpack.c.b16 %v575, %v571
    %v952 = vpack.c.b16 %v576, %v572
    %v953 = vpack.c.b16 %v577, %v573
    %v954 = vpack.c.b16 %v582, %v578
    %v955 = vpack.c.b16 %v583, %v579
    %v956 = vpack.c.b16 %v584, %v580
    %v957 = vpack.c.b16 %v585, %v581
    %v958 = vpack.c.b16 %v590, %v586
    %v959 = vpack.c.b16 %v591, %v587
    %v960 = vpack.c.b16 %v592, %v588
    %v961 = vpack.c.b16 %v593, %v589
    %v962 = vpack.c.b16 %v598, %v594
    %v963 = vpack.c.b16 %v599, %v595
    %v964 = vpack.c.b16 %v600, %v596
    %v965 = vpack.c.b16 %v601, %v597
    %v966 = vpack.c.b16 %v606, %v602
    %v967 = vpack.c.b16 %v607, %v603
    %v968 = vpack.c.b16 %v608, %v604
    %v969 = vpack.c.b16 %v609, %v605
    %v970 = vpack.c.b16 %v614, %v610
    %v971 = vpack.c.b16 %v615, %v611
    %v972 = vpack.c.b16 %v616, %v612
    %v973 = vpack.c.b16 %v617, %v613
    %v974 = vpack.c.b16 %v622, %v618
    %v975 = vpack.c.b16 %v623, %v619
    %v976 = vpack.c.b16 %v624, %v620
    %v977 = vpack.c.b16 %v625, %v621
    %v978 = vpack.c.b16 %v630, %v626
    %v979 = vpack.c.b16 %v631, %v627
    %v980 = vpack.c.b16 %v632, %v628
    %v981 = vpack.c.b16 %v633, %v629
    %v982 = vpack.c.b16 %v638, %v634
    %v983 = vpack.c.b16 %v639, %v635
    %v984 = vpack.c.b16 %v640, %v636
    %v985 = vpack.c.b16 %v641, %v637
    %v986 = vpack.c.b16 %v646, %v642
    %v987 = vpack.c.b16 %v647, %v643
    %v988 = vpack.c.b16 %v648, %v644
    %v989 = vpack.c.b16 %v649, %v645
    %v990 = vpack.c.b16 %v654, %v650
    %v991 = vpack.c.b16 %v655, %v651
    %v992 = vpack.c.b16 %v656, %v652
    %v993 = vpack.c.b16 %v657, %v653
    %v994 = vpack.c.b16 %v662, %v658
    %v995 = vpack.c.b16 %v663, %v659
    %v996 = vpack.c.b16 %v664, %v660
    %v997 = vpack.c.b16 %v665, %v661
    %v998 = vpack.c.b16 %v670, %v666
    %v999 = vpack.c.b16 %v671, %v667
    %v1000 = vpack.c.b16 %v672, %v668
    %v1001 = vpack.c.b16 %v673, %v669
    %v1002 = vpack.c.b16 %v678, %v674
    %v1003 = vpack.c.b16 %v679, %v675
    %v1004 = vpack.c.b16 %v680, %v676
    %v1005 = vpack.c.b16 %v681, %v677
    %v1006 = vpack.c.b16 %v686, %v682
    %v1007 = vpack.c.b16 %v687, %v683
    %v1008 = vpack.c.b16 %v688, %v684
    %v1009 = vpack.c.b16 %v689, %v685
    %v1010 = vpack.c.b16 %v694, %v690
    %v1011 = vpack.c.b16 %v695, %v691
    %v1012 = vpack.c.b16 %v696, %v692
    %v1013 = vpack.c.b16 %v697, %v693
    %v1014 = vpack.c.b16 %v702, %v698
    %v1015 = vpack.c.b16 %v703, %v699
    %v1016 = vpack.c.b16 %v704, %v700
    %v1017 = vpack.c.b16 %v705, %v701
    %v1018 = vpack.c.b16 %v710, %v706
    %v1019 = vpack.c.b16 %v711, %v707
    %v1020 = vpack.c.b16 %v712, %v708
    %v1021 = vpack.c.b16 %v713, %v709
    %v1022 = vpack.c.b16 %v718, %v714
    %v1023 = vpack.c.b16 %v719, %v715
    %v1024 = vpack.c.b16 %v720, %v716
    %v1025 = vpack.c.b16 %v721, %v717
    %v1026 = vpack.c.b16 %v726, %v722
    %v1027 = vpack.c.b16 %v727, %v723
    %v1028 = vpack.c.b16 %v728, %v724
    %v1029 = vpack.c.b16 %v729, %v725
    %v1030 = vpack.c.b16 %v734, %v730
    %v1031 = vpack.c.b16 %v735, %v731
    %v1032 = vpack.c.b16 %v736, %v732
    %v1033 = vpack.c.b16 %v737, %v733
    %v1034 = vpack.c.b16 %v742, %v738
    %v1035 = vpack.c.b16 %v743, %v739
    %v1036 = vpack.c.b16 %v744, %v740
    %v1037 = vpack.c.b16 %v745, %v741
    %v1038 = vpack.c.b16 %v750, %v746
    %v1039 = vpack.c.b16 %v751, %v747
    %v1040 = vpack.c.b16 %v752, %v748
    %v1041 = vpack.c.b16 %v753, %v749
    %v1042 = vpack.c.b16 %v758, %v754
    %v1043 = vpack.c.b16 %v759, %v755
    %v1044 = vpack.c.b16 %v760, %v756
    %v1045 = vpack.c.b16 %v761, %v757
    %v1046 = vpack.c.b16 %v766, %v762
    %v1047 = vpack.c.b16 %v767, %v763
    %v1048 = vpack.c.b16 %v768, %v764
    %v1049 = vpack.c.b16 %v769, %v765
    %v1050 = vpack.c.b16 %v774, %v770
    %v1051 = vpack.c.b16 %v775, %v771
    %v1052 = vpack.c.b16 %v776, %v772
    %v1053 = vpack.c.b16 %v777, %v773
    %v1054 = vpack.c.b16 %v782, %v778
    %v1055 = vpack.c.b16 %v783, %v779
    %v1056 = vpack.c.b16 %v784, %v780
    %v1057 = vpack.c.b16 %v785, %v781
    %v1058 = vpack.c.b16 %v790, %v786
    %v1059 = vpack.c.b16 %v791, %v787
    %v1060 = vpack.c.b16 %v792, %v788
    %v1061 = vpack.c.b16 %v793, %v789
    %v1062 = vpack.c.b16 %v798, %v794
    %v1063 = vpack.c.b16 %v799, %v795
    %v1064 = vpack.c.b16 %v800, %v796
    %v1065 = vpack.c.b16 %v801, %v797
    %v1066 = vpack.c.b16 %v806, %v802
    %v1067 = vpack.c.b16 %v807, %v803
    %v1068 = vpack.c.b16 %v808, %v804
    %v1069 = vpack.c.b16 %v809, %v805
    %v1070 = vpack.c.b16 %v814, %v810
    %v1071 = vpack.c.b16 %v815, %v811
    %v1072 = vpack.c.b16 %v816, %v812
    %v1073 = vpack.c.b16 %v817, %v813
    %v1074 = vpack.c.b16 %v822, %v818
    %v1075 = vpack.c.b16 %v823, %v819
    %v1076 = vpack.c.b16 %v824, %v820
    %v1077 = vpack.c.b16 %v825, %v821
    %v1078 = vpack.c.b16 %v830, %v826
    %v1079 = vpack.c.b16 %v831, %v827
    %v1080 = vpack.c.b16 %v832, %v828
    %v1081 = vpack.c.b16 %v833, %v829
    %v1082 = vpack.c.b16 %v838, %v834
    %v1083 = vpack.c.b16 %v839, %v835
    %v1084 = vpack.c.b16 %v840, %v836
    %v1085 = vpack.c.b16 %v841, %v837
    %v1086 = vpack.c.b16 %v846, %v842
    %v1087 = vpack.c.b16 %v847, %v843
    %v1088 = vpack.c.b16 %v848, %v844
    %v1089 = vpack.c.b16 %v849, %v845
    %v1090 = vpack.c.b16 %v854, %v850
    %v1091 = vpack.c.b16 %v855, %v851
    %v1092 = vpack.c.b16 %v856, %v852
    %v1093 = vpack.c.b16 %v857, %v853
    %v1094 = vpack.c.b16 %v862, %v858
    %v1095 = vpack.c.b16 %v863, %v859
    %v1096 = vpack.c.b16 %v864, %v860
    %v1097 = vpack.c.b16 %v865, %v861
    %v1098 = vpack.c.b16 %v870, %v866
    %v1099 = vpack.c.b16 %v871, %v867
    %v1100 = vpack.c.b16 %v872, %v868
    %v1101 = vpack.c.b16 %v873, %v869
    %v1102 = vpack.c.b16 %v878, %v874
    %v1103 = vpack.c.b16 %v879, %v875
    %v1104 = vpack.c.b16 %v880, %v876
    %v1105 = vpack.c.b16 %v881, %v877
    %v1106 = vpack.c.b16 %v886, %v882
    %v1107 = vpack.c.b16 %v887, %v883
    %v1108 = vpack.c.b16 %v888, %v884
    %v1109 = vpack.c.b16 %v889, %v885
    %v1110 = vpack.c.b16 %v894, %v890
    %v1111 = vpack.c.b16 %v895, %v891
    %v1112 = vpack.c.b16 %v896, %v892
    %v1113 = vpack.c.b16 %v897, %v893
    %v1114 = vpack.c.b16 %v902, %v898
    %v1115 = vpack.c.b16 %v903, %v899
    %v1116 = vpack.c.b16 %v904, %v900
    %v1117 = vpack.c.b16 %v905, %v901
    %v1118 = vpack.c.b16 %v910, %v906
    %v1119 = vpack.c.b16 %v911, %v907
    %v1120 = vpack.c.b16 %v912, %v908
    %v1121 = vpack.c.b16 %v913, %v909
    %v1122 = vpack.c.b16 %v918, %v914
    %v1123 = vpack.c.b16 %v919, %v915
    %v1124 = vpack.c.b16 %v920, %v916
    %v1125 = vpack.c.b16 %v921, %v917
    %v1126 = vpack.c.b16 %v926, %v922
    %v1127 = vpack.c.b16 %v927, %v923
    %v1128 = vpack.c.b16 %v928, %v924
    %v1129 = vpack.c.b16 %v929, %v925
    %v1130 = vpack.c.b16 %v934, %v930
    %v1131 = vpack.c.b16 %v935, %v931
    %v1132 = vpack.c.b16 %v936, %v932
    %v1133 = vpack.c.b16 %v937, %v933
    %v1134 = vpack.c.b16 %v942, %v938
    %v1135 = vpack.c.b16 %v943, %v939
    %v1136 = vpack.c.b16 %v944, %v940
    %v1137 = vpack.c.b16 %v945, %v941
    %1330 = vmatprep.subr.bf16.mxu0 %v947
    %1331 = vmatpush1.bf16.msra.mxu0 %v946
    %1332 = vmatprep.subr.bf16.mxu0 %v951
    %1333 = vmatpush1.bf16.msra.mxu0 %v950
    %1334 = vmatprep.subr.bf16.mxu0 %v955
    %1335 = vmatpush1.bf16.msra.mxu0 %v954
    %1336 = vmatprep.subr.bf16.mxu0 %v959
    %1337 = vmatpush1.bf16.msra.mxu0 %v958
    %1338 = vmatprep.subr.bf16.mxu0 %v963
    %1339 = vmatpush1.bf16.msra.mxu0 %v962
    %1340 = vmatprep.subr.bf16.mxu0 %v967
    %1341 = vmatpush1.bf16.msra.mxu0 %v966
    %1342 = vmatprep.subr.bf16.mxu0 %v971
    %1343 = vmatpush1.bf16.msra.mxu0 %v970
    %1344 = vmatprep.subr.bf16.mxu0 %v975
    %1345 = vmatpush1.bf16.msra.mxu0 %v974
    %1346 = vmatprep.subr.bf16.mxu0 %v979
    %1347 = vmatpush1.bf16.msra.mxu0 %v978
    %1348 = vmatprep.subr.bf16.mxu0 %v983
    %1349 = vmatpush1.bf16.msra.mxu0 %v982
    %1350 = vmatprep.subr.bf16.mxu0 %v987
    %1351 = vmatpush1.bf16.msra.mxu0 %v986
    %1352 = vmatprep.subr.bf16.mxu0 %v991
    %1353 = vmatpush1.bf16.msra.mxu0 %v990
    %1354 = vmatprep.subr.bf16.mxu0 %v995
    %1355 = vmatpush1.bf16.msra.mxu0 %v994
    %1356 = vmatprep.subr.bf16.mxu0 %v999
    %1357 = vmatpush1.bf16.msra.mxu0 %v998
    %1358 = vmatprep.subr.bf16.mxu0 %v1003
    %1359 = vmatpush1.bf16.msra.mxu0 %v1002
    %1360 = vmatprep.subr.bf16.mxu0 %v1007
    %1361 = vmatpush1.bf16.msra.mxu0 %v1006
    %1362 = vmatprep.mubr.bf16.mxu0 %v151
    %1363 = vmatmul.mubr.bf16.gmra.mrb[0].mxu0 %v150
    %v1364 = vpop.f32.mrb[0].mxu0
    %v1365 = vadd.f32 %v353, %v1364
    %v1366 = vpop.f32.mrb[0].mxu0
    %v1367 = vadd.f32 %v357, %v1366
    %v1368 = vpop.f32.mrb[0].mxu0
    %v1369 = vpop.f32.mrb[0].mxu0
    %1370 = vdwg.mxu0
    %1371 = vmatprep.subr.bf16.mxu0 %v1011
    %1372 = vmatpush1.bf16.msra.mxu0 %v1010
    %1373 = vmatprep.subr.bf16.mxu0 %v1015
    %1374 = vmatpush1.bf16.msra.mxu0 %v1014
    %1375 = vmatprep.subr.bf16.mxu0 %v1019
    %1376 = vmatpush1.bf16.msra.mxu0 %v1018
    %1377 = vmatprep.subr.bf16.mxu0 %v1023
    %1378 = vmatpush1.bf16.msra.mxu0 %v1022
    %1379 = vmatprep.subr.bf16.mxu0 %v1027
    %1380 = vmatpush1.bf16.msra.mxu0 %v1026
    %1381 = vmatprep.subr.bf16.mxu0 %v1031
    %1382 = vmatpush1.bf16.msra.mxu0 %v1030
    %1383 = vmatprep.subr.bf16.mxu0 %v1035
    %1384 = vmatpush1.bf16.msra.mxu0 %v1034
    %1385 = vmatprep.subr.bf16.mxu0 %v1039
    %1386 = vmatpush1.bf16.msra.mxu0 %v1038
    %1387 = vmatprep.subr.bf16.mxu0 %v1043
    %1388 = vmatpush1.bf16.msra.mxu0 %v1042
    %1389 = vmatprep.subr.bf16.mxu0 %v1047
    %1390 = vmatpush1.bf16.msra.mxu0 %v1046
    %1391 = vmatprep.subr.bf16.mxu0 %v1051
    %1392 = vmatpush1.bf16.msra.mxu0 %v1050
    %1393 = vmatprep.subr.bf16.mxu0 %v1055
    %1394 = vmatpush1.bf16.msra.mxu0 %v1054
    %1395 = vmatprep.subr.bf16.mxu0 %v1059
    %1396 = vmatpush1.bf16.msra.mxu0 %v1058
    %1397 = vmatprep.subr.bf16.mxu0 %v1063
    %1398 = vmatpush1.bf16.msra.mxu0 %v1062
    %1399 = vmatprep.subr.bf16.mxu0 %v1067
    %1400 = vmatpush1.bf16.msra.mxu0 %v1066
    %1401 = vmatprep.subr.bf16.mxu0 %v1071
    %1402 = vmatpush1.bf16.msra.mxu0 %v1070
    %1403 = vmatprep.mubr.bf16.mxu0 %v153
    %1404 = vmatmul.mubr.bf16.gmra.mrb[0].mxu0 %v152
    %v1405 = vpop.f32.mrb[0].mxu0
    %v1406 = vadd.f32 %v1365, %v1405
    %v1407 = vpop.f32.mrb[0].mxu0
    %v1408 = vadd.f32 %v1367, %v1407
    %v1409 = vpop.f32.mrb[0].mxu0
    %v1410 = vpop.f32.mrb[0].mxu0
    %1411 = vdwg.mxu0
    %1412 = vmatprep.subr.bf16.mxu0 %v1075
    %1413 = vmatpush1.bf16.msra.mxu0 %v1074
    %1414 = vmatprep.subr.bf16.mxu0 %v1079
    %1415 = vmatpush1.bf16.msra.mxu0 %v1078
    %1416 = vmatprep.subr.bf16.mxu0 %v1083
    %1417 = vmatpush1.bf16.msra.mxu0 %v1082
    %1418 = vmatprep.subr.bf16.mxu0 %v1087
    %1419 = vmatpush1.bf16.msra.mxu0 %v1086
    %1420 = vmatprep.subr.bf16.mxu0 %v1091
    %1421 = vmatpush1.bf16.msra.mxu0 %v1090
    %1422 = vmatprep.subr.bf16.mxu0 %v1095
    %1423 = vmatpush1.bf16.msra.mxu0 %v1094
    %1424 = vmatprep.subr.bf16.mxu0 %v1099
    %1425 = vmatpush1.bf16.msra.mxu0 %v1098
    %1426 = vmatprep.subr.bf16.mxu0 %v1103
    %1427 = vmatpush1.bf16.msra.mxu0 %v1102
    %1428 = vmatprep.subr.bf16.mxu0 %v1107
    %1429 = vmatpush1.bf16.msra.mxu0 %v1106
    %1430 = vmatprep.subr.bf16.mxu0 %v1111
    %1431 = vmatpush1.bf16.msra.mxu0 %v1110
    %1432 = vmatprep.subr.bf16.mxu0 %v1115
    %1433 = vmatpush1.bf16.msra.mxu0 %v1114
    %1434 = vmatprep.subr.bf16.mxu0 %v1119
    %1435 = vmatpush1.bf16.msra.mxu0 %v1118
    %1436 = vmatprep.subr.bf16.mxu0 %v1123
    %1437 = vmatpush1.bf16.msra.mxu0 %v1122
    %1438 = vmatprep.subr.bf16.mxu0 %v1127
    %1439 = vmatpush1.bf16.msra.mxu0 %v1126
    %1440 = vmatprep.subr.bf16.mxu0 %v1131
    %1441 = vmatpush1.bf16.msra.mxu0 %v1130
    %1442 = vmatprep.subr.bf16.mxu0 %v1135
    %1443 = vmatpush1.bf16.msra.mxu0 %v1134
    %1444 = vmatprep.mubr.bf16.mxu0 %v155
    %1445 = vmatmul.mubr.bf16.gmra.mrb[0].mxu0 %v154
    %v1446 = vpop.f32.mrb[0].mxu0
    %v1447 = vadd.f32 %v1406, %v1446
    %v1448 = vpop.f32.mrb[0].mxu0
    %v1449 = vadd.f32 %v1408, %v1448
    %v1450 = vpop.f32.mrb[0].mxu0
    %v1451 = vpop.f32.mrb[0].mxu0
    %1452 = vdwg.mxu0
    %1453 = vmatprep.subr.bf16.mxu0 %v949
    %1454 = vmatpush1.bf16.msra.mxu0 %v948
    %1455 = vmatprep.subr.bf16.mxu0 %v953
    %1456 = vmatpush1.bf16.msra.mxu0 %v952
    %1457 = vmatprep.subr.bf16.mxu0 %v957
    %1458 = vmatpush1.bf16.msra.mxu0 %v956
    %1459 = vmatprep.subr.bf16.mxu0 %v961
    %1460 = vmatpush1.bf16.msra.mxu0 %v960
    %1461 = vmatprep.subr.bf16.mxu0 %v965
    %1462 = vmatpush1.bf16.msra.mxu0 %v964
    %1463 = vmatprep.subr.bf16.mxu0 %v969
    %1464 = vmatpush1.bf16.msra.mxu0 %v968
    %1465 = vmatprep.subr.bf16.mxu0 %v973
    %1466 = vmatpush1.bf16.msra.mxu0 %v972
    %1467 = vmatprep.subr.bf16.mxu0 %v977
    %1468 = vmatpush1.bf16.msra.mxu0 %v976
    %1469 = vmatprep.subr.bf16.mxu0 %v981
    %1470 = vmatpush1.bf16.msra.mxu0 %v980
    %1471 = vmatprep.subr.bf16.mxu0 %v985
    %1472 = vmatpush1.bf16.msra.mxu0 %v984
    %1473 = vmatprep.subr.bf16.mxu0 %v989
    %1474 = vmatpush1.bf16.msra.mxu0 %v988
    %1475 = vmatprep.subr.bf16.mxu0 %v993
    %1476 = vmatpush1.bf16.msra.mxu0 %v992
    %1477 = vmatprep.subr.bf16.mxu0 %v997
    %1478 = vmatpush1.bf16.msra.mxu0 %v996
    %1479 = vmatprep.subr.bf16.mxu0 %v1001
    %1480 = vmatpush1.bf16.msra.mxu0 %v1000
    %1481 = vmatprep.subr.bf16.mxu0 %v1005
    %1482 = vmatpush1.bf16.msra.mxu0 %v1004
    %1483 = vmatprep.subr.bf16.mxu0 %v1009
    %1484 = vmatpush1.bf16.msra.mxu0 %v1008
    %1485 = vmatprep.mubr.bf16.mxu0 %v151
    %1486 = vmatmul.mubr.bf16.gmra.mrb[0].mxu0 %v150
    %v1487 = vpop.f32.mrb[0].mxu0
    %v1488 = vadd.f32 %v361, %v1487
    %v1489 = vpop.f32.mrb[0].mxu0
    %v1490 = vadd.f32 %v365, %v1489
    %v1491 = vpop.f32.mrb[0].mxu0
    %v1492 = vpop.f32.mrb[0].mxu0
    %1493 = vdwg.mxu0
    %1494 = vmatprep.subr.bf16.mxu0 %v1013
    %1495 = vmatpush1.bf16.msra.mxu0 %v1012
    %1496 = vmatprep.subr.bf16.mxu0 %v1017
    %1497 = vmatpush1.bf16.msra.mxu0 %v1016
    %1498 = vmatprep.subr.bf16.mxu0 %v1021
    %1499 = vmatpush1.bf16.msra.mxu0 %v1020
    %1500 = vmatprep.subr.bf16.mxu0 %v1025
    %1501 = vmatpush1.bf16.msra.mxu0 %v1024
    %1502 = vmatprep.subr.bf16.mxu0 %v1029
    %1503 = vmatpush1.bf16.msra.mxu0 %v1028
    %1504 = vmatprep.subr.bf16.mxu0 %v1033
    %1505 = vmatpush1.bf16.msra.mxu0 %v1032
    %1506 = vmatprep.subr.bf16.mxu0 %v1037
    %1507 = vmatpush1.bf16.msra.mxu0 %v1036
    %1508 = vmatprep.subr.bf16.mxu0 %v1041
    %1509 = vmatpush1.bf16.msra.mxu0 %v1040
    %1510 = vmatprep.subr.bf16.mxu0 %v1045
    %1511 = vmatpush1.bf16.msra.mxu0 %v1044
    %1512 = vmatprep.subr.bf16.mxu0 %v1049
    %1513 = vmatpush1.bf16.msra.mxu0 %v1048
    %1514 = vmatprep.subr.bf16.mxu0 %v1053
    %1515 = vmatpush1.bf16.msra.mxu0 %v1052
    %1516 = vmatprep.subr.bf16.mxu0 %v1057
    %1517 = vmatpush1.bf16.msra.mxu0 %v1056
    %1518 = vmatprep.subr.bf16.mxu0 %v1061
    %1519 = vmatpush1.bf16.msra.mxu0 %v1060
    %1520 = vmatprep.subr.bf16.mxu0 %v1065
    %1521 = vmatpush1.bf16.msra.mxu0 %v1064
    %1522 = vmatprep.subr.bf16.mxu0 %v1069
    %1523 = vmatpush1.bf16.msra.mxu0 %v1068
    %1524 = vmatprep.subr.bf16.mxu0 %v1073
    %1525 = vmatpush1.bf16.msra.mxu0 %v1072
    %1526 = vmatprep.mubr.bf16.mxu0 %v153
    %1527 = vmatmul.mubr.bf16.gmra.mrb[0].mxu0 %v152
    %v1528 = vpop.f32.mrb[0].mxu0
    %v1529 = vadd.f32 %v1488, %v1528
    %v1530 = vpop.f32.mrb[0].mxu0
    %v1531 = vadd.f32 %v1490, %v1530
    %v1532 = vpop.f32.mrb[0].mxu0
    %v1533 = vpop.f32.mrb[0].mxu0
    %1534 = vdwg.mxu0
    %1535 = vmatprep.subr.bf16.mxu0 %v1077
    %1536 = vmatpush1.bf16.msra.mxu0 %v1076
    %1537 = vmatprep.subr.bf16.mxu0 %v1081
    %1538 = vmatpush1.bf16.msra.mxu0 %v1080
    %1539 = vmatprep.subr.bf16.mxu0 %v1085
    %1540 = vmatpush1.bf16.msra.mxu0 %v1084
    %1541 = vmatprep.subr.bf16.mxu0 %v1089
    %1542 = vmatpush1.bf16.msra.mxu0 %v1088
    %1543 = vmatprep.subr.bf16.mxu0 %v1093
    %1544 = vmatpush1.bf16.msra.mxu0 %v1092
    %1545 = vmatprep.subr.bf16.mxu0 %v1097
    %1546 = vmatpush1.bf16.msra.mxu0 %v1096
    %1547 = vmatprep.subr.bf16.mxu0 %v1101
    %1548 = vmatpush1.bf16.msra.mxu0 %v1100
    %1549 = vmatprep.subr.bf16.mxu0 %v1105
    %1550 = vmatpush1.bf16.msra.mxu0 %v1104
    %1551 = vmatprep.subr.bf16.mxu0 %v1109
    %1552 = vmatpush1.bf16.msra.mxu0 %v1108
    %1553 = vmatprep.subr.bf16.mxu0 %v1113
    %1554 = vmatpush1.bf16.msra.mxu0 %v1112
    %1555 = vmatprep.subr.bf16.mxu0 %v1117
    %1556 = vmatpush1.bf16.msra.mxu0 %v1116
    %1557 = vmatprep.subr.bf16.mxu0 %v1121
    %1558 = vmatpush1.bf16.msra.mxu0 %v1120
    %1559 = vmatprep.subr.bf16.mxu0 %v1125
    %1560 = vmatpush1.bf16.msra.mxu0 %v1124
    %1561 = vmatprep.subr.bf16.mxu0 %v1129
    %1562 = vmatpush1.bf16.msra.mxu0 %v1128
    %1563 = vmatprep.subr.bf16.mxu0 %v1133
    %1564 = vmatpush1.bf16.msra.mxu0 %v1132
    %1565 = vmatprep.subr.bf16.mxu0 %v1137
    %1566 = vmatpush1.bf16.msra.mxu0 %v1136
    %1567 = vmatprep.mubr.bf16.mxu0 %v155
    %1568 = vmatmul.mubr.bf16.gmra.mrb[0].mxu0 %v154
    %v1569 = vpop.f32.mrb[0].mxu0
    %v1570 = vadd.f32 %v1529, %v1569
    %v1571 = vpop.f32.mrb[0].mxu0
    %v1572 = vadd.f32 %v1531, %v1571
    %v1573 = vpop.f32.mrb[0].mxu0
    %v1574 = vpop.f32.mrb[0].mxu0
    %1575 = vdwg.mxu0
    %vm1576 = vcmp.ge.f32.partialorder %v1447, 0.0
    %vm1577 = vcmp.ge.f32.partialorder %v1449, 0.0
    %vm1578 = vcmp.ge.f32.partialorder %v1570, 0.0
    %vm1579 = vcmp.ge.f32.partialorder %v1572, 0.0
    %v1580 = vmul.f32 %v1447, 0.2
    %v1581 = vmul.f32 %v1449, 0.2
    %v1582 = vmul.f32 %v1570, 0.2
    %v1583 = vmul.f32 %v1572, 0.2
    %v1584 = vsel %vm1576, %v1447, %v1580
    %v1585 = vsel %vm1577, %v1449, %v1581
    %v1586 = vsel %vm1578, %v1570, %v1582
    %v1587 = vsel %vm1579, %v1572, %v1583
    %v1588 = vpack.c.bf16 %v1584, %v1584
    %v1589 = vpack.c.bf16 %v1585, %v1585
    %v1590 = vpack.c.bf16 %v1586, %v1586
    %v1591 = vpack.c.bf16 %v1587, %v1587
    %v1592 = vld [vmem:[#allocation5] sm:$0xff]
    %v1593 = vld [vmem:[#allocation5 + $0x8] sm:$0xff]
    %v1594 = vld [vmem:[#allocation5 + $0x10] sm:$0xff]
    %v1595 = vld [vmem:[#allocation5 + $0x18] sm:$0xff]
    %v1596 = vld [vmem:[#allocation5 + $0x20] sm:$0xff]
    %v1597 = vld [vmem:[#allocation5 + $0x28] sm:$0xff]
    %v1598 = vld [vmem:[#allocation5 + $0x30] sm:$0xff]
    %v1599 = vld [vmem:[#allocation5 + $0x38] sm:$0xff]
    %v1600 = vld [vmem:[#allocation5 + $0x40] sm:$0xff]
    %v1601 = vld [vmem:[#allocation5 + $0x48] sm:$0xff]
    %v1602 = vld [vmem:[#allocation5 + $0x50] sm:$0xff]
    %v1603 = vld [vmem:[#allocation5 + $0x58] sm:$0xff]
    %v1604 = vld [vmem:[#allocation5 + $0x60] sm:$0xff]
    %v1605 = vld [vmem:[#allocation5 + $0x68] sm:$0xff]
    %v1606 = vld [vmem:[#allocation5 + $0x70] sm:$0xff]
    %v1607 = vld [vmem:[#allocation5 + $0x78] sm:$0xff]
    %v1608 = vld [vmem:[#allocation5 + $0x80] sm:$0xff]
    %v1609 = vld [vmem:[#allocation5 + $0x88] sm:$0xff]
    %v1610 = vld [vmem:[#allocation5 + $0x90] sm:$0xff]
    %v1611 = vld [vmem:[#allocation5 + $0x98] sm:$0xff]
    %v1612 = vld [vmem:[#allocation5 + $0xa0] sm:$0xff]
    %v1613 = vld [vmem:[#allocation5 + $0xa8] sm:$0xff]
    %v1614 = vld [vmem:[#allocation5 + $0xb0] sm:$0xff]
    %v1615 = vld [vmem:[#allocation5 + $0xb8] sm:$0xff]
    %v1616 = vld [vmem:[#allocation5 + $0xc0] sm:$0xff]
    %v1617 = vld [vmem:[#allocation5 + $0xc8] sm:$0xff]
    %v1618 = vld [vmem:[#allocation5 + $0xd0] sm:$0xff]
    %v1619 = vld [vmem:[#allocation5 + $0xd8] sm:$0xff]
    %v1620 = vld [vmem:[#allocation5 + $0xe0] sm:$0xff]
    %v1621 = vld [vmem:[#allocation5 + $0xe8] sm:$0xff]
    %v1622 = vld [vmem:[#allocation5 + $0xf0] sm:$0xff]
    %v1623 = vld [vmem:[#allocation5 + $0xf8] sm:$0xff]
    %v1624 = vld [vmem:[#allocation5 + $0x100] sm:$0xff]
    %v1625 = vld [vmem:[#allocation5 + $0x108] sm:$0xff]
    %v1626 = vld [vmem:[#allocation5 + $0x110] sm:$0xff]
    %v1627 = vld [vmem:[#allocation5 + $0x118] sm:$0xff]
    %v1628 = vld [vmem:[#allocation5 + $0x120] sm:$0xff]
    %v1629 = vld [vmem:[#allocation5 + $0x128] sm:$0xff]
    %v1630 = vld [vmem:[#allocation5 + $0x130] sm:$0xff]
    %v1631 = vld [vmem:[#allocation5 + $0x138] sm:$0xff]
    %v1632 = vld [vmem:[#allocation5 + $0x140] sm:$0xff]
    %v1633 = vld [vmem:[#allocation5 + $0x148] sm:$0xff]
    %v1634 = vld [vmem:[#allocation5 + $0x150] sm:$0xff]
    %v1635 = vld [vmem:[#allocation5 + $0x158] sm:$0xff]
    %v1636 = vld [vmem:[#allocation5 + $0x160] sm:$0xff]
    %v1637 = vld [vmem:[#allocation5 + $0x168] sm:$0xff]
    %v1638 = vld [vmem:[#allocation5 + $0x170] sm:$0xff]
    %v1639 = vld [vmem:[#allocation5 + $0x178] sm:$0xff]
    %v1640 = vld [vmem:[#allocation5 + $0x180] sm:$0xff]
    %v1641 = vld [vmem:[#allocation5 + $0x188] sm:$0xff]
    %v1642 = vld [vmem:[#allocation5 + $0x190] sm:$0xff]
    %v1643 = vld [vmem:[#allocation5 + $0x198] sm:$0xff]
    %v1644 = vld [vmem:[#allocation5 + $0x1a0] sm:$0xff]
    %v1645 = vld [vmem:[#allocation5 + $0x1a8] sm:$0xff]
    %v1646 = vld [vmem:[#allocation5 + $0x1b0] sm:$0xff]
    %v1647 = vld [vmem:[#allocation5 + $0x1b8] sm:$0xff]
    %v1648 = vld [vmem:[#allocation5 + $0x1c0] sm:$0xff]
    %v1649 = vld [vmem:[#allocation5 + $0x1c8] sm:$0xff]
    %v1650 = vld [vmem:[#allocation5 + $0x1d0] sm:$0xff]
    %v1651 = vld [vmem:[#allocation5 + $0x1d8] sm:$0xff]
    %v1652 = vld [vmem:[#allocation5 + $0x1e0] sm:$0xff]
    %v1653 = vld [vmem:[#allocation5 + $0x1e8] sm:$0xff]
    %v1654 = vld [vmem:[#allocation5 + $0x1f0] sm:$0xff]
    %v1655 = vld [vmem:[#allocation5 + $0x1f8] sm:$0xff]
    %v1656 = vld [vmem:[%s5] sm:$0x3]
    %v1658 = vlaneseq
    %v1659 = vshrl.u32 %v1658, 7
    %v1660 = vsub.s32 0, %v1659
    %v1661 = vrot.slane %v1656, %v1660
    %v1662 = vlaneseq
    %v1663 = vshrl.u32 %v1662, 7
    %v1664 = vsub.s32 1, %v1663
    %v1665 = vrot.slane %v1656, %v1664
    %v1732 = vunpack.c.l.b16 %v1592
    %v1733 = vunpack.c.h.b16 %v1592
    %v1734 = vunpack.c.l.b16 %v1593
    %v1735 = vunpack.c.h.b16 %v1593
    %v1736 = vunpack.c.l.b16 %v1594
    %v1737 = vunpack.c.h.b16 %v1594
    %v1738 = vunpack.c.l.b16 %v1595
    %v1739 = vunpack.c.h.b16 %v1595
    %v1740 = vunpack.c.l.b16 %v1596
    %v1741 = vunpack.c.h.b16 %v1596
    %v1742 = vunpack.c.l.b16 %v1597
    %v1743 = vunpack.c.h.b16 %v1597
    %v1744 = vunpack.c.l.b16 %v1598
    %v1745 = vunpack.c.h.b16 %v1598
    %v1746 = vunpack.c.l.b16 %v1599
    %v1747 = vunpack.c.h.b16 %v1599
    %v1748 = vunpack.c.l.b16 %v1600
    %v1749 = vunpack.c.h.b16 %v1600
    %v1750 = vunpack.c.l.b16 %v1601
    %v1751 = vunpack.c.h.b16 %v1601
    %v1752 = vunpack.c.l.b16 %v1602
    %v1753 = vunpack.c.h.b16 %v1602
    %v1754 = vunpack.c.l.b16 %v1603
    %v1755 = vunpack.c.h.b16 %v1603
    %v1756 = vunpack.c.l.b16 %v1604
    %v1757 = vunpack.c.h.b16 %v1604
    %v1758 = vunpack.c.l.b16 %v1605
    %v1759 = vunpack.c.h.b16 %v1605
    %v1760 = vunpack.c.l.b16 %v1606
    %v1761 = vunpack.c.h.b16 %v1606
    %v1762 = vunpack.c.l.b16 %v1607
    %v1763 = vunpack.c.h.b16 %v1607
    %v1764 = vunpack.c.l.b16 %v1608
    %v1765 = vunpack.c.h.b16 %v1608
    %v1766 = vunpack.c.l.b16 %v1609
    %v1767 = vunpack.c.h.b16 %v1609
    %v1768 = vunpack.c.l.b16 %v1610
    %v1769 = vunpack.c.h.b16 %v1610
    %v1770 = vunpack.c.l.b16 %v1611
    %v1771 = vunpack.c.h.b16 %v1611
    %v1772 = vunpack.c.l.b16 %v1612
    %v1773 = vunpack.c.h.b16 %v1612
    %v1774 = vunpack.c.l.b16 %v1613
    %v1775 = vunpack.c.h.b16 %v1613
    %v1776 = vunpack.c.l.b16 %v1614
    %v1777 = vunpack.c.h.b16 %v1614
    %v1778 = vunpack.c.l.b16 %v1615
    %v1779 = vunpack.c.h.b16 %v1615
    %v1780 = vunpack.c.l.b16 %v1616
    %v1781 = vunpack.c.h.b16 %v1616
    %v1782 = vunpack.c.l.b16 %v1617
    %v1783 = vunpack.c.h.b16 %v1617
    %v1784 = vunpack.c.l.b16 %v1618
    %v1785 = vunpack.c.h.b16 %v1618
    %v1786 = vunpack.c.l.b16 %v1619
    %v1787 = vunpack.c.h.b16 %v1619
    %v1788 = vunpack.c.l.b16 %v1620
    %v1789 = vunpack.c.h.b16 %v1620
    %v1790 = vunpack.c.l.b16 %v1621
    %v1791 = vunpack.c.h.b16 %v1621
    %v1792 = vunpack.c.l.b16 %v1622
    %v1793 = vunpack.c.h.b16 %v1622
    %v1794 = vunpack.c.l.b16 %v1623
    %v1795 = vunpack.c.h.b16 %v1623
    %v1796 = vunpack.c.l.b16 %v1624
    %v1797 = vunpack.c.h.b16 %v1624
    %v1798 = vunpack.c.l.b16 %v1625
    %v1799 = vunpack.c.h.b16 %v1625
    %v1800 = vunpack.c.l.b16 %v1626
    %v1801 = vunpack.c.h.b16 %v1626
    %v1802 = vunpack.c.l.b16 %v1627
    %v1803 = vunpack.c.h.b16 %v1627
    %v1804 = vunpack.c.l.b16 %v1628
    %v1805 = vunpack.c.h.b16 %v1628
    %v1806 = vunpack.c.l.b16 %v1629
    %v1807 = vunpack.c.h.b16 %v1629
    %v1808 = vunpack.c.l.b16 %v1630
    %v1809 = vunpack.c.h.b16 %v1630
    %v1810 = vunpack.c.l.b16 %v1631
    %v1811 = vunpack.c.h.b16 %v1631
    %v1812 = vunpack.c.l.b16 %v1632
    %v1813 = vunpack.c.h.b16 %v1632
    %v1814 = vunpack.c.l.b16 %v1633
    %v1815 = vunpack.c.h.b16 %v1633
    %v1816 = vunpack.c.l.b16 %v1634
    %v1817 = vunpack.c.h.b16 %v1634
    %v1818 = vunpack.c.l.b16 %v1635
    %v1819 = vunpack.c.h.b16 %v1635
    %v1820 = vunpack.c.l.b16 %v1636
    %v1821 = vunpack.c.h.b16 %v1636
    %v1822 = vunpack.c.l.b16 %v1637
    %v1823 = vunpack.c.h.b16 %v1637
    %v1824 = vunpack.c.l.b16 %v1638
    %v1825 = vunpack.c.h.b16 %v1638
    %v1826 = vunpack.c.l.b16 %v1639
    %v1827 = vunpack.c.h.b16 %v1639
    %v1828 = vunpack.c.l.b16 %v1640
    %v1829 = vunpack.c.h.b16 %v1640
    %v1830 = vunpack.c.l.b16 %v1641
    %v1831 = vunpack.c.h.b16 %v1641
    %v1832 = vunpack.c.l.b16 %v1642
    %v1833 = vunpack.c.h.b16 %v1642
    %v1834 = vunpack.c.l.b16 %v1643
    %v1835 = vunpack.c.h.b16 %v1643
    %v1836 = vunpack.c.l.b16 %v1644
    %v1837 = vunpack.c.h.b16 %v1644
    %v1838 = vunpack.c.l.b16 %v1645
    %v1839 = vunpack.c.h.b16 %v1645
    %v1840 = vunpack.c.l.b16 %v1646
    %v1841 = vunpack.c.h.b16 %v1646
    %v1842 = vunpack.c.l.b16 %v1647
    %v1843 = vunpack.c.h.b16 %v1647
    %v1844 = vunpack.c.l.b16 %v1648
    %v1845 = vunpack.c.h.b16 %v1648
    %v1846 = vunpack.c.l.b16 %v1649
    %v1847 = vunpack.c.h.b16 %v1649
    %v1848 = vunpack.c.l.b16 %v1650
    %v1849 = vunpack.c.h.b16 %v1650
    %v1850 = vunpack.c.l.b16 %v1651
    %v1851 = vunpack.c.h.b16 %v1651
    %v1852 = vunpack.c.l.b16 %v1652
    %v1853 = vunpack.c.h.b16 %v1652
    %v1854 = vunpack.c.l.b16 %v1653
    %v1855 = vunpack.c.h.b16 %v1653
    %v1856 = vunpack.c.l.b16 %v1654
    %v1857 = vunpack.c.h.b16 %v1654
    %v1858 = vunpack.c.l.b16 %v1655
    %v1859 = vunpack.c.h.b16 %v1655
    %v1860 = vpack.c.b16 %v1734, %v1732
    %v1861 = vpack.c.b16 %v1735, %v1733
    %v1862 = vpack.c.b16 %v1738, %v1736
    %v1863 = vpack.c.b16 %v1739, %v1737
    %v1864 = vpack.c.b16 %v1742, %v1740
    %v1865 = vpack.c.b16 %v1743, %v1741
    %v1866 = vpack.c.b16 %v1746, %v1744
    %v1867 = vpack.c.b16 %v1747, %v1745
    %v1868 = vpack.c.b16 %v1750, %v1748
    %v1869 = vpack.c.b16 %v1751, %v1749
    %v1870 = vpack.c.b16 %v1754, %v1752
    %v1871 = vpack.c.b16 %v1755, %v1753
    %v1872 = vpack.c.b16 %v1758, %v1756
    %v1873 = vpack.c.b16 %v1759, %v1757
    %v1874 = vpack.c.b16 %v1762, %v1760
    %v1875 = vpack.c.b16 %v1763, %v1761
    %v1876 = vpack.c.b16 %v1766, %v1764
    %v1877 = vpack.c.b16 %v1767, %v1765
    %v1878 = vpack.c.b16 %v1770, %v1768
    %v1879 = vpack.c.b16 %v1771, %v1769
    %v1880 = vpack.c.b16 %v1774, %v1772
    %v1881 = vpack.c.b16 %v1775, %v1773
    %v1882 = vpack.c.b16 %v1778, %v1776
    %v1883 = vpack.c.b16 %v1779, %v1777
    %v1884 = vpack.c.b16 %v1782, %v1780
    %v1885 = vpack.c.b16 %v1783, %v1781
    %v1886 = vpack.c.b16 %v1786, %v1784
    %v1887 = vpack.c.b16 %v1787, %v1785
    %v1888 = vpack.c.b16 %v1790, %v1788
    %v1889 = vpack.c.b16 %v1791, %v1789
    %v1890 = vpack.c.b16 %v1794, %v1792
    %v1891 = vpack.c.b16 %v1795, %v1793
    %v1892 = vpack.c.b16 %v1798, %v1796
    %v1893 = vpack.c.b16 %v1799, %v1797
    %v1894 = vpack.c.b16 %v1802, %v1800
    %v1895 = vpack.c.b16 %v1803, %v1801
    %v1896 = vpack.c.b16 %v1806, %v1804
    %v1897 = vpack.c.b16 %v1807, %v1805
    %v1898 = vpack.c.b16 %v1810, %v1808
    %v1899 = vpack.c.b16 %v1811, %v1809
    %v1900 = vpack.c.b16 %v1814, %v1812
    %v1901 = vpack.c.b16 %v1815, %v1813
    %v1902 = vpack.c.b16 %v1818, %v1816
    %v1903 = vpack.c.b16 %v1819, %v1817
    %v1904 = vpack.c.b16 %v1822, %v1820
    %v1905 = vpack.c.b16 %v1823, %v1821
    %v1906 = vpack.c.b16 %v1826, %v1824
    %v1907 = vpack.c.b16 %v1827, %v1825
    %v1908 = vpack.c.b16 %v1830, %v1828
    %v1909 = vpack.c.b16 %v1831, %v1829
    %v1910 = vpack.c.b16 %v1834, %v1832
    %v1911 = vpack.c.b16 %v1835, %v1833
    %v1912 = vpack.c.b16 %v1838, %v1836
    %v1913 = vpack.c.b16 %v1839, %v1837
    %v1914 = vpack.c.b16 %v1842, %v1840
    %v1915 = vpack.c.b16 %v1843, %v1841
    %v1916 = vpack.c.b16 %v1846, %v1844
    %v1917 = vpack.c.b16 %v1847, %v1845
    %v1918 = vpack.c.b16 %v1850, %v1848
    %v1919 = vpack.c.b16 %v1851, %v1849
    %v1920 = vpack.c.b16 %v1854, %v1852
    %v1921 = vpack.c.b16 %v1855, %v1853
    %v1922 = vpack.c.b16 %v1858, %v1856
    %v1923 = vpack.c.b16 %v1859, %v1857
    %1988 = vmatprep.subr.bf16.mxu0 %v1861
    %1989 = vmatpush1.bf16.msra.mxu0 %v1860
    %1990 = vmatprep.subr.bf16.mxu0 %v1863
    %1991 = vmatpush1.bf16.msra.mxu0 %v1862
    %1992 = vmatprep.subr.bf16.mxu0 %v1865
    %1993 = vmatpush1.bf16.msra.mxu0 %v1864
    %1994 = vmatprep.subr.bf16.mxu0 %v1867
    %1995 = vmatpush1.bf16.msra.mxu0 %v1866
    %1996 = vmatprep.subr.bf16.mxu0 %v1869
    %1997 = vmatpush1.bf16.msra.mxu0 %v1868
    %1998 = vmatprep.subr.bf16.mxu0 %v1871
    %1999 = vmatpush1.bf16.msra.mxu0 %v1870
    %2000 = vmatprep.subr.bf16.mxu0 %v1873
    %2001 = vmatpush1.bf16.msra.mxu0 %v1872
    %2002 = vmatprep.subr.bf16.mxu0 %v1875
    %2003 = vmatpush1.bf16.msra.mxu0 %v1874
    %2004 = vmatprep.subr.bf16.mxu0 %v1877
    %2005 = vmatpush1.bf16.msra.mxu0 %v1876
    %2006 = vmatprep.subr.bf16.mxu0 %v1879
    %2007 = vmatpush1.bf16.msra.mxu0 %v1878
    %2008 = vmatprep.subr.bf16.mxu0 %v1881
    %2009 = vmatpush1.bf16.msra.mxu0 %v1880
    %2010 = vmatprep.subr.bf16.mxu0 %v1883
    %2011 = vmatpush1.bf16.msra.mxu0 %v1882
    %2012 = vmatprep.subr.bf16.mxu0 %v1885
    %2013 = vmatpush1.bf16.msra.mxu0 %v1884
    %2014 = vmatprep.subr.bf16.mxu0 %v1887
    %2015 = vmatpush1.bf16.msra.mxu0 %v1886
    %2016 = vmatprep.subr.bf16.mxu0 %v1889
    %2017 = vmatpush1.bf16.msra.mxu0 %v1888
    %2018 = vmatprep.subr.bf16.mxu0 %v1891
    %2019 = vmatpush1.bf16.msra.mxu0 %v1890
    %2020 = vmatprep.mubr.bf16.mxu0 %v1589
    %2021 = vmatmul.mubr.bf16.gmra.mrb[0].mxu0 %v1588
    %v2022 = vpop.f32.mrb[0].mxu0
    %v2023 = vadd.f32 %v1661, %v2022
    %v2024 = vpop.f32.mrb[0].mxu0
    %v2025 = vadd.f32 %v1665, %v2024
    %v2026 = vpop.f32.mrb[0].mxu0
    %v2027 = vpop.f32.mrb[0].mxu0
    %2028 = vdwg.mxu0
    %2029 = vmatprep.subr.bf16.mxu0 %v1893
    %2030 = vmatpush1.bf16.msra.mxu0 %v1892
    %2031 = vmatprep.subr.bf16.mxu0 %v1895
    %2032 = vmatpush1.bf16.msra.mxu0 %v1894
    %2033 = vmatprep.subr.bf16.mxu0 %v1897
    %2034 = vmatpush1.bf16.msra.mxu0 %v1896
    %2035 = vmatprep.subr.bf16.mxu0 %v1899
    %2036 = vmatpush1.bf16.msra.mxu0 %v1898
    %2037 = vmatprep.subr.bf16.mxu0 %v1901
    %2038 = vmatpush1.bf16.msra.mxu0 %v1900
    %2039 = vmatprep.subr.bf16.mxu0 %v1903
    %2040 = vmatpush1.bf16.msra.mxu0 %v1902
    %2041 = vmatprep.subr.bf16.mxu0 %v1905
    %2042 = vmatpush1.bf16.msra.mxu0 %v1904
    %2043 = vmatprep.subr.bf16.mxu0 %v1907
    %2044 = vmatpush1.bf16.msra.mxu0 %v1906
    %2045 = vmatprep.subr.bf16.mxu0 %v1909
    %2046 = vmatpush1.bf16.msra.mxu0 %v1908
    %2047 = vmatprep.subr.bf16.mxu0 %v1911
    %2048 = vmatpush1.bf16.msra.mxu0 %v1910
    %2049 = vmatprep.subr.bf16.mxu0 %v1913
    %2050 = vmatpush1.bf16.msra.mxu0 %v1912
    %2051 = vmatprep.subr.bf16.mxu0 %v1915
    %2052 = vmatpush1.bf16.msra.mxu0 %v1914
    %2053 = vmatprep.subr.bf16.mxu0 %v1917
    %2054 = vmatpush1.bf16.msra.mxu0 %v1916
    %2055 = vmatprep.subr.bf16.mxu0 %v1919
    %2056 = vmatpush1.bf16.msra.mxu0 %v1918
    %2057 = vmatprep.subr.bf16.mxu0 %v1921
    %2058 = vmatpush1.bf16.msra.mxu0 %v1920
    %2059 = vmatprep.subr.bf16.mxu0 %v1923
    %2060 = vmatpush1.bf16.msra.mxu0 %v1922
    %2061 = vmatprep.mubr.bf16.mxu0 %v1591
    %2062 = vmatmul.mubr.bf16.gmra.mrb[0].mxu0 %v1590
    %v2063 = vpop.f32.mrb[0].mxu0
    %v2064 = vadd.f32 %v2023, %v2063
    %v2065 = vpop.f32.mrb[0].mxu0
    %v2066 = vadd.f32 %v2025, %v2065
    %v2067 = vpop.f32.mrb[0].mxu0
    %v2068 = vpop.f32.mrb[0].mxu0
    %2069 = vdwg.mxu0
    %vm2070 = vcmp.ge.f32.partialorder %v2064, 0.0
    %vm2071 = vcmp.ge.f32.partialorder %v2066, 0.0
    %v2072 = vmul.f32 %v2064, 0.2
    %v2073 = vmul.f32 %v2066, 0.2
    %v2074 = vsel %vm2070, %v2064, %v2072
    %v2075 = vsel %vm2071, %v2066, %v2073
    %v2076 = vpack.c.bf16 %v2074, %v2074
    %v2077 = vpack.c.bf16 %v2075, %v2075
    %v2078 = vld [vmem:[%s6] sm:$0xf]
    %v2079 = vld [vmem:[%s6 + $0x4] sm:$0xf]
    %v2080 = vld [vmem:[%s6 + $0x8] sm:$0xf]
    %v2081 = vld [vmem:[%s6 + $0xc] sm:$0xf]
    %v2082 = vld [vmem:[%s6 + $0x10] sm:$0xf]
    %v2083 = vld [vmem:[%s6 + $0x14] sm:$0xf]
    %v2084 = vld [vmem:[%s6 + $0x18] sm:$0xf]
    %v2085 = vld [vmem:[%s6 + $0x1c] sm:$0xf]
    %v2086 = vld [vmem:[%s6 + $0x20] sm:$0xf]
    %v2087 = vld [vmem:[%s6 + $0x24] sm:$0xf]
    %v2088 = vld [vmem:[%s6 + $0x28] sm:$0xf]
    %v2089 = vld [vmem:[%s6 + $0x2c] sm:$0xf]
    %v2090 = vld [vmem:[%s6 + $0x30] sm:$0xf]
    %v2091 = vld [vmem:[%s6 + $0x34] sm:$0xf]
    %v2092 = vld [vmem:[%s6 + $0x38] sm:$0xf]
    %v2093 = vld [vmem:[%s6 + $0x3c] sm:$0xf]
    %v2094 = vld [vmem:[%s6 + $0x40] sm:$0xf]
    %v2095 = vld [vmem:[%s6 + $0x44] sm:$0xf]
    %v2096 = vld [vmem:[%s6 + $0x48] sm:$0xf]
    %v2097 = vld [vmem:[%s6 + $0x4c] sm:$0xf]
    %v2098 = vld [vmem:[%s6 + $0x50] sm:$0xf]
    %v2099 = vld [vmem:[%s6 + $0x54] sm:$0xf]
    %v2100 = vld [vmem:[%s6 + $0x58] sm:$0xf]
    %v2101 = vld [vmem:[%s6 + $0x5c] sm:$0xf]
    %v2102 = vld [vmem:[%s6 + $0x60] sm:$0xf]
    %v2103 = vld [vmem:[%s6 + $0x64] sm:$0xf]
    %v2104 = vld [vmem:[%s6 + $0x68] sm:$0xf]
    %v2105 = vld [vmem:[%s6 + $0x6c] sm:$0xf]
    %v2106 = vld [vmem:[%s6 + $0x70] sm:$0xf]
    %v2107 = vld [vmem:[%s6 + $0x74] sm:$0xf]
    %v2108 = vld [vmem:[%s6 + $0x78] sm:$0xf]
    %v2109 = vld [vmem:[%s6 + $0x7c] sm:$0xf]
    %v2110 = vld [vmem:[%s7] sm:$0x1]
    %v2112 = vlaneseq
    %v2113 = vshrl.u32 %v2112, 7
    %v2114 = vsub.s32 0, %v2113
    %v2115 = vrot.slane %v2110, %v2114
    %v2149 = vunpack.c.l.b16 %v2078
    %v2150 = vunpack.c.l.b16 %v2079
    %v2151 = vunpack.c.l.b16 %v2080
    %v2152 = vunpack.c.l.b16 %v2081
    %v2153 = vunpack.c.l.b16 %v2082
    %v2154 = vunpack.c.l.b16 %v2083
    %v2155 = vunpack.c.l.b16 %v2084
    %v2156 = vunpack.c.l.b16 %v2085
    %v2157 = vunpack.c.l.b16 %v2086
    %v2158 = vunpack.c.l.b16 %v2087
    %v2159 = vunpack.c.l.b16 %v2088
    %v2160 = vunpack.c.l.b16 %v2089
    %v2161 = vunpack.c.l.b16 %v2090
    %v2162 = vunpack.c.l.b16 %v2091
    %v2163 = vunpack.c.l.b16 %v2092
    %v2164 = vunpack.c.l.b16 %v2093
    %v2165 = vunpack.c.l.b16 %v2094
    %v2166 = vunpack.c.l.b16 %v2095
    %v2167 = vunpack.c.l.b16 %v2096
    %v2168 = vunpack.c.l.b16 %v2097
    %v2169 = vunpack.c.l.b16 %v2098
    %v2170 = vunpack.c.l.b16 %v2099
    %v2171 = vunpack.c.l.b16 %v2100
    %v2172 = vunpack.c.l.b16 %v2101
    %v2173 = vunpack.c.l.b16 %v2102
    %v2174 = vunpack.c.l.b16 %v2103
    %v2175 = vunpack.c.l.b16 %v2104
    %v2176 = vunpack.c.l.b16 %v2105
    %v2177 = vunpack.c.l.b16 %v2106
    %v2178 = vunpack.c.l.b16 %v2107
    %v2179 = vunpack.c.l.b16 %v2108
    %v2180 = vunpack.c.l.b16 %v2109
    %v2181 = vpack.c.b16 %v2150, %v2149
    %v2182 = vpack.c.b16 %v2152, %v2151
    %v2183 = vpack.c.b16 %v2154, %v2153
    %v2184 = vpack.c.b16 %v2156, %v2155
    %v2185 = vpack.c.b16 %v2158, %v2157
    %v2186 = vpack.c.b16 %v2160, %v2159
    %v2187 = vpack.c.b16 %v2162, %v2161
    %v2188 = vpack.c.b16 %v2164, %v2163
    %v2189 = vpack.c.b16 %v2166, %v2165
    %v2190 = vpack.c.b16 %v2168, %v2167
    %v2191 = vpack.c.b16 %v2170, %v2169
    %v2192 = vpack.c.b16 %v2172, %v2171
    %v2193 = vpack.c.b16 %v2174, %v2173
    %v2194 = vpack.c.b16 %v2176, %v2175
    %v2195 = vpack.c.b16 %v2178, %v2177
    %v2196 = vpack.c.b16 %v2180, %v2179
    %2213 = vmatprep.subr.bf16.mxu0 0
    %2214 = vmatpush1.bf16.msra.mxu0 %v2181
    %2215 = vmatprep.subr.bf16.mxu0 0
    %2216 = vmatpush1.bf16.msra.mxu0 %v2182
    %2217 = vmatprep.subr.bf16.mxu0 0
    %2218 = vmatpush1.bf16.msra.mxu0 %v2183
    %2219 = vmatprep.subr.bf16.mxu0 0
    %2220 = vmatpush1.bf16.msra.mxu0 %v2184
    %2221 = vmatprep.subr.bf16.mxu0 0
    %2222 = vmatpush1.bf16.msra.mxu0 %v2185
    %2223 = vmatprep.subr.bf16.mxu0 0
    %2224 = vmatpush1.bf16.msra.mxu0 %v2186
    %2225 = vmatprep.subr.bf16.mxu0 0
    %2226 = vmatpush1.bf16.msra.mxu0 %v2187
    %2227 = vmatprep.subr.bf16.mxu0 0
    %2228 = vmatpush1.bf16.msra.mxu0 %v2188
    %2229 = vmatprep.subr.bf16.mxu0 0
    %2230 = vmatpush1.bf16.msra.mxu0 %v2189
    %2231 = vmatprep.subr.bf16.mxu0 0
    %2232 = vmatpush1.bf16.msra.mxu0 %v2190
    %2233 = vmatprep.subr.bf16.mxu0 0
    %2234 = vmatpush1.bf16.msra.mxu0 %v2191
    %2235 = vmatprep.subr.bf16.mxu0 0
    %2236 = vmatpush1.bf16.msra.mxu0 %v2192
    %2237 = vmatprep.subr.bf16.mxu0 0
    %2238 = vmatpush1.bf16.msra.mxu0 %v2193
    %2239 = vmatprep.subr.bf16.mxu0 0
    %2240 = vmatpush1.bf16.msra.mxu0 %v2194
    %2241 = vmatprep.subr.bf16.mxu0 0
    %2242 = vmatpush1.bf16.msra.mxu0 %v2195
    %2243 = vmatprep.subr.bf16.mxu0 0
    %2244 = vmatpush1.bf16.msra.mxu0 %v2196
    %2245 = vmatprep.mubr.bf16.mxu0 %v2077
    %2246 = vmatmul.mubr.bf16.gmra.mrb[0].mxu0 %v2076
    %v2247 = vpop.f32.mrb[0].mxu0
    %v2248 = vadd.f32 %v2115, %v2247
    %v2249 = vpop.f32.mrb[0].mxu0
    %v2250 = vpop.f32.mrb[0].mxu0
    %v2251 = vpop.f32.mrb[0].mxu0
    %2252 = vdwg.mxu0
    %v2253 = vld [vmem:[%s8] sm:$0xf]
    %v2254 = vld [vmem:[%s8 + $0x4] sm:$0xf]
    %v2255 = vld [vmem:[%s8 + $0x8] sm:$0xf]
    %v2256 = vld [vmem:[%s8 + $0xc] sm:$0xf]
    %v2257 = vld [vmem:[%s8 + $0x10] sm:$0xf]
    %v2258 = vld [vmem:[%s8 + $0x14] sm:$0xf]
    %v2259 = vld [vmem:[%s8 + $0x18] sm:$0xf]
    %v2260 = vld [vmem:[%s8 + $0x1c] sm:$0xf]
    %v2261 = vld [vmem:[%s8 + $0x20] sm:$0xf]
    %v2262 = vld [vmem:[%s8 + $0x24] sm:$0xf]
    %v2263 = vld [vmem:[%s8 + $0x28] sm:$0xf]
    %v2264 = vld [vmem:[%s8 + $0x2c] sm:$0xf]
    %v2265 = vld [vmem:[%s8 + $0x30] sm:$0xf]
    %v2266 = vld [vmem:[%s8 + $0x34] sm:$0xf]
    %v2267 = vld [vmem:[%s8 + $0x38] sm:$0xf]
    %v2268 = vld [vmem:[%s8 + $0x3c] sm:$0xf]
    %v2269 = vld [vmem:[%s8 + $0x40] sm:$0xf]
    %v2270 = vld [vmem:[%s8 + $0x44] sm:$0xf]
    %v2271 = vld [vmem:[%s8 + $0x48] sm:$0xf]
    %v2272 = vld [vmem:[%s8 + $0x4c] sm:$0xf]
    %v2273 = vld [vmem:[%s8 + $0x50] sm:$0xf]
    %v2274 = vld [vmem:[%s8 + $0x54] sm:$0xf]
    %v2275 = vld [vmem:[%s8 + $0x58] sm:$0xf]
    %v2276 = vld [vmem:[%s8 + $0x5c] sm:$0xf]
    %v2277 = vld [vmem:[%s8 + $0x60] sm:$0xf]
    %v2278 = vld [vmem:[%s8 + $0x64] sm:$0xf]
    %v2279 = vld [vmem:[%s8 + $0x68] sm:$0xf]
    %v2280 = vld [vmem:[%s8 + $0x6c] sm:$0xf]
    %v2281 = vld [vmem:[%s8 + $0x70] sm:$0xf]
    %v2282 = vld [vmem:[%s8 + $0x74] sm:$0xf]
    %v2283 = vld [vmem:[%s8 + $0x78] sm:$0xf]
    %v2284 = vld [vmem:[%s8 + $0x7c] sm:$0xf]
    %v2285 = vld [vmem:[%s9] sm:$0x1]
    %v2287 = vlaneseq
    %v2288 = vshrl.u32 %v2287, 7
    %v2289 = vsub.s32 0, %v2288
    %v2290 = vrot.slane %v2285, %v2289
    %v2324 = vunpack.c.l.b16 %v2253
    %v2325 = vunpack.c.l.b16 %v2254
    %v2326 = vunpack.c.l.b16 %v2255
    %v2327 = vunpack.c.l.b16 %v2256
    %v2328 = vunpack.c.l.b16 %v2257
    %v2329 = vunpack.c.l.b16 %v2258
    %v2330 = vunpack.c.l.b16 %v2259
    %v2331 = vunpack.c.l.b16 %v2260
    %v2332 = vunpack.c.l.b16 %v2261
    %v2333 = vunpack.c.l.b16 %v2262
    %v2334 = vunpack.c.l.b16 %v2263
    %v2335 = vunpack.c.l.b16 %v2264
    %v2336 = vunpack.c.l.b16 %v2265
    %v2337 = vunpack.c.l.b16 %v2266
    %v2338 = vunpack.c.l.b16 %v2267
    %v2339 = vunpack.c.l.b16 %v2268
    %v2340 = vunpack.c.l.b16 %v2269
    %v2341 = vunpack.c.l.b16 %v2270
    %v2342 = vunpack.c.l.b16 %v2271
    %v2343 = vunpack.c.l.b16 %v2272
    %v2344 = vunpack.c.l.b16 %v2273
    %v2345 = vunpack.c.l.b16 %v2274
    %v2346 = vunpack.c.l.b16 %v2275
    %v2347 = vunpack.c.l.b16 %v2276
    %v2348 = vunpack.c.l.b16 %v2277
    %v2349 = vunpack.c.l.b16 %v2278
    %v2350 = vunpack.c.l.b16 %v2279
    %v2351 = vunpack.c.l.b16 %v2280
    %v2352 = vunpack.c.l.b16 %v2281
    %v2353 = vunpack.c.l.b16 %v2282
    %v2354 = vunpack.c.l.b16 %v2283
    %v2355 = vunpack.c.l.b16 %v2284
    %v2356 = vpack.c.b16 %v2325, %v2324
    %v2357 = vpack.c.b16 %v2327, %v2326
    %v2358 = vpack.c.b16 %v2329, %v2328
    %v2359 = vpack.c.b16 %v2331, %v2330
    %v2360 = vpack.c.b16 %v2333, %v2332
    %v2361 = vpack.c.b16 %v2335, %v2334
    %v2362 = vpack.c.b16 %v2337, %v2336
    %v2363 = vpack.c.b16 %v2339, %v2338
    %v2364 = vpack.c.b16 %v2341, %v2340
    %v2365 = vpack.c.b16 %v2343, %v2342
    %v2366 = vpack.c.b16 %v2345, %v2344
    %v2367 = vpack.c.b16 %v2347, %v2346
    %v2368 = vpack.c.b16 %v2349, %v2348
    %v2369 = vpack.c.b16 %v2351, %v2350
    %v2370 = vpack.c.b16 %v2353, %v2352
    %v2371 = vpack.c.b16 %v2355, %v2354
    %2388 = vmatprep.subr.bf16.mxu0 0
    %2389 = vmatpush1.bf16.msra.mxu0 %v2356
    %2390 = vmatprep.subr.bf16.mxu0 0
    %2391 = vmatpush1.bf16.msra.mxu0 %v2357
    %2392 = vmatprep.subr.bf16.mxu0 0
    %2393 = vmatpush1.bf16.msra.mxu0 %v2358
    %2394 = vmatprep.subr.bf16.mxu0 0
    %2395 = vmatpush1.bf16.msra.mxu0 %v2359
    %2396 = vmatprep.subr.bf16.mxu0 0
    %2397 = vmatpush1.bf16.msra.mxu0 %v2360
    %2398 = vmatprep.subr.bf16.mxu0 0
    %2399 = vmatpush1.bf16.msra.mxu0 %v2361
    %2400 = vmatprep.subr.bf16.mxu0 0
    %2401 = vmatpush1.bf16.msra.mxu0 %v2362
    %2402 = vmatprep.subr.bf16.mxu0 0
    %2403 = vmatpush1.bf16.msra.mxu0 %v2363
    %2404 = vmatprep.subr.bf16.mxu0 0
    %2405 = vmatpush1.bf16.msra.mxu0 %v2364
    %2406 = vmatprep.subr.bf16.mxu0 0
    %2407 = vmatpush1.bf16.msra.mxu0 %v2365
    %2408 = vmatprep.subr.bf16.mxu0 0
    %2409 = vmatpush1.bf16.msra.mxu0 %v2366
    %2410 = vmatprep.subr.bf16.mxu0 0
    %2411 = vmatpush1.bf16.msra.mxu0 %v2367
    %2412 = vmatprep.subr.bf16.mxu0 0
    %2413 = vmatpush1.bf16.msra.mxu0 %v2368
    %2414 = vmatprep.subr.bf16.mxu0 0
    %2415 = vmatpush1.bf16.msra.mxu0 %v2369
    %2416 = vmatprep.subr.bf16.mxu0 0
    %2417 = vmatpush1.bf16.msra.mxu0 %v2370
    %2418 = vmatprep.subr.bf16.mxu0 0
    %2419 = vmatpush1.bf16.msra.mxu0 %v2371
    %2420 = vmatprep.mubr.bf16.mxu0 %v2077
    %2421 = vmatmul.mubr.bf16.gmra.mrb[0].mxu0 %v2076
    %v2422 = vpop.f32.mrb[0].mxu0
    %v2423 = vadd.f32 %v2290, %v2422
    %v2424 = vpop.f32.mrb[0].mxu0
    %v2425 = vpop.f32.mrb[0].mxu0
    %v2426 = vpop.f32.mrb[0].mxu0
    %2427 = vdwg.mxu0
    %v2428 = vld [vmem:[%s1] sm:$0x3]
    %v2429 = vmul.f32 %v2423, 0.5
    %v2430 = vmul.f32 %v2429, 1.442695
    %v2431 = vpow.pop %v2430
    %v2432 = vmul.f32 %v2428, %v2431
    %v2433 = vadd.f32 %v2248, %v2432
    %v2434 = vpack.c.bf16 %v2433, %v2433
    %v2435 = vld [vmem:[%s10] sm:$0xff]
    %v2436 = vld [vmem:[%s10 + $0x8] sm:$0xff]
    %v2437 = vld [vmem:[%s11] sm:$0x3]
    %v2439 = vlaneseq
    %v2440 = vshrl.u32 %v2439, 7
    %v2441 = vsub.s32 0, %v2440
    %v2442 = vrot.slane %v2437, %v2441
    %v2443 = vlaneseq
    %v2444 = vshrl.u32 %v2443, 7
    %v2445 = vsub.s32 1, %v2444
    %v2446 = vrot.slane %v2437, %v2445
    %v2451 = vunpack.c.l.b16 %v2435
    %v2452 = vunpack.c.h.b16 %v2435
    %v2453 = vunpack.c.l.b16 %v2436
    %v2454 = vunpack.c.h.b16 %v2436
    %v2455 = vpack.c.b16 %v2453, %v2451
    %v2456 = vpack.c.b16 %v2454, %v2452
    %vm2459 = vcmask 130048
    %v2461 = vsel %vm2459, %v2434, 0
    %2463 = vmatprep.subr.bf16.mxu0 %v2456
    %2464 = vmatpush1.bf16.msra.mxu0 %v2455
    %2465 = vmatprep.subr.bf16.mxu0 0
    %2466 = vmatpush1.bf16.msra.mxu0 0
    %2467 = vmatprep.subr.bf16.mxu0 0
    %2468 = vmatpush1.bf16.msra.mxu0 0
    %2469 = vmatprep.subr.bf16.mxu0 0
    %2470 = vmatpush1.bf16.msra.mxu0 0
    %2471 = vmatprep.subr.bf16.mxu0 0
    %2472 = vmatpush1.bf16.msra.mxu0 0
    %2473 = vmatprep.subr.bf16.mxu0 0
    %2474 = vmatpush1.bf16.msra.mxu0 0
    %2475 = vmatprep.subr.bf16.mxu0 0
    %2476 = vmatpush1.bf16.msra.mxu0 0
    %2477 = vmatprep.subr.bf16.mxu0 0
    %2478 = vmatpush1.bf16.msra.mxu0 0
    %2479 = vmatprep.subr.bf16.mxu0 0
    %2480 = vmatpush1.bf16.msra.mxu0 0
    %2481 = vmatprep.subr.bf16.mxu0 0
    %2482 = vmatpush1.bf16.msra.mxu0 0
    %2483 = vmatprep.subr.bf16.mxu0 0
    %2484 = vmatpush1.bf16.msra.mxu0 0
    %2485 = vmatprep.subr.bf16.mxu0 0
    %2486 = vmatpush1.bf16.msra.mxu0 0
    %2487 = vmatprep.subr.bf16.mxu0 0
    %2488 = vmatpush1.bf16.msra.mxu0 0
    %2489 = vmatprep.subr.bf16.mxu0 0
    %2490 = vmatpush1.bf16.msra.mxu0 0
    %2491 = vmatprep.subr.bf16.mxu0 0
    %2492 = vmatpush1.bf16.msra.mxu0 0
    %2493 = vmatprep.subr.bf16.mxu0 0
    %2494 = vmatpush1.bf16.msra.mxu0 0
    %2495 = vmatprep.mubr.bf16.mxu0 0
    %2496 = vmatmul.mubr.bf16.gmra.mrb[0].mxu0 %v2461
    %v2497 = vpop.f32.mrb[0].mxu0
    %v2498 = vadd.f32 %v2442, %v2497
    %v2499 = vpop.f32.mrb[0].mxu0
    %v2500 = vadd.f32 %v2446, %v2499
    %v2501 = vpop.f32.mrb[0].mxu0
    %v2502 = vpop.f32.mrb[0].mxu0
    %2503 = vdwg.mxu0
    %v2504 = vmax.f32 %v2498, 0.0
    %v2505 = vmax.f32 %v2500, 0.0
    %v2506 = vpack.c.bf16 %v2504, %v2504
    %v2507 = vpack.c.bf16 %v2505, %v2505
    %v2508 = vld [vmem:[#allocation7] sm:$0xff]
    %v2509 = vld [vmem:[#allocation7 + $0x8] sm:$0xff]
    %v2510 = vld [vmem:[#allocation7 + $0x10] sm:$0xff]
    %v2511 = vld [vmem:[#allocation7 + $0x18] sm:$0xff]
    %v2512 = vld [vmem:[#allocation7 + $0x20] sm:$0xff]
    %v2513 = vld [vmem:[#allocation7 + $0x28] sm:$0xff]
    %v2514 = vld [vmem:[#allocation7 + $0x30] sm:$0xff]
    %v2515 = vld [vmem:[#allocation7 + $0x38] sm:$0xff]
    %v2516 = vld [vmem:[#allocation7 + $0x40] sm:$0xff]
    %v2517 = vld [vmem:[#allocation7 + $0x48] sm:$0xff]
    %v2518 = vld [vmem:[#allocation7 + $0x50] sm:$0xff]
    %v2519 = vld [vmem:[#allocation7 + $0x58] sm:$0xff]
    %v2520 = vld [vmem:[#allocation7 + $0x60] sm:$0xff]
    %v2521 = vld [vmem:[#allocation7 + $0x68] sm:$0xff]
    %v2522 = vld [vmem:[#allocation7 + $0x70] sm:$0xff]
    %v2523 = vld [vmem:[#allocation7 + $0x78] sm:$0xff]
    %v2524 = vld [vmem:[#allocation7 + $0x80] sm:$0xff]
    %v2525 = vld [vmem:[#allocation7 + $0x88] sm:$0xff]
    %v2526 = vld [vmem:[#allocation7 + $0x90] sm:$0xff]
    %v2527 = vld [vmem:[#allocation7 + $0x98] sm:$0xff]
    %v2528 = vld [vmem:[#allocation7 + $0xa0] sm:$0xff]
    %v2529 = vld [vmem:[#allocation7 + $0xa8] sm:$0xff]
    %v2530 = vld [vmem:[#allocation7 + $0xb0] sm:$0xff]
    %v2531 = vld [vmem:[#allocation7 + $0xb8] sm:$0xff]
    %v2532 = vld [vmem:[#allocation7 + $0xc0] sm:$0xff]
    %v2533 = vld [vmem:[#allocation7 + $0xc8] sm:$0xff]
    %v2534 = vld [vmem:[#allocation7 + $0xd0] sm:$0xff]
    %v2535 = vld [vmem:[#allocation7 + $0xd8] sm:$0xff]
    %v2536 = vld [vmem:[#allocation7 + $0xe0] sm:$0xff]
    %v2537 = vld [vmem:[#allocation7 + $0xe8] sm:$0xff]
    %v2538 = vld [vmem:[#allocation7 + $0xf0] sm:$0xff]
    %v2539 = vld [vmem:[#allocation7 + $0xf8] sm:$0xff]
    %v2540 = vld [vmem:[#allocation7 + $0x100] sm:$0xff]
    %v2541 = vld [vmem:[#allocation7 + $0x108] sm:$0xff]
    %v2542 = vld [vmem:[#allocation7 + $0x110] sm:$0xff]
    %v2543 = vld [vmem:[#allocation7 + $0x118] sm:$0xff]
    %v2544 = vld [vmem:[#allocation7 + $0x120] sm:$0xff]
    %v2545 = vld [vmem:[#allocation7 + $0x128] sm:$0xff]
    %v2546 = vld [vmem:[#allocation7 + $0x130] sm:$0xff]
    %v2547 = vld [vmem:[#allocation7 + $0x138] sm:$0xff]
    %v2548 = vld [vmem:[#allocation7 + $0x140] sm:$0xff]
    %v2549 = vld [vmem:[#allocation7 + $0x148] sm:$0xff]
    %v2550 = vld [vmem:[#allocation7 + $0x150] sm:$0xff]
    %v2551 = vld [vmem:[#allocation7 + $0x158] sm:$0xff]
    %v2552 = vld [vmem:[#allocation7 + $0x160] sm:$0xff]
    %v2553 = vld [vmem:[#allocation7 + $0x168] sm:$0xff]
    %v2554 = vld [vmem:[#allocation7 + $0x170] sm:$0xff]
    %v2555 = vld [vmem:[#allocation7 + $0x178] sm:$0xff]
    %v2556 = vld [vmem:[#allocation7 + $0x180] sm:$0xff]
    %v2557 = vld [vmem:[#allocation7 + $0x188] sm:$0xff]
    %v2558 = vld [vmem:[#allocation7 + $0x190] sm:$0xff]
    %v2559 = vld [vmem:[#allocation7 + $0x198] sm:$0xff]
    %v2560 = vld [vmem:[#allocation7 + $0x1a0] sm:$0xff]
    %v2561 = vld [vmem:[#allocation7 + $0x1a8] sm:$0xff]
    %v2562 = vld [vmem:[#allocation7 + $0x1b0] sm:$0xff]
    %v2563 = vld [vmem:[#allocation7 + $0x1b8] sm:$0xff]
    %v2564 = vld [vmem:[#allocation7 + $0x1c0] sm:$0xff]
    %v2565 = vld [vmem:[#allocation7 + $0x1c8] sm:$0xff]
    %v2566 = vld [vmem:[#allocation7 + $0x1d0] sm:$0xff]
    %v2567 = vld [vmem:[#allocation7 + $0x1d8] sm:$0xff]
    %v2568 = vld [vmem:[#allocation7 + $0x1e0] sm:$0xff]
    %v2569 = vld [vmem:[#allocation7 + $0x1e8] sm:$0xff]
    %v2570 = vld [vmem:[#allocation7 + $0x1f0] sm:$0xff]
    %v2571 = vld [vmem:[#allocation7 + $0x1f8] sm:$0xff]
    %v2572 = vld [vmem:[%s13] sm:$0xf]
    %v2574 = vlaneseq
    %v2575 = vshrl.u32 %v2574, 7
    %v2576 = vsub.s32 0, %v2575
    %v2577 = vrot.slane %v2572, %v2576
    %v2578 = vlaneseq
    %v2579 = vshrl.u32 %v2578, 7
    %v2580 = vsub.s32 1, %v2579
    %v2581 = vrot.slane %v2572, %v2580
    %v2582 = vlaneseq
    %v2583 = vshrl.u32 %v2582, 7
    %v2584 = vsub.s32 2, %v2583
    %v2585 = vrot.slane %v2572, %v2584
    %v2586 = vlaneseq
    %v2587 = vshrl.u32 %v2586, 7
    %v2588 = vsub.s32 3, %v2587
    %v2589 = vrot.slane %v2572, %v2588
    %v2658 = vunpack.c.l.b16 %v2508
    %v2659 = vunpack.c.h.b16 %v2508
    %v2660 = vunpack.c.l.b16 %v2509
    %v2661 = vunpack.c.h.b16 %v2509
    %v2662 = vunpack.c.l.b16 %v2510
    %v2663 = vunpack.c.h.b16 %v2510
    %v2664 = vunpack.c.l.b16 %v2511
    %v2665 = vunpack.c.h.b16 %v2511
    %v2666 = vunpack.c.l.b16 %v2512
    %v2667 = vunpack.c.h.b16 %v2512
    %v2668 = vunpack.c.l.b16 %v2513
    %v2669 = vunpack.c.h.b16 %v2513
    %v2670 = vunpack.c.l.b16 %v2514
    %v2671 = vunpack.c.h.b16 %v2514
    %v2672 = vunpack.c.l.b16 %v2515
    %v2673 = vunpack.c.h.b16 %v2515
    %v2674 = vunpack.c.l.b16 %v2516
    %v2675 = vunpack.c.h.b16 %v2516
    %v2676 = vunpack.c.l.b16 %v2517
    %v2677 = vunpack.c.h.b16 %v2517
    %v2678 = vunpack.c.l.b16 %v2518
    %v2679 = vunpack.c.h.b16 %v2518
    %v2680 = vunpack.c.l.b16 %v2519
    %v2681 = vunpack.c.h.b16 %v2519
    %v2682 = vunpack.c.l.b16 %v2520
    %v2683 = vunpack.c.h.b16 %v2520
    %v2684 = vunpack.c.l.b16 %v2521
    %v2685 = vunpack.c.h.b16 %v2521
    %v2686 = vunpack.c.l.b16 %v2522
    %v2687 = vunpack.c.h.b16 %v2522
    %v2688 = vunpack.c.l.b16 %v2523
    %v2689 = vunpack.c.h.b16 %v2523
    %v2690 = vunpack.c.l.b16 %v2524
    %v2691 = vunpack.c.h.b16 %v2524
    %v2692 = vunpack.c.l.b16 %v2525
    %v2693 = vunpack.c.h.b16 %v2525
    %v2694 = vunpack.c.l.b16 %v2526
    %v2695 = vunpack.c.h.b16 %v2526
    %v2696 = vunpack.c.l.b16 %v2527
    %v2697 = vunpack.c.h.b16 %v2527
    %v2698 = vunpack.c.l.b16 %v2528
    %v2699 = vunpack.c.h.b16 %v2528
    %v2700 = vunpack.c.l.b16 %v2529
    %v2701 = vunpack.c.h.b16 %v2529
    %v2702 = vunpack.c.l.b16 %v2530
    %v2703 = vunpack.c.h.b16 %v2530
    %v2704 = vunpack.c.l.b16 %v2531
    %v2705 = vunpack.c.h.b16 %v2531
    %v2706 = vunpack.c.l.b16 %v2532
    %v2707 = vunpack.c.h.b16 %v2532
    %v2708 = vunpack.c.l.b16 %v2533
    %v2709 = vunpack.c.h.b16 %v2533
    %v2710 = vunpack.c.l.b16 %v2534
    %v2711 = vunpack.c.h.b16 %v2534
    %v2712 = vunpack.c.l.b16 %v2535
    %v2713 = vunpack.c.h.b16 %v2535
    %v2714 = vunpack.c.l.b16 %v2536
    %v2715 = vunpack.c.h.b16 %v2536
    %v2716 = vunpack.c.l.b16 %v2537
    %v2717 = vunpack.c.h.b16 %v2537
    %v2718 = vunpack.c.l.b16 %v2538
    %v2719 = vunpack.c.h.b16 %v2538
    %v2720 = vunpack.c.l.b16 %v2539
    %v2721 = vunpack.c.h.b16 %v2539
    %v2722 = vunpack.c.l.b16 %v2540
    %v2723 = vunpack.c.h.b16 %v2540
    %v2724 = vunpack.c.l.b16 %v2541
    %v2725 = vunpack.c.h.b16 %v2541
    %v2726 = vunpack.c.l.b16 %v2542
    %v2727 = vunpack.c.h.b16 %v2542
    %v2728 = vunpack.c.l.b16 %v2543
    %v2729 = vunpack.c.h.b16 %v2543
    %v2730 = vunpack.c.l.b16 %v2544
    %v2731 = vunpack.c.h.b16 %v2544
    %v2732 = vunpack.c.l.b16 %v2545
    %v2733 = vunpack.c.h.b16 %v2545
    %v2734 = vunpack.c.l.b16 %v2546
    %v2735 = vunpack.c.h.b16 %v2546
    %v2736 = vunpack.c.l.b16 %v2547
    %v2737 = vunpack.c.h.b16 %v2547
    %v2738 = vunpack.c.l.b16 %v2548
    %v2739 = vunpack.c.h.b16 %v2548
    %v2740 = vunpack.c.l.b16 %v2549
    %v2741 = vunpack.c.h.b16 %v2549
    %v2742 = vunpack.c.l.b16 %v2550
    %v2743 = vunpack.c.h.b16 %v2550
    %v2744 = vunpack.c.l.b16 %v2551
    %v2745 = vunpack.c.h.b16 %v2551
    %v2746 = vunpack.c.l.b16 %v2552
    %v2747 = vunpack.c.h.b16 %v2552
    %v2748 = vunpack.c.l.b16 %v2553
    %v2749 = vunpack.c.h.b16 %v2553
    %v2750 = vunpack.c.l.b16 %v2554
    %v2751 = vunpack.c.h.b16 %v2554
    %v2752 = vunpack.c.l.b16 %v2555
    %v2753 = vunpack.c.h.b16 %v2555
    %v2754 = vunpack.c.l.b16 %v2556
    %v2755 = vunpack.c.h.b16 %v2556
    %v2756 = vunpack.c.l.b16 %v2557
    %v2757 = vunpack.c.h.b16 %v2557
    %v2758 = vunpack.c.l.b16 %v2558
    %v2759 = vunpack.c.h.b16 %v2558
    %v2760 = vunpack.c.l.b16 %v2559
    %v2761 = vunpack.c.h.b16 %v2559
    %v2762 = vunpack.c.l.b16 %v2560
    %v2763 = vunpack.c.h.b16 %v2560
    %v2764 = vunpack.c.l.b16 %v2561
    %v2765 = vunpack.c.h.b16 %v2561
    %v2766 = vunpack.c.l.b16 %v2562
    %v2767 = vunpack.c.h.b16 %v2562
    %v2768 = vunpack.c.l.b16 %v2563
    %v2769 = vunpack.c.h.b16 %v2563
    %v2770 = vunpack.c.l.b16 %v2564
    %v2771 = vunpack.c.h.b16 %v2564
    %v2772 = vunpack.c.l.b16 %v2565
    %v2773 = vunpack.c.h.b16 %v2565
    %v2774 = vunpack.c.l.b16 %v2566
    %v2775 = vunpack.c.h.b16 %v2566
    %v2776 = vunpack.c.l.b16 %v2567
    %v2777 = vunpack.c.h.b16 %v2567
    %v2778 = vunpack.c.l.b16 %v2568
    %v2779 = vunpack.c.h.b16 %v2568
    %v2780 = vunpack.c.l.b16 %v2569
    %v2781 = vunpack.c.h.b16 %v2569
    %v2782 = vunpack.c.l.b16 %v2570
    %v2783 = vunpack.c.h.b16 %v2570
    %v2784 = vunpack.c.l.b16 %v2571
    %v2785 = vunpack.c.h.b16 %v2571
    %v2786 = vpack.c.b16 %v2662, %v2658
    %v2787 = vpack.c.b16 %v2663, %v2659
    %v2788 = vpack.c.b16 %v2664, %v2660
    %v2789 = vpack.c.b16 %v2665, %v2661
    %v2790 = vpack.c.b16 %v2670, %v2666
    %v2791 = vpack.c.b16 %v2671, %v2667
    %v2792 = vpack.c.b16 %v2672, %v2668
    %v2793 = vpack.c.b16 %v2673, %v2669
    %v2794 = vpack.c.b16 %v2678, %v2674
    %v2795 = vpack.c.b16 %v2679, %v2675
    %v2796 = vpack.c.b16 %v2680, %v2676
    %v2797 = vpack.c.b16 %v2681, %v2677
    %v2798 = vpack.c.b16 %v2686, %v2682
    %v2799 = vpack.c.b16 %v2687, %v2683
    %v2800 = vpack.c.b16 %v2688, %v2684
    %v2801 = vpack.c.b16 %v2689, %v2685
    %v2802 = vpack.c.b16 %v2694, %v2690
    %v2803 = vpack.c.b16 %v2695, %v2691
    %v2804 = vpack.c.b16 %v2696, %v2692
    %v2805 = vpack.c.b16 %v2697, %v2693
    %v2806 = vpack.c.b16 %v2702, %v2698
    %v2807 = vpack.c.b16 %v2703, %v2699
    %v2808 = vpack.c.b16 %v2704, %v2700
    %v2809 = vpack.c.b16 %v2705, %v2701
    %v2810 = vpack.c.b16 %v2710, %v2706
    %v2811 = vpack.c.b16 %v2711, %v2707
    %v2812 = vpack.c.b16 %v2712, %v2708
    %v2813 = vpack.c.b16 %v2713, %v2709
    %v2814 = vpack.c.b16 %v2718, %v2714
    %v2815 = vpack.c.b16 %v2719, %v2715
    %v2816 = vpack.c.b16 %v2720, %v2716
    %v2817 = vpack.c.b16 %v2721, %v2717
    %v2818 = vpack.c.b16 %v2726, %v2722
    %v2819 = vpack.c.b16 %v2727, %v2723
    %v2820 = vpack.c.b16 %v2728, %v2724
    %v2821 = vpack.c.b16 %v2729, %v2725
    %v2822 = vpack.c.b16 %v2734, %v2730
    %v2823 = vpack.c.b16 %v2735, %v2731
    %v2824 = vpack.c.b16 %v2736, %v2732
    %v2825 = vpack.c.b16 %v2737, %v2733
    %v2826 = vpack.c.b16 %v2742, %v2738
    %v2827 = vpack.c.b16 %v2743, %v2739
    %v2828 = vpack.c.b16 %v2744, %v2740
    %v2829 = vpack.c.b16 %v2745, %v2741
    %v2830 = vpack.c.b16 %v2750, %v2746
    %v2831 = vpack.c.b16 %v2751, %v2747
    %v2832 = vpack.c.b16 %v2752, %v2748
    %v2833 = vpack.c.b16 %v2753, %v2749
    %v2834 = vpack.c.b16 %v2758, %v2754
    %v2835 = vpack.c.b16 %v2759, %v2755
    %v2836 = vpack.c.b16 %v2760, %v2756
    %v2837 = vpack.c.b16 %v2761, %v2757
    %v2838 = vpack.c.b16 %v2766, %v2762
    %v2839 = vpack.c.b16 %v2767, %v2763
    %v2840 = vpack.c.b16 %v2768, %v2764
    %v2841 = vpack.c.b16 %v2769, %v2765
    %v2842 = vpack.c.b16 %v2774, %v2770
    %v2843 = vpack.c.b16 %v2775, %v2771
    %v2844 = vpack.c.b16 %v2776, %v2772
    %v2845 = vpack.c.b16 %v2777, %v2773
    %v2846 = vpack.c.b16 %v2782, %v2778
    %v2847 = vpack.c.b16 %v2783, %v2779
    %v2848 = vpack.c.b16 %v2784, %v2780
    %v2849 = vpack.c.b16 %v2785, %v2781
    %2914 = vmatprep.subr.bf16.mxu0 %v2787
    %2915 = vmatpush1.bf16.msra.mxu0 %v2786
    %2916 = vmatprep.subr.bf16.mxu0 %v2791
    %2917 = vmatpush1.bf16.msra.mxu0 %v2790
    %2918 = vmatprep.subr.bf16.mxu0 %v2795
    %2919 = vmatpush1.bf16.msra.mxu0 %v2794
    %2920 = vmatprep.subr.bf16.mxu0 %v2799
    %2921 = vmatpush1.bf16.msra.mxu0 %v2798
    %2922 = vmatprep.subr.bf16.mxu0 %v2803
    %2923 = vmatpush1.bf16.msra.mxu0 %v2802
    %2924 = vmatprep.subr.bf16.mxu0 %v2807
    %2925 = vmatpush1.bf16.msra.mxu0 %v2806
    %2926 = vmatprep.subr.bf16.mxu0 %v2811
    %2927 = vmatpush1.bf16.msra.mxu0 %v2810
    %2928 = vmatprep.subr.bf16.mxu0 %v2815
    %2929 = vmatpush1.bf16.msra.mxu0 %v2814
    %2930 = vmatprep.subr.bf16.mxu0 %v2819
    %2931 = vmatpush1.bf16.msra.mxu0 %v2818
    %2932 = vmatprep.subr.bf16.mxu0 %v2823
    %2933 = vmatpush1.bf16.msra.mxu0 %v2822
    %2934 = vmatprep.subr.bf16.mxu0 %v2827
    %2935 = vmatpush1.bf16.msra.mxu0 %v2826
    %2936 = vmatprep.subr.bf16.mxu0 %v2831
    %2937 = vmatpush1.bf16.msra.mxu0 %v2830
    %2938 = vmatprep.subr.bf16.mxu0 %v2835
    %2939 = vmatpush1.bf16.msra.mxu0 %v2834
    %2940 = vmatprep.subr.bf16.mxu0 %v2839
    %2941 = vmatpush1.bf16.msra.mxu0 %v2838
    %2942 = vmatprep.subr.bf16.mxu0 %v2843
    %2943 = vmatpush1.bf16.msra.mxu0 %v2842
    %2944 = vmatprep.subr.bf16.mxu0 %v2847
    %2945 = vmatpush1.bf16.msra.mxu0 %v2846
    %2946 = vmatprep.mubr.bf16.mxu0 %v2507
    %2947 = vmatmul.mubr.bf16.gmra.mrb[0].mxu0 %v2506
    %v2948 = vpop.f32.mrb[0].mxu0
    %v2949 = vadd.f32 %v2577, %v2948
    %v2950 = vpop.f32.mrb[0].mxu0
    %v2951 = vadd.f32 %v2581, %v2950
    %v2952 = vpop.f32.mrb[0].mxu0
    %v2953 = vpop.f32.mrb[0].mxu0
    %2954 = vdwg.mxu0
    %2955 = vmatprep.subr.bf16.mxu0 %v2789
    %2956 = vmatpush1.bf16.msra.mxu0 %v2788
    %2957 = vmatprep.subr.bf16.mxu0 %v2793
    %2958 = vmatpush1.bf16.msra.mxu0 %v2792
    %2959 = vmatprep.subr.bf16.mxu0 %v2797
    %2960 = vmatpush1.bf16.msra.mxu0 %v2796
    %2961 = vmatprep.subr.bf16.mxu0 %v2801
    %2962 = vmatpush1.bf16.msra.mxu0 %v2800
    %2963 = vmatprep.subr.bf16.mxu0 %v2805
    %2964 = vmatpush1.bf16.msra.mxu0 %v2804
    %2965 = vmatprep.subr.bf16.mxu0 %v2809
    %2966 = vmatpush1.bf16.msra.mxu0 %v2808
    %2967 = vmatprep.subr.bf16.mxu0 %v2813
    %2968 = vmatpush1.bf16.msra.mxu0 %v2812
    %2969 = vmatprep.subr.bf16.mxu0 %v2817
    %2970 = vmatpush1.bf16.msra.mxu0 %v2816
    %2971 = vmatprep.subr.bf16.mxu0 %v2821
    %2972 = vmatpush1.bf16.msra.mxu0 %v2820
    %2973 = vmatprep.subr.bf16.mxu0 %v2825
    %2974 = vmatpush1.bf16.msra.mxu0 %v2824
    %2975 = vmatprep.subr.bf16.mxu0 %v2829
    %2976 = vmatpush1.bf16.msra.mxu0 %v2828
    %2977 = vmatprep.subr.bf16.mxu0 %v2833
    %2978 = vmatpush1.bf16.msra.mxu0 %v2832
    %2979 = vmatprep.subr.bf16.mxu0 %v2837
    %2980 = vmatpush1.bf16.msra.mxu0 %v2836
    %2981 = vmatprep.subr.bf16.mxu0 %v2841
    %2982 = vmatpush1.bf16.msra.mxu0 %v2840
    %2983 = vmatprep.subr.bf16.mxu0 %v2845
    %2984 = vmatpush1.bf16.msra.mxu0 %v2844
    %2985 = vmatprep.subr.bf16.mxu0 %v2849
    %2986 = vmatpush1.bf16.msra.mxu0 %v2848
    %2987 = vmatprep.mubr.bf16.mxu0 %v2507
    %2988 = vmatmul.mubr.bf16.gmra.mrb[0].mxu0 %v2506
    %v2989 = vpop.f32.mrb[0].mxu0
    %v2990 = vadd.f32 %v2585, %v2989
    %v2991 = vpop.f32.mrb[0].mxu0
    %v2992 = vadd.f32 %v2589, %v2991
    %v2993 = vpop.f32.mrb[0].mxu0
    %v2994 = vpop.f32.mrb[0].mxu0
    %2995 = vdwg.mxu0
    %v2996 = vmax.f32 %v2949, 0.0
    %v2997 = vmax.f32 %v2951, 0.0
    %v2998 = vmax.f32 %v2990, 0.0
    %v2999 = vmax.f32 %v2992, 0.0
    %v3000 = vpack.c.bf16 %v2996, %v2996
    %v3001 = vpack.c.bf16 %v2997, %v2997
    %v3002 = vpack.c.bf16 %v2998, %v2998
    %v3003 = vpack.c.bf16 %v2999, %v2999
    %v3004 = vld [vmem:[#allocation8] sm:$0xff]
    %v3005 = vld [vmem:[#allocation8 + $0x8] sm:$0xff]
    %v3006 = vld [vmem:[#allocation8 + $0x10] sm:$0xff]
    %v3007 = vld [vmem:[#allocation8 + $0x18] sm:$0xff]
    %v3008 = vld [vmem:[#allocation8 + $0x20] sm:$0xff]
    %v3009 = vld [vmem:[#allocation8 + $0x28] sm:$0xff]
    %v3010 = vld [vmem:[#allocation8 + $0x30] sm:$0xff]
    %v3011 = vld [vmem:[#allocation8 + $0x38] sm:$0xff]
    %v3012 = vld [vmem:[#allocation8 + $0x40] sm:$0xff]
    %v3013 = vld [vmem:[#allocation8 + $0x48] sm:$0xff]
    %v3014 = vld [vmem:[#allocation8 + $0x50] sm:$0xff]
    %v3015 = vld [vmem:[#allocation8 + $0x58] sm:$0xff]
    %v3016 = vld [vmem:[#allocation8 + $0x60] sm:$0xff]
    %v3017 = vld [vmem:[#allocation8 + $0x68] sm:$0xff]
    %v3018 = vld [vmem:[#allocation8 + $0x70] sm:$0xff]
    %v3019 = vld [vmem:[#allocation8 + $0x78] sm:$0xff]
    %v3020 = vld [vmem:[#allocation8 + $0x80] sm:$0xff]
    %v3021 = vld [vmem:[#allocation8 + $0x88] sm:$0xff]
    %v3022 = vld [vmem:[#allocation8 + $0x90] sm:$0xff]
    %v3023 = vld [vmem:[#allocation8 + $0x98] sm:$0xff]
    %v3024 = vld [vmem:[#allocation8 + $0xa0] sm:$0xff]
    %v3025 = vld [vmem:[#allocation8 + $0xa8] sm:$0xff]
    %v3026 = vld [vmem:[#allocation8 + $0xb0] sm:$0xff]
    %v3027 = vld [vmem:[#allocation8 + $0xb8] sm:$0xff]
    %v3028 = vld [vmem:[#allocation8 + $0xc0] sm:$0xff]
    %v3029 = vld [vmem:[#allocation8 + $0xc8] sm:$0xff]
    %v3030 = vld [vmem:[#allocation8 + $0xd0] sm:$0xff]
    %v3031 = vld [vmem:[#allocation8 + $0xd8] sm:$0xff]
    %v3032 = vld [vmem:[#allocation8 + $0xe0] sm:$0xff]
    %v3033 = vld [vmem:[#allocation8 + $0xe8] sm:$0xff]
    %v3034 = vld [vmem:[#allocation8 + $0xf0] sm:$0xff]
    %v3035 = vld [vmem:[#allocation8 + $0xf8] sm:$0xff]
    %v3036 = vld [vmem:[#allocation8 + $0x100] sm:$0xff]
    %v3037 = vld [vmem:[#allocation8 + $0x108] sm:$0xff]
    %v3038 = vld [vmem:[#allocation8 + $0x110] sm:$0xff]
    %v3039 = vld [vmem:[#allocation8 + $0x118] sm:$0xff]
    %v3040 = vld [vmem:[#allocation8 + $0x120] sm:$0xff]
    %v3041 = vld [vmem:[#allocation8 + $0x128] sm:$0xff]
    %v3042 = vld [vmem:[#allocation8 + $0x130] sm:$0xff]
    %v3043 = vld [vmem:[#allocation8 + $0x138] sm:$0xff]
    %v3044 = vld [vmem:[#allocation8 + $0x140] sm:$0xff]
    %v3045 = vld [vmem:[#allocation8 + $0x148] sm:$0xff]
    %v3046 = vld [vmem:[#allocation8 + $0x150] sm:$0xff]
    %v3047 = vld [vmem:[#allocation8 + $0x158] sm:$0xff]
    %v3048 = vld [vmem:[#allocation8 + $0x160] sm:$0xff]
    %v3049 = vld [vmem:[#allocation8 + $0x168] sm:$0xff]
    %v3050 = vld [vmem:[#allocation8 + $0x170] sm:$0xff]
    %v3051 = vld [vmem:[#allocation8 + $0x178] sm:$0xff]
    %v3052 = vld [vmem:[#allocation8 + $0x180] sm:$0xff]
    %v3053 = vld [vmem:[#allocation8 + $0x188] sm:$0xff]
    %v3054 = vld [vmem:[#allocation8 + $0x190] sm:$0xff]
    %v3055 = vld [vmem:[#allocation8 + $0x198] sm:$0xff]
    %v3056 = vld [vmem:[#allocation8 + $0x1a0] sm:$0xff]
    %v3057 = vld [vmem:[#allocation8 + $0x1a8] sm:$0xff]
    %v3058 = vld [vmem:[#allocation8 + $0x1b0] sm:$0xff]
    %v3059 = vld [vmem:[#allocation8 + $0x1b8] sm:$0xff]
    %v3060 = vld [vmem:[#allocation8 + $0x1c0] sm:$0xff]
    %v3061 = vld [vmem:[#allocation8 + $0x1c8] sm:$0xff]
    %v3062 = vld [vmem:[#allocation8 + $0x1d0] sm:$0xff]
    %v3063 = vld [vmem:[#allocation8 + $0x1d8] sm:$0xff]
    %v3064 = vld [vmem:[#allocation8 + $0x1e0] sm:$0xff]
    %v3065 = vld [vmem:[#allocation8 + $0x1e8] sm:$0xff]
    %v3066 = vld [vmem:[#allocation8 + $0x1f0] sm:$0xff]
    %v3067 = vld [vmem:[#allocation8 + $0x1f8] sm:$0xff]
    %v3068 = vld [vmem:[#allocation8 + $0x200] sm:$0xff]
    %v3069 = vld [vmem:[#allocation8 + $0x208] sm:$0xff]
    %v3070 = vld [vmem:[#allocation8 + $0x210] sm:$0xff]
    %v3071 = vld [vmem:[#allocation8 + $0x218] sm:$0xff]
    %v3072 = vld [vmem:[#allocation8 + $0x220] sm:$0xff]
    %v3073 = vld [vmem:[#allocation8 + $0x228] sm:$0xff]
    %v3074 = vld [vmem:[#allocation8 + $0x230] sm:$0xff]
    %v3075 = vld [vmem:[#allocation8 + $0x238] sm:$0xff]
    %v3076 = vld [vmem:[#allocation8 + $0x240] sm:$0xff]
    %v3077 = vld [vmem:[#allocation8 + $0x248] sm:$0xff]
    %v3078 = vld [vmem:[#allocation8 + $0x250] sm:$0xff]
    %v3079 = vld [vmem:[#allocation8 + $0x258] sm:$0xff]
    %v3080 = vld [vmem:[#allocation8 + $0x260] sm:$0xff]
    %v3081 = vld [vmem:[#allocation8 + $0x268] sm:$0xff]
    %v3082 = vld [vmem:[#allocation8 + $0x270] sm:$0xff]
    %v3083 = vld [vmem:[#allocation8 + $0x278] sm:$0xff]
    %v3084 = vld [vmem:[#allocation8 + $0x280] sm:$0xff]
    %v3085 = vld [vmem:[#allocation8 + $0x288] sm:$0xff]
    %v3086 = vld [vmem:[#allocation8 + $0x290] sm:$0xff]
    %v3087 = vld [vmem:[#allocation8 + $0x298] sm:$0xff]
    %v3088 = vld [vmem:[#allocation8 + $0x2a0] sm:$0xff]
    %v3089 = vld [vmem:[#allocation8 + $0x2a8] sm:$0xff]
    %v3090 = vld [vmem:[#allocation8 + $0x2b0] sm:$0xff]
    %v3091 = vld [vmem:[#allocation8 + $0x2b8] sm:$0xff]
    %v3092 = vld [vmem:[#allocation8 + $0x2c0] sm:$0xff]
    %v3093 = vld [vmem:[#allocation8 + $0x2c8] sm:$0xff]
    %v3094 = vld [vmem:[#allocation8 + $0x2d0] sm:$0xff]
    %v3095 = vld [vmem:[#allocation8 + $0x2d8] sm:$0xff]
    %v3096 = vld [vmem:[#allocation8 + $0x2e0] sm:$0xff]
    %v3097 = vld [vmem:[#allocation8 + $0x2e8] sm:$0xff]
    %v3098 = vld [vmem:[#allocation8 + $0x2f0] sm:$0xff]
    %v3099 = vld [vmem:[#allocation8 + $0x2f8] sm:$0xff]
    %v3100 = vld [vmem:[#allocation8 + $0x300] sm:$0xff]
    %v3101 = vld [vmem:[#allocation8 + $0x308] sm:$0xff]
    %v3102 = vld [vmem:[#allocation8 + $0x310] sm:$0xff]
    %v3103 = vld [vmem:[#allocation8 + $0x318] sm:$0xff]
    %v3104 = vld [vmem:[#allocation8 + $0x320] sm:$0xff]
    %v3105 = vld [vmem:[#allocation8 + $0x328] sm:$0xff]
    %v3106 = vld [vmem:[#allocation8 + $0x330] sm:$0xff]
    %v3107 = vld [vmem:[#allocation8 + $0x338] sm:$0xff]
    %v3108 = vld [vmem:[#allocation8 + $0x340] sm:$0xff]
    %v3109 = vld [vmem:[#allocation8 + $0x348] sm:$0xff]
    %v3110 = vld [vmem:[#allocation8 + $0x350] sm:$0xff]
    %v3111 = vld [vmem:[#allocation8 + $0x358] sm:$0xff]
    %v3112 = vld [vmem:[#allocation8 + $0x360] sm:$0xff]
    %v3113 = vld [vmem:[#allocation8 + $0x368] sm:$0xff]
    %v3114 = vld [vmem:[#allocation8 + $0x370] sm:$0xff]
    %v3115 = vld [vmem:[#allocation8 + $0x378] sm:$0xff]
    %v3116 = vld [vmem:[#allocation8 + $0x380] sm:$0xff]
    %v3117 = vld [vmem:[#allocation8 + $0x388] sm:$0xff]
    %v3118 = vld [vmem:[#allocation8 + $0x390] sm:$0xff]
    %v3119 = vld [vmem:[#allocation8 + $0x398] sm:$0xff]
    %v3120 = vld [vmem:[#allocation8 + $0x3a0] sm:$0xff]
    %v3121 = vld [vmem:[#allocation8 + $0x3a8] sm:$0xff]
    %v3122 = vld [vmem:[#allocation8 + $0x3b0] sm:$0xff]
    %v3123 = vld [vmem:[#allocation8 + $0x3b8] sm:$0xff]
    %v3124 = vld [vmem:[#allocation8 + $0x3c0] sm:$0xff]
    %v3125 = vld [vmem:[#allocation8 + $0x3c8] sm:$0xff]
    %v3126 = vld [vmem:[#allocation8 + $0x3d0] sm:$0xff]
    %v3127 = vld [vmem:[#allocation8 + $0x3d8] sm:$0xff]
    %v3128 = vld [vmem:[#allocation8 + $0x3e0] sm:$0xff]
    %v3129 = vld [vmem:[#allocation8 + $0x3e8] sm:$0xff]
    %v3130 = vld [vmem:[#allocation8 + $0x3f0] sm:$0xff]
    %v3131 = vld [vmem:[#allocation8 + $0x3f8] sm:$0xff]
    %v3132 = vld [vmem:[#allocation8 + $0x400] sm:$0xff]
    %v3133 = vld [vmem:[#allocation8 + $0x408] sm:$0xff]
    %v3134 = vld [vmem:[#allocation8 + $0x410] sm:$0xff]
    %v3135 = vld [vmem:[#allocation8 + $0x418] sm:$0xff]
    %v3136 = vld [vmem:[#allocation8 + $0x420] sm:$0xff]
    %v3137 = vld [vmem:[#allocation8 + $0x428] sm:$0xff]
    %v3138 = vld [vmem:[#allocation8 + $0x430] sm:$0xff]
    %v3139 = vld [vmem:[#allocation8 + $0x438] sm:$0xff]
    %v3140 = vld [vmem:[#allocation8 + $0x440] sm:$0xff]
    %v3141 = vld [vmem:[#allocation8 + $0x448] sm:$0xff]
    %v3142 = vld [vmem:[#allocation8 + $0x450] sm:$0xff]
    %v3143 = vld [vmem:[#allocation8 + $0x458] sm:$0xff]
    %v3144 = vld [vmem:[#allocation8 + $0x460] sm:$0xff]
    %v3145 = vld [vmem:[#allocation8 + $0x468] sm:$0xff]
    %v3146 = vld [vmem:[#allocation8 + $0x470] sm:$0xff]
    %v3147 = vld [vmem:[#allocation8 + $0x478] sm:$0xff]
    %v3148 = vld [vmem:[#allocation8 + $0x480] sm:$0xff]
    %v3149 = vld [vmem:[#allocation8 + $0x488] sm:$0xff]
    %v3150 = vld [vmem:[#allocation8 + $0x490] sm:$0xff]
    %v3151 = vld [vmem:[#allocation8 + $0x498] sm:$0xff]
    %v3152 = vld [vmem:[#allocation8 + $0x4a0] sm:$0xff]
    %v3153 = vld [vmem:[#allocation8 + $0x4a8] sm:$0xff]
    %v3154 = vld [vmem:[#allocation8 + $0x4b0] sm:$0xff]
    %v3155 = vld [vmem:[#allocation8 + $0x4b8] sm:$0xff]
    %v3156 = vld [vmem:[#allocation8 + $0x4c0] sm:$0xff]
    %v3157 = vld [vmem:[#allocation8 + $0x4c8] sm:$0xff]
    %v3158 = vld [vmem:[#allocation8 + $0x4d0] sm:$0xff]
    %v3159 = vld [vmem:[#allocation8 + $0x4d8] sm:$0xff]
    %v3160 = vld [vmem:[#allocation8 + $0x4e0] sm:$0xff]
    %v3161 = vld [vmem:[#allocation8 + $0x4e8] sm:$0xff]
    %v3162 = vld [vmem:[#allocation8 + $0x4f0] sm:$0xff]
    %v3163 = vld [vmem:[#allocation8 + $0x4f8] sm:$0xff]
    %v3164 = vld [vmem:[#allocation8 + $0x500] sm:$0xff]
    %v3165 = vld [vmem:[#allocation8 + $0x508] sm:$0xff]
    %v3166 = vld [vmem:[#allocation8 + $0x510] sm:$0xff]
    %v3167 = vld [vmem:[#allocation8 + $0x518] sm:$0xff]
    %v3168 = vld [vmem:[#allocation8 + $0x520] sm:$0xff]
    %v3169 = vld [vmem:[#allocation8 + $0x528] sm:$0xff]
    %v3170 = vld [vmem:[#allocation8 + $0x530] sm:$0xff]
    %v3171 = vld [vmem:[#allocation8 + $0x538] sm:$0xff]
    %v3172 = vld [vmem:[#allocation8 + $0x540] sm:$0xff]
    %v3173 = vld [vmem:[#allocation8 + $0x548] sm:$0xff]
    %v3174 = vld [vmem:[#allocation8 + $0x550] sm:$0xff]
    %v3175 = vld [vmem:[#allocation8 + $0x558] sm:$0xff]
    %v3176 = vld [vmem:[#allocation8 + $0x560] sm:$0xff]
    %v3177 = vld [vmem:[#allocation8 + $0x568] sm:$0xff]
    %v3178 = vld [vmem:[#allocation8 + $0x570] sm:$0xff]
    %v3179 = vld [vmem:[#allocation8 + $0x578] sm:$0xff]
    %v3180 = vld [vmem:[#allocation8 + $0x580] sm:$0xff]
    %v3181 = vld [vmem:[#allocation8 + $0x588] sm:$0xff]
    %v3182 = vld [vmem:[#allocation8 + $0x590] sm:$0xff]
    %v3183 = vld [vmem:[#allocation8 + $0x598] sm:$0xff]
    %v3184 = vld [vmem:[#allocation8 + $0x5a0] sm:$0xff]
    %v3185 = vld [vmem:[#allocation8 + $0x5a8] sm:$0xff]
    %v3186 = vld [vmem:[#allocation8 + $0x5b0] sm:$0xff]
    %v3187 = vld [vmem:[#allocation8 + $0x5b8] sm:$0xff]
    %v3188 = vld [vmem:[#allocation8 + $0x5c0] sm:$0xff]
    %v3189 = vld [vmem:[#allocation8 + $0x5c8] sm:$0xff]
    %v3190 = vld [vmem:[#allocation8 + $0x5d0] sm:$0xff]
    %v3191 = vld [vmem:[#allocation8 + $0x5d8] sm:$0xff]
    %v3192 = vld [vmem:[#allocation8 + $0x5e0] sm:$0xff]
    %v3193 = vld [vmem:[#allocation8 + $0x5e8] sm:$0xff]
    %v3194 = vld [vmem:[#allocation8 + $0x5f0] sm:$0xff]
    %v3195 = vld [vmem:[#allocation8 + $0x5f8] sm:$0xff]
    %v3196 = vld [vmem:[%s15] sm:$0x3f]
    %v3198 = vlaneseq
    %v3199 = vshrl.u32 %v3198, 7
    %v3200 = vsub.s32 0, %v3199
    %v3201 = vrot.slane %v3196, %v3200
    %v3202 = vlaneseq
    %v3203 = vshrl.u32 %v3202, 7
    %v3204 = vsub.s32 1, %v3203
    %v3205 = vrot.slane %v3196, %v3204
    %v3206 = vlaneseq
    %v3207 = vshrl.u32 %v3206, 7
    %v3208 = vsub.s32 2, %v3207
    %v3209 = vrot.slane %v3196, %v3208
    %v3210 = vlaneseq
    %v3211 = vshrl.u32 %v3210, 7
    %v3212 = vsub.s32 3, %v3211
    %v3213 = vrot.slane %v3196, %v3212
    %v3214 = vlaneseq
    %v3215 = vshrl.u32 %v3214, 7
    %v3216 = vsub.s32 4, %v3215
    %v3217 = vrot.slane %v3196, %v3216
    %v3218 = vlaneseq
    %v3219 = vshrl.u32 %v3218, 7
    %v3220 = vsub.s32 5, %v3219
    %v3221 = vrot.slane %v3196, %v3220
    %v3420 = vunpack.c.l.b16 %v3004
    %v3421 = vunpack.c.h.b16 %v3004
    %v3422 = vunpack.c.l.b16 %v3005
    %v3423 = vunpack.c.h.b16 %v3005
    %v3424 = vunpack.c.l.b16 %v3006
    %v3425 = vunpack.c.h.b16 %v3006
    %v3426 = vunpack.c.l.b16 %v3007
    %v3427 = vunpack.c.h.b16 %v3007
    %v3428 = vunpack.c.l.b16 %v3008
    %v3429 = vunpack.c.h.b16 %v3008
    %v3430 = vunpack.c.l.b16 %v3009
    %v3431 = vunpack.c.h.b16 %v3009
    %v3432 = vunpack.c.l.b16 %v3010
    %v3433 = vunpack.c.h.b16 %v3010
    %v3434 = vunpack.c.l.b16 %v3011
    %v3435 = vunpack.c.h.b16 %v3011
    %v3436 = vunpack.c.l.b16 %v3012
    %v3437 = vunpack.c.h.b16 %v3012
    %v3438 = vunpack.c.l.b16 %v3013
    %v3439 = vunpack.c.h.b16 %v3013
    %v3440 = vunpack.c.l.b16 %v3014
    %v3441 = vunpack.c.h.b16 %v3014
    %v3442 = vunpack.c.l.b16 %v3015
    %v3443 = vunpack.c.h.b16 %v3015
    %v3444 = vunpack.c.l.b16 %v3016
    %v3445 = vunpack.c.h.b16 %v3016
    %v3446 = vunpack.c.l.b16 %v3017
    %v3447 = vunpack.c.h.b16 %v3017
    %v3448 = vunpack.c.l.b16 %v3018
    %v3449 = vunpack.c.h.b16 %v3018
    %v3450 = vunpack.c.l.b16 %v3019
    %v3451 = vunpack.c.h.b16 %v3019
    %v3452 = vunpack.c.l.b16 %v3020
    %v3453 = vunpack.c.h.b16 %v3020
    %v3454 = vunpack.c.l.b16 %v3021
    %v3455 = vunpack.c.h.b16 %v3021
    %v3456 = vunpack.c.l.b16 %v3022
    %v3457 = vunpack.c.h.b16 %v3022
    %v3458 = vunpack.c.l.b16 %v3023
    %v3459 = vunpack.c.h.b16 %v3023
    %v3460 = vunpack.c.l.b16 %v3024
    %v3461 = vunpack.c.h.b16 %v3024
    %v3462 = vunpack.c.l.b16 %v3025
    %v3463 = vunpack.c.h.b16 %v3025
    %v3464 = vunpack.c.l.b16 %v3026
    %v3465 = vunpack.c.h.b16 %v3026
    %v3466 = vunpack.c.l.b16 %v3027
    %v3467 = vunpack.c.h.b16 %v3027
    %v3468 = vunpack.c.l.b16 %v3028
    %v3469 = vunpack.c.h.b16 %v3028
    %v3470 = vunpack.c.l.b16 %v3029
    %v3471 = vunpack.c.h.b16 %v3029
    %v3472 = vunpack.c.l.b16 %v3030
    %v3473 = vunpack.c.h.b16 %v3030
    %v3474 = vunpack.c.l.b16 %v3031
    %v3475 = vunpack.c.h.b16 %v3031
    %v3476 = vunpack.c.l.b16 %v3032
    %v3477 = vunpack.c.h.b16 %v3032
    %v3478 = vunpack.c.l.b16 %v3033
    %v3479 = vunpack.c.h.b16 %v3033
    %v3480 = vunpack.c.l.b16 %v3034
    %v3481 = vunpack.c.h.b16 %v3034
    %v3482 = vunpack.c.l.b16 %v3035
    %v3483 = vunpack.c.h.b16 %v3035
    %v3484 = vunpack.c.l.b16 %v3036
    %v3485 = vunpack.c.h.b16 %v3036
    %v3486 = vunpack.c.l.b16 %v3037
    %v3487 = vunpack.c.h.b16 %v3037
    %v3488 = vunpack.c.l.b16 %v3038
    %v3489 = vunpack.c.h.b16 %v3038
    %v3490 = vunpack.c.l.b16 %v3039
    %v3491 = vunpack.c.h.b16 %v3039
    %v3492 = vunpack.c.l.b16 %v3040
    %v3493 = vunpack.c.h.b16 %v3040
    %v3494 = vunpack.c.l.b16 %v3041
    %v3495 = vunpack.c.h.b16 %v3041
    %v3496 = vunpack.c.l.b16 %v3042
    %v3497 = vunpack.c.h.b16 %v3042
    %v3498 = vunpack.c.l.b16 %v3043
    %v3499 = vunpack.c.h.b16 %v3043
    %v3500 = vunpack.c.l.b16 %v3044
    %v3501 = vunpack.c.h.b16 %v3044
    %v3502 = vunpack.c.l.b16 %v3045
    %v3503 = vunpack.c.h.b16 %v3045
    %v3504 = vunpack.c.l.b16 %v3046
    %v3505 = vunpack.c.h.b16 %v3046
    %v3506 = vunpack.c.l.b16 %v3047
    %v3507 = vunpack.c.h.b16 %v3047
    %v3508 = vunpack.c.l.b16 %v3048
    %v3509 = vunpack.c.h.b16 %v3048
    %v3510 = vunpack.c.l.b16 %v3049
    %v3511 = vunpack.c.h.b16 %v3049
    %v3512 = vunpack.c.l.b16 %v3050
    %v3513 = vunpack.c.h.b16 %v3050
    %v3514 = vunpack.c.l.b16 %v3051
    %v3515 = vunpack.c.h.b16 %v3051
    %v3516 = vunpack.c.l.b16 %v3052
    %v3517 = vunpack.c.h.b16 %v3052
    %v3518 = vunpack.c.l.b16 %v3053
    %v3519 = vunpack.c.h.b16 %v3053
    %v3520 = vunpack.c.l.b16 %v3054
    %v3521 = vunpack.c.h.b16 %v3054
    %v3522 = vunpack.c.l.b16 %v3055
    %v3523 = vunpack.c.h.b16 %v3055
    %v3524 = vunpack.c.l.b16 %v3056
    %v3525 = vunpack.c.h.b16 %v3056
    %v3526 = vunpack.c.l.b16 %v3057
    %v3527 = vunpack.c.h.b16 %v3057
    %v3528 = vunpack.c.l.b16 %v3058
    %v3529 = vunpack.c.h.b16 %v3058
    %v3530 = vunpack.c.l.b16 %v3059
    %v3531 = vunpack.c.h.b16 %v3059
    %v3532 = vunpack.c.l.b16 %v3060
    %v3533 = vunpack.c.h.b16 %v3060
    %v3534 = vunpack.c.l.b16 %v3061
    %v3535 = vunpack.c.h.b16 %v3061
    %v3536 = vunpack.c.l.b16 %v3062
    %v3537 = vunpack.c.h.b16 %v3062
    %v3538 = vunpack.c.l.b16 %v3063
    %v3539 = vunpack.c.h.b16 %v3063
    %v3540 = vunpack.c.l.b16 %v3064
    %v3541 = vunpack.c.h.b16 %v3064
    %v3542 = vunpack.c.l.b16 %v3065
    %v3543 = vunpack.c.h.b16 %v3065
    %v3544 = vunpack.c.l.b16 %v3066
    %v3545 = vunpack.c.h.b16 %v3066
    %v3546 = vunpack.c.l.b16 %v3067
    %v3547 = vunpack.c.h.b16 %v3067
    %v3548 = vunpack.c.l.b16 %v3068
    %v3549 = vunpack.c.h.b16 %v3068
    %v3550 = vunpack.c.l.b16 %v3069
    %v3551 = vunpack.c.h.b16 %v3069
    %v3552 = vunpack.c.l.b16 %v3070
    %v3553 = vunpack.c.h.b16 %v3070
    %v3554 = vunpack.c.l.b16 %v3071
    %v3555 = vunpack.c.h.b16 %v3071
    %v3556 = vunpack.c.l.b16 %v3072
    %v3557 = vunpack.c.h.b16 %v3072
    %v3558 = vunpack.c.l.b16 %v3073
    %v3559 = vunpack.c.h.b16 %v3073
    %v3560 = vunpack.c.l.b16 %v3074
    %v3561 = vunpack.c.h.b16 %v3074
    %v3562 = vunpack.c.l.b16 %v3075
    %v3563 = vunpack.c.h.b16 %v3075
    %v3564 = vunpack.c.l.b16 %v3076
    %v3565 = vunpack.c.h.b16 %v3076
    %v3566 = vunpack.c.l.b16 %v3077
    %v3567 = vunpack.c.h.b16 %v3077
    %v3568 = vunpack.c.l.b16 %v3078
    %v3569 = vunpack.c.h.b16 %v3078
    %v3570 = vunpack.c.l.b16 %v3079
    %v3571 = vunpack.c.h.b16 %v3079
    %v3572 = vunpack.c.l.b16 %v3080
    %v3573 = vunpack.c.h.b16 %v3080
    %v3574 = vunpack.c.l.b16 %v3081
    %v3575 = vunpack.c.h.b16 %v3081
    %v3576 = vunpack.c.l.b16 %v3082
    %v3577 = vunpack.c.h.b16 %v3082
    %v3578 = vunpack.c.l.b16 %v3083
    %v3579 = vunpack.c.h.b16 %v3083
    %v3580 = vunpack.c.l.b16 %v3084
    %v3581 = vunpack.c.h.b16 %v3084
    %v3582 = vunpack.c.l.b16 %v3085
    %v3583 = vunpack.c.h.b16 %v3085
    %v3584 = vunpack.c.l.b16 %v3086
    %v3585 = vunpack.c.h.b16 %v3086
    %v3586 = vunpack.c.l.b16 %v3087
    %v3587 = vunpack.c.h.b16 %v3087
    %v3588 = vunpack.c.l.b16 %v3088
    %v3589 = vunpack.c.h.b16 %v3088
    %v3590 = vunpack.c.l.b16 %v3089
    %v3591 = vunpack.c.h.b16 %v3089
    %v3592 = vunpack.c.l.b16 %v3090
    %v3593 = vunpack.c.h.b16 %v3090
    %v3594 = vunpack.c.l.b16 %v3091
    %v3595 = vunpack.c.h.b16 %v3091
    %v3596 = vunpack.c.l.b16 %v3092
    %v3597 = vunpack.c.h.b16 %v3092
    %v3598 = vunpack.c.l.b16 %v3093
    %v3599 = vunpack.c.h.b16 %v3093
    %v3600 = vunpack.c.l.b16 %v3094
    %v3601 = vunpack.c.h.b16 %v3094
    %v3602 = vunpack.c.l.b16 %v3095
    %v3603 = vunpack.c.h.b16 %v3095
    %v3604 = vunpack.c.l.b16 %v3096
    %v3605 = vunpack.c.h.b16 %v3096
    %v3606 = vunpack.c.l.b16 %v3097
    %v3607 = vunpack.c.h.b16 %v3097
    %v3608 = vunpack.c.l.b16 %v3098
    %v3609 = vunpack.c.h.b16 %v3098
    %v3610 = vunpack.c.l.b16 %v3099
    %v3611 = vunpack.c.h.b16 %v3099
    %v3612 = vunpack.c.l.b16 %v3100
    %v3613 = vunpack.c.h.b16 %v3100
    %v3614 = vunpack.c.l.b16 %v3101
    %v3615 = vunpack.c.h.b16 %v3101
    %v3616 = vunpack.c.l.b16 %v3102
    %v3617 = vunpack.c.h.b16 %v3102
    %v3618 = vunpack.c.l.b16 %v3103
    %v3619 = vunpack.c.h.b16 %v3103
    %v3620 = vunpack.c.l.b16 %v3104
    %v3621 = vunpack.c.h.b16 %v3104
    %v3622 = vunpack.c.l.b16 %v3105
    %v3623 = vunpack.c.h.b16 %v3105
    %v3624 = vunpack.c.l.b16 %v3106
    %v3625 = vunpack.c.h.b16 %v3106
    %v3626 = vunpack.c.l.b16 %v3107
    %v3627 = vunpack.c.h.b16 %v3107
    %v3628 = vunpack.c.l.b16 %v3108
    %v3629 = vunpack.c.h.b16 %v3108
    %v3630 = vunpack.c.l.b16 %v3109
    %v3631 = vunpack.c.h.b16 %v3109
    %v3632 = vunpack.c.l.b16 %v3110
    %v3633 = vunpack.c.h.b16 %v3110
    %v3634 = vunpack.c.l.b16 %v3111
    %v3635 = vunpack.c.h.b16 %v3111
    %v3636 = vunpack.c.l.b16 %v3112
    %v3637 = vunpack.c.h.b16 %v3112
    %v3638 = vunpack.c.l.b16 %v3113
    %v3639 = vunpack.c.h.b16 %v3113
    %v3640 = vunpack.c.l.b16 %v3114
    %v3641 = vunpack.c.h.b16 %v3114
    %v3642 = vunpack.c.l.b16 %v3115
    %v3643 = vunpack.c.h.b16 %v3115
    %v3644 = vunpack.c.l.b16 %v3116
    %v3645 = vunpack.c.h.b16 %v3116
    %v3646 = vunpack.c.l.b16 %v3117
    %v3647 = vunpack.c.h.b16 %v3117
    %v3648 = vunpack.c.l.b16 %v3118
    %v3649 = vunpack.c.h.b16 %v3118
    %v3650 = vunpack.c.l.b16 %v3119
    %v3651 = vunpack.c.h.b16 %v3119
    %v3652 = vunpack.c.l.b16 %v3120
    %v3653 = vunpack.c.h.b16 %v3120
    %v3654 = vunpack.c.l.b16 %v3121
    %v3655 = vunpack.c.h.b16 %v3121
    %v3656 = vunpack.c.l.b16 %v3122
    %v3657 = vunpack.c.h.b16 %v3122
    %v3658 = vunpack.c.l.b16 %v3123
    %v3659 = vunpack.c.h.b16 %v3123
    %v3660 = vunpack.c.l.b16 %v3124
    %v3661 = vunpack.c.h.b16 %v3124
    %v3662 = vunpack.c.l.b16 %v3125
    %v3663 = vunpack.c.h.b16 %v3125
    %v3664 = vunpack.c.l.b16 %v3126
    %v3665 = vunpack.c.h.b16 %v3126
    %v3666 = vunpack.c.l.b16 %v3127
    %v3667 = vunpack.c.h.b16 %v3127
    %v3668 = vunpack.c.l.b16 %v3128
    %v3669 = vunpack.c.h.b16 %v3128
    %v3670 = vunpack.c.l.b16 %v3129
    %v3671 = vunpack.c.h.b16 %v3129
    %v3672 = vunpack.c.l.b16 %v3130
    %v3673 = vunpack.c.h.b16 %v3130
    %v3674 = vunpack.c.l.b16 %v3131
    %v3675 = vunpack.c.h.b16 %v3131
    %v3676 = vunpack.c.l.b16 %v3132
    %v3677 = vunpack.c.h.b16 %v3132
    %v3678 = vunpack.c.l.b16 %v3133
    %v3679 = vunpack.c.h.b16 %v3133
    %v3680 = vunpack.c.l.b16 %v3134
    %v3681 = vunpack.c.h.b16 %v3134
    %v3682 = vunpack.c.l.b16 %v3135
    %v3683 = vunpack.c.h.b16 %v3135
    %v3684 = vunpack.c.l.b16 %v3136
    %v3685 = vunpack.c.h.b16 %v3136
    %v3686 = vunpack.c.l.b16 %v3137
    %v3687 = vunpack.c.h.b16 %v3137
    %v3688 = vunpack.c.l.b16 %v3138
    %v3689 = vunpack.c.h.b16 %v3138
    %v3690 = vunpack.c.l.b16 %v3139
    %v3691 = vunpack.c.h.b16 %v3139
    %v3692 = vunpack.c.l.b16 %v3140
    %v3693 = vunpack.c.h.b16 %v3140
    %v3694 = vunpack.c.l.b16 %v3141
    %v3695 = vunpack.c.h.b16 %v3141
    %v3696 = vunpack.c.l.b16 %v3142
    %v3697 = vunpack.c.h.b16 %v3142
    %v3698 = vunpack.c.l.b16 %v3143
    %v3699 = vunpack.c.h.b16 %v3143
    %v3700 = vunpack.c.l.b16 %v3144
    %v3701 = vunpack.c.h.b16 %v3144
    %v3702 = vunpack.c.l.b16 %v3145
    %v3703 = vunpack.c.h.b16 %v3145
    %v3704 = vunpack.c.l.b16 %v3146
    %v3705 = vunpack.c.h.b16 %v3146
    %v3706 = vunpack.c.l.b16 %v3147
    %v3707 = vunpack.c.h.b16 %v3147
    %v3708 = vunpack.c.l.b16 %v3148
    %v3709 = vunpack.c.h.b16 %v3148
    %v3710 = vunpack.c.l.b16 %v3149
    %v3711 = vunpack.c.h.b16 %v3149
    %v3712 = vunpack.c.l.b16 %v3150
    %v3713 = vunpack.c.h.b16 %v3150
    %v3714 = vunpack.c.l.b16 %v3151
    %v3715 = vunpack.c.h.b16 %v3151
    %v3716 = vunpack.c.l.b16 %v3152
    %v3717 = vunpack.c.h.b16 %v3152
    %v3718 = vunpack.c.l.b16 %v3153
    %v3719 = vunpack.c.h.b16 %v3153
    %v3720 = vunpack.c.l.b16 %v3154
    %v3721 = vunpack.c.h.b16 %v3154
    %v3722 = vunpack.c.l.b16 %v3155
    %v3723 = vunpack.c.h.b16 %v3155
    %v3724 = vunpack.c.l.b16 %v3156
    %v3725 = vunpack.c.h.b16 %v3156
    %v3726 = vunpack.c.l.b16 %v3157
    %v3727 = vunpack.c.h.b16 %v3157
    %v3728 = vunpack.c.l.b16 %v3158
    %v3729 = vunpack.c.h.b16 %v3158
    %v3730 = vunpack.c.l.b16 %v3159
    %v3731 = vunpack.c.h.b16 %v3159
    %v3732 = vunpack.c.l.b16 %v3160
    %v3733 = vunpack.c.h.b16 %v3160
    %v3734 = vunpack.c.l.b16 %v3161
    %v3735 = vunpack.c.h.b16 %v3161
    %v3736 = vunpack.c.l.b16 %v3162
    %v3737 = vunpack.c.h.b16 %v3162
    %v3738 = vunpack.c.l.b16 %v3163
    %v3739 = vunpack.c.h.b16 %v3163
    %v3740 = vunpack.c.l.b16 %v3164
    %v3741 = vunpack.c.h.b16 %v3164
    %v3742 = vunpack.c.l.b16 %v3165
    %v3743 = vunpack.c.h.b16 %v3165
    %v3744 = vunpack.c.l.b16 %v3166
    %v3745 = vunpack.c.h.b16 %v3166
    %v3746 = vunpack.c.l.b16 %v3167
    %v3747 = vunpack.c.h.b16 %v3167
    %v3748 = vunpack.c.l.b16 %v3168
    %v3749 = vunpack.c.h.b16 %v3168
    %v3750 = vunpack.c.l.b16 %v3169
    %v3751 = vunpack.c.h.b16 %v3169
    %v3752 = vunpack.c.l.b16 %v3170
    %v3753 = vunpack.c.h.b16 %v3170
    %v3754 = vunpack.c.l.b16 %v3171
    %v3755 = vunpack.c.h.b16 %v3171
    %v3756 = vunpack.c.l.b16 %v3172
    %v3757 = vunpack.c.h.b16 %v3172
    %v3758 = vunpack.c.l.b16 %v3173
    %v3759 = vunpack.c.h.b16 %v3173
    %v3760 = vunpack.c.l.b16 %v3174
    %v3761 = vunpack.c.h.b16 %v3174
    %v3762 = vunpack.c.l.b16 %v3175
    %v3763 = vunpack.c.h.b16 %v3175
    %v3764 = vunpack.c.l.b16 %v3176
    %v3765 = vunpack.c.h.b16 %v3176
    %v3766 = vunpack.c.l.b16 %v3177
    %v3767 = vunpack.c.h.b16 %v3177
    %v3768 = vunpack.c.l.b16 %v3178
    %v3769 = vunpack.c.h.b16 %v3178
    %v3770 = vunpack.c.l.b16 %v3179
    %v3771 = vunpack.c.h.b16 %v3179
    %v3772 = vunpack.c.l.b16 %v3180
    %v3773 = vunpack.c.h.b16 %v3180
    %v3774 = vunpack.c.l.b16 %v3181
    %v3775 = vunpack.c.h.b16 %v3181
    %v3776 = vunpack.c.l.b16 %v3182
    %v3777 = vunpack.c.h.b16 %v3182
    %v3778 = vunpack.c.l.b16 %v3183
    %v3779 = vunpack.c.h.b16 %v3183
    %v3780 = vunpack.c.l.b16 %v3184
    %v3781 = vunpack.c.h.b16 %v3184
    %v3782 = vunpack.c.l.b16 %v3185
    %v3783 = vunpack.c.h.b16 %v3185
    %v3784 = vunpack.c.l.b16 %v3186
    %v3785 = vunpack.c.h.b16 %v3186
    %v3786 = vunpack.c.l.b16 %v3187
    %v3787 = vunpack.c.h.b16 %v3187
    %v3788 = vunpack.c.l.b16 %v3188
    %v3789 = vunpack.c.h.b16 %v3188
    %v3790 = vunpack.c.l.b16 %v3189
    %v3791 = vunpack.c.h.b16 %v3189
    %v3792 = vunpack.c.l.b16 %v3190
    %v3793 = vunpack.c.h.b16 %v3190
    %v3794 = vunpack.c.l.b16 %v3191
    %v3795 = vunpack.c.h.b16 %v3191
    %v3796 = vunpack.c.l.b16 %v3192
    %v3797 = vunpack.c.h.b16 %v3192
    %v3798 = vunpack.c.l.b16 %v3193
    %v3799 = vunpack.c.h.b16 %v3193
    %v3800 = vunpack.c.l.b16 %v3194
    %v3801 = vunpack.c.h.b16 %v3194
    %v3802 = vunpack.c.l.b16 %v3195
    %v3803 = vunpack.c.h.b16 %v3195
    %v3804 = vpack.c.b16 %v3426, %v3420
    %v3805 = vpack.c.b16 %v3427, %v3421
    %v3806 = vpack.c.b16 %v3428, %v3422
    %v3807 = vpack.c.b16 %v3429, %v3423
    %v3808 = vpack.c.b16 %v3430, %v3424
    %v3809 = vpack.c.b16 %v3431, %v3425
    %v3810 = vpack.c.b16 %v3438, %v3432
    %v3811 = vpack.c.b16 %v3439, %v3433
    %v3812 = vpack.c.b16 %v3440, %v3434
    %v3813 = vpack.c.b16 %v3441, %v3435
    %v3814 = vpack.c.b16 %v3442, %v3436
    %v3815 = vpack.c.b16 %v3443, %v3437
    %v3816 = vpack.c.b16 %v3450, %v3444
    %v3817 = vpack.c.b16 %v3451, %v3445
    %v3818 = vpack.c.b16 %v3452, %v3446
    %v3819 = vpack.c.b16 %v3453, %v3447
    %v3820 = vpack.c.b16 %v3454, %v3448
    %v3821 = vpack.c.b16 %v3455, %v3449
    %v3822 = vpack.c.b16 %v3462, %v3456
    %v3823 = vpack.c.b16 %v3463, %v3457
    %v3824 = vpack.c.b16 %v3464, %v3458
    %v3825 = vpack.c.b16 %v3465, %v3459
    %v3826 = vpack.c.b16 %v3466, %v3460
    %v3827 = vpack.c.b16 %v3467, %v3461
    %v3828 = vpack.c.b16 %v3474, %v3468
    %v3829 = vpack.c.b16 %v3475, %v3469
    %v3830 = vpack.c.b16 %v3476, %v3470
    %v3831 = vpack.c.b16 %v3477, %v3471
    %v3832 = vpack.c.b16 %v3478, %v3472
    %v3833 = vpack.c.b16 %v3479, %v3473
    %v3834 = vpack.c.b16 %v3486, %v3480
    %v3835 = vpack.c.b16 %v3487, %v3481
    %v3836 = vpack.c.b16 %v3488, %v3482
    %v3837 = vpack.c.b16 %v3489, %v3483
    %v3838 = vpack.c.b16 %v3490, %v3484
    %v3839 = vpack.c.b16 %v3491, %v3485
    %v3840 = vpack.c.b16 %v3498, %v3492
    %v3841 = vpack.c.b16 %v3499, %v3493
    %v3842 = vpack.c.b16 %v3500, %v3494
    %v3843 = vpack.c.b16 %v3501, %v3495
    %v3844 = vpack.c.b16 %v3502, %v3496
    %v3845 = vpack.c.b16 %v3503, %v3497
    %v3846 = vpack.c.b16 %v3510, %v3504
    %v3847 = vpack.c.b16 %v3511, %v3505
    %v3848 = vpack.c.b16 %v3512, %v3506
    %v3849 = vpack.c.b16 %v3513, %v3507
    %v3850 = vpack.c.b16 %v3514, %v3508
    %v3851 = vpack.c.b16 %v3515, %v3509
    %v3852 = vpack.c.b16 %v3522, %v3516
    %v3853 = vpack.c.b16 %v3523, %v3517
    %v3854 = vpack.c.b16 %v3524, %v3518
    %v3855 = vpack.c.b16 %v3525, %v3519
    %v3856 = vpack.c.b16 %v3526, %v3520
    %v3857 = vpack.c.b16 %v3527, %v3521
    %v3858 = vpack.c.b16 %v3534, %v3528
    %v3859 = vpack.c.b16 %v3535, %v3529
    %v3860 = vpack.c.b16 %v3536, %v3530
    %v3861 = vpack.c.b16 %v3537, %v3531
    %v3862 = vpack.c.b16 %v3538, %v3532
    %v3863 = vpack.c.b16 %v3539, %v3533
    %v3864 = vpack.c.b16 %v3546, %v3540
    %v3865 = vpack.c.b16 %v3547, %v3541
    %v3866 = vpack.c.b16 %v3548, %v3542
    %v3867 = vpack.c.b16 %v3549, %v3543
    %v3868 = vpack.c.b16 %v3550, %v3544
    %v3869 = vpack.c.b16 %v3551, %v3545
    %v3870 = vpack.c.b16 %v3558, %v3552
    %v3871 = vpack.c.b16 %v3559, %v3553
    %v3872 = vpack.c.b16 %v3560, %v3554
    %v3873 = vpack.c.b16 %v3561, %v3555
    %v3874 = vpack.c.b16 %v3562, %v3556
    %v3875 = vpack.c.b16 %v3563, %v3557
    %v3876 = vpack.c.b16 %v3570, %v3564
    %v3877 = vpack.c.b16 %v3571, %v3565
    %v3878 = vpack.c.b16 %v3572, %v3566
    %v3879 = vpack.c.b16 %v3573, %v3567
    %v3880 = vpack.c.b16 %v3574, %v3568
    %v3881 = vpack.c.b16 %v3575, %v3569
    %v3882 = vpack.c.b16 %v3582, %v3576
    %v3883 = vpack.c.b16 %v3583, %v3577
    %v3884 = vpack.c.b16 %v3584, %v3578
    %v3885 = vpack.c.b16 %v3585, %v3579
    %v3886 = vpack.c.b16 %v3586, %v3580
    %v3887 = vpack.c.b16 %v3587, %v3581
    %v3888 = vpack.c.b16 %v3594, %v3588
    %v3889 = vpack.c.b16 %v3595, %v3589
    %v3890 = vpack.c.b16 %v3596, %v3590
    %v3891 = vpack.c.b16 %v3597, %v3591
    %v3892 = vpack.c.b16 %v3598, %v3592
    %v3893 = vpack.c.b16 %v3599, %v3593
    %v3894 = vpack.c.b16 %v3606, %v3600
    %v3895 = vpack.c.b16 %v3607, %v3601
    %v3896 = vpack.c.b16 %v3608, %v3602
    %v3897 = vpack.c.b16 %v3609, %v3603
    %v3898 = vpack.c.b16 %v3610, %v3604
    %v3899 = vpack.c.b16 %v3611, %v3605
    %v3900 = vpack.c.b16 %v3618, %v3612
    %v3901 = vpack.c.b16 %v3619, %v3613
    %v3902 = vpack.c.b16 %v3620, %v3614
    %v3903 = vpack.c.b16 %v3621, %v3615
    %v3904 = vpack.c.b16 %v3622, %v3616
    %v3905 = vpack.c.b16 %v3623, %v3617
    %v3906 = vpack.c.b16 %v3630, %v3624
    %v3907 = vpack.c.b16 %v3631, %v3625
    %v3908 = vpack.c.b16 %v3632, %v3626
    %v3909 = vpack.c.b16 %v3633, %v3627
    %v3910 = vpack.c.b16 %v3634, %v3628
    %v3911 = vpack.c.b16 %v3635, %v3629
    %v3912 = vpack.c.b16 %v3642, %v3636
    %v3913 = vpack.c.b16 %v3643, %v3637
    %v3914 = vpack.c.b16 %v3644, %v3638
    %v3915 = vpack.c.b16 %v3645, %v3639
    %v3916 = vpack.c.b16 %v3646, %v3640
    %v3917 = vpack.c.b16 %v3647, %v3641
    %v3918 = vpack.c.b16 %v3654, %v3648
    %v3919 = vpack.c.b16 %v3655, %v3649
    %v3920 = vpack.c.b16 %v3656, %v3650
    %v3921 = vpack.c.b16 %v3657, %v3651
    %v3922 = vpack.c.b16 %v3658, %v3652
    %v3923 = vpack.c.b16 %v3659, %v3653
    %v3924 = vpack.c.b16 %v3666, %v3660
    %v3925 = vpack.c.b16 %v3667, %v3661
    %v3926 = vpack.c.b16 %v3668, %v3662
    %v3927 = vpack.c.b16 %v3669, %v3663
    %v3928 = vpack.c.b16 %v3670, %v3664
    %v3929 = vpack.c.b16 %v3671, %v3665
    %v3930 = vpack.c.b16 %v3678, %v3672
    %v3931 = vpack.c.b16 %v3679, %v3673
    %v3932 = vpack.c.b16 %v3680, %v3674
    %v3933 = vpack.c.b16 %v3681, %v3675
    %v3934 = vpack.c.b16 %v3682, %v3676
    %v3935 = vpack.c.b16 %v3683, %v3677
    %v3936 = vpack.c.b16 %v3690, %v3684
    %v3937 = vpack.c.b16 %v3691, %v3685
    %v3938 = vpack.c.b16 %v3692, %v3686
    %v3939 = vpack.c.b16 %v3693, %v3687
    %v3940 = vpack.c.b16 %v3694, %v3688
    %v3941 = vpack.c.b16 %v3695, %v3689
    %v3942 = vpack.c.b16 %v3702, %v3696
    %v3943 = vpack.c.b16 %v3703, %v3697
    %v3944 = vpack.c.b16 %v3704, %v3698
    %v3945 = vpack.c.b16 %v3705, %v3699
    %v3946 = vpack.c.b16 %v3706, %v3700
    %v3947 = vpack.c.b16 %v3707, %v3701
    %v3948 = vpack.c.b16 %v3714, %v3708
    %v3949 = vpack.c.b16 %v3715, %v3709
    %v3950 = vpack.c.b16 %v3716, %v3710
    %v3951 = vpack.c.b16 %v3717, %v3711
    %v3952 = vpack.c.b16 %v3718, %v3712
    %v3953 = vpack.c.b16 %v3719, %v3713
    %v3954 = vpack.c.b16 %v3726, %v3720
    %v3955 = vpack.c.b16 %v3727, %v3721
    %v3956 = vpack.c.b16 %v3728, %v3722
    %v3957 = vpack.c.b16 %v3729, %v3723
    %v3958 = vpack.c.b16 %v3730, %v3724
    %v3959 = vpack.c.b16 %v3731, %v3725
    %v3960 = vpack.c.b16 %v3738, %v3732
    %v3961 = vpack.c.b16 %v3739, %v3733
    %v3962 = vpack.c.b16 %v3740, %v3734
    %v3963 = vpack.c.b16 %v3741, %v3735
    %v3964 = vpack.c.b16 %v3742, %v3736
    %v3965 = vpack.c.b16 %v3743, %v3737
    %v3966 = vpack.c.b16 %v3750, %v3744
    %v3967 = vpack.c.b16 %v3751, %v3745
    %v3968 = vpack.c.b16 %v3752, %v3746
    %v3969 = vpack.c.b16 %v3753, %v3747
    %v3970 = vpack.c.b16 %v3754, %v3748
    %v3971 = vpack.c.b16 %v3755, %v3749
    %v3972 = vpack.c.b16 %v3762, %v3756
    %v3973 = vpack.c.b16 %v3763, %v3757
    %v3974 = vpack.c.b16 %v3764, %v3758
    %v3975 = vpack.c.b16 %v3765, %v3759
    %v3976 = vpack.c.b16 %v3766, %v3760
    %v3977 = vpack.c.b16 %v3767, %v3761
    %v3978 = vpack.c.b16 %v3774, %v3768
    %v3979 = vpack.c.b16 %v3775, %v3769
    %v3980 = vpack.c.b16 %v3776, %v3770
    %v3981 = vpack.c.b16 %v3777, %v3771
    %v3982 = vpack.c.b16 %v3778, %v3772
    %v3983 = vpack.c.b16 %v3779, %v3773
    %v3984 = vpack.c.b16 %v3786, %v3780
    %v3985 = vpack.c.b16 %v3787, %v3781
    %v3986 = vpack.c.b16 %v3788, %v3782
    %v3987 = vpack.c.b16 %v3789, %v3783
    %v3988 = vpack.c.b16 %v3790, %v3784
    %v3989 = vpack.c.b16 %v3791, %v3785
    %v3990 = vpack.c.b16 %v3798, %v3792
    %v3991 = vpack.c.b16 %v3799, %v3793
    %v3992 = vpack.c.b16 %v3800, %v3794
    %v3993 = vpack.c.b16 %v3801, %v3795
    %v3994 = vpack.c.b16 %v3802, %v3796
    %v3995 = vpack.c.b16 %v3803, %v3797
    %4188 = vmatprep.subr.bf16.mxu0 %v3805
    %4189 = vmatpush1.bf16.msra.mxu0 %v3804
    %4190 = vmatprep.subr.bf16.mxu0 %v3811
    %4191 = vmatpush1.bf16.msra.mxu0 %v3810
    %4192 = vmatprep.subr.bf16.mxu0 %v3817
    %4193 = vmatpush1.bf16.msra.mxu0 %v3816
    %4194 = vmatprep.subr.bf16.mxu0 %v3823
    %4195 = vmatpush1.bf16.msra.mxu0 %v3822
    %4196 = vmatprep.subr.bf16.mxu0 %v3829
    %4197 = vmatpush1.bf16.msra.mxu0 %v3828
    %4198 = vmatprep.subr.bf16.mxu0 %v3835
    %4199 = vmatpush1.bf16.msra.mxu0 %v3834
    %4200 = vmatprep.subr.bf16.mxu0 %v3841
    %4201 = vmatpush1.bf16.msra.mxu0 %v3840
    %4202 = vmatprep.subr.bf16.mxu0 %v3847
    %4203 = vmatpush1.bf16.msra.mxu0 %v3846
    %4204 = vmatprep.subr.bf16.mxu0 %v3853
    %4205 = vmatpush1.bf16.msra.mxu0 %v3852
    %4206 = vmatprep.subr.bf16.mxu0 %v3859
    %4207 = vmatpush1.bf16.msra.mxu0 %v3858
    %4208 = vmatprep.subr.bf16.mxu0 %v3865
    %4209 = vmatpush1.bf16.msra.mxu0 %v3864
    %4210 = vmatprep.subr.bf16.mxu0 %v3871
    %4211 = vmatpush1.bf16.msra.mxu0 %v3870
    %4212 = vmatprep.subr.bf16.mxu0 %v3877
    %4213 = vmatpush1.bf16.msra.mxu0 %v3876
    %4214 = vmatprep.subr.bf16.mxu0 %v3883
    %4215 = vmatpush1.bf16.msra.mxu0 %v3882
    %4216 = vmatprep.subr.bf16.mxu0 %v3889
    %4217 = vmatpush1.bf16.msra.mxu0 %v3888
    %4218 = vmatprep.subr.bf16.mxu0 %v3895
    %4219 = vmatpush1.bf16.msra.mxu0 %v3894
    %4220 = vmatprep.mubr.bf16.mxu0 %v3001
    %4221 = vmatmul.mubr.bf16.gmra.mrb[0].mxu0 %v3000
    %v4222 = vpop.f32.mrb[0].mxu0
    %v4223 = vadd.f32 %v3201, %v4222
    %v4224 = vpop.f32.mrb[0].mxu0
    %v4225 = vadd.f32 %v3205, %v4224
    %v4226 = vpop.f32.mrb[0].mxu0
    %v4227 = vpop.f32.mrb[0].mxu0
    %4228 = vdwg.mxu0
    %4229 = vmatprep.subr.bf16.mxu0 %v3901
    %4230 = vmatpush1.bf16.msra.mxu0 %v3900
    %4231 = vmatprep.subr.bf16.mxu0 %v3907
    %4232 = vmatpush1.bf16.msra.mxu0 %v3906
    %4233 = vmatprep.subr.bf16.mxu0 %v3913
    %4234 = vmatpush1.bf16.msra.mxu0 %v3912
    %4235 = vmatprep.subr.bf16.mxu0 %v3919
    %4236 = vmatpush1.bf16.msra.mxu0 %v3918
    %4237 = vmatprep.subr.bf16.mxu0 %v3925
    %4238 = vmatpush1.bf16.msra.mxu0 %v3924
    %4239 = vmatprep.subr.bf16.mxu0 %v3931
    %4240 = vmatpush1.bf16.msra.mxu0 %v3930
    %4241 = vmatprep.subr.bf16.mxu0 %v3937
    %4242 = vmatpush1.bf16.msra.mxu0 %v3936
    %4243 = vmatprep.subr.bf16.mxu0 %v3943
    %4244 = vmatpush1.bf16.msra.mxu0 %v3942
    %4245 = vmatprep.subr.bf16.mxu0 %v3949
    %4246 = vmatpush1.bf16.msra.mxu0 %v3948
    %4247 = vmatprep.subr.bf16.mxu0 %v3955
    %4248 = vmatpush1.bf16.msra.mxu0 %v3954
    %4249 = vmatprep.subr.bf16.mxu0 %v3961
    %4250 = vmatpush1.bf16.msra.mxu0 %v3960
    %4251 = vmatprep.subr.bf16.mxu0 %v3967
    %4252 = vmatpush1.bf16.msra.mxu0 %v3966
    %4253 = vmatprep.subr.bf16.mxu0 %v3973
    %4254 = vmatpush1.bf16.msra.mxu0 %v3972
    %4255 = vmatprep.subr.bf16.mxu0 %v3979
    %4256 = vmatpush1.bf16.msra.mxu0 %v3978
    %4257 = vmatprep.subr.bf16.mxu0 %v3985
    %4258 = vmatpush1.bf16.msra.mxu0 %v3984
    %4259 = vmatprep.subr.bf16.mxu0 %v3991
    %4260 = vmatpush1.bf16.msra.mxu0 %v3990
    %4261 = vmatprep.mubr.bf16.mxu0 %v3003
    %4262 = vmatmul.mubr.bf16.gmra.mrb[0].mxu0 %v3002
    %v4263 = vpop.f32.mrb[0].mxu0
    %v4264 = vadd.f32 %v4223, %v4263
    %v4265 = vpop.f32.mrb[0].mxu0
    %v4266 = vadd.f32 %v4225, %v4265
    %v4267 = vpop.f32.mrb[0].mxu0
    %v4268 = vpop.f32.mrb[0].mxu0
    %4269 = vdwg.mxu0
    %4270 = vmatprep.subr.bf16.mxu0 %v3807
    %4271 = vmatpush1.bf16.msra.mxu0 %v3806
    %4272 = vmatprep.subr.bf16.mxu0 %v3813
    %4273 = vmatpush1.bf16.msra.mxu0 %v3812
    %4274 = vmatprep.subr.bf16.mxu0 %v3819
    %4275 = vmatpush1.bf16.msra.mxu0 %v3818
    %4276 = vmatprep.subr.bf16.mxu0 %v3825
    %4277 = vmatpush1.bf16.msra.mxu0 %v3824
    %4278 = vmatprep.subr.bf16.mxu0 %v3831
    %4279 = vmatpush1.bf16.msra.mxu0 %v3830
    %4280 = vmatprep.subr.bf16.mxu0 %v3837
    %4281 = vmatpush1.bf16.msra.mxu0 %v3836
    %4282 = vmatprep.subr.bf16.mxu0 %v3843
    %4283 = vmatpush1.bf16.msra.mxu0 %v3842
    %4284 = vmatprep.subr.bf16.mxu0 %v3849
    %4285 = vmatpush1.bf16.msra.mxu0 %v3848
    %4286 = vmatprep.subr.bf16.mxu0 %v3855
    %4287 = vmatpush1.bf16.msra.mxu0 %v3854
    %4288 = vmatprep.subr.bf16.mxu0 %v3861
    %4289 = vmatpush1.bf16.msra.mxu0 %v3860
    %4290 = vmatprep.subr.bf16.mxu0 %v3867
    %4291 = vmatpush1.bf16.msra.mxu0 %v3866
    %4292 = vmatprep.subr.bf16.mxu0 %v3873
    %4293 = vmatpush1.bf16.msra.mxu0 %v3872
    %4294 = vmatprep.subr.bf16.mxu0 %v3879
    %4295 = vmatpush1.bf16.msra.mxu0 %v3878
    %4296 = vmatprep.subr.bf16.mxu0 %v3885
    %4297 = vmatpush1.bf16.msra.mxu0 %v3884
    %4298 = vmatprep.subr.bf16.mxu0 %v3891
    %4299 = vmatpush1.bf16.msra.mxu0 %v3890
    %4300 = vmatprep.subr.bf16.mxu0 %v3897
    %4301 = vmatpush1.bf16.msra.mxu0 %v3896
    %4302 = vmatprep.mubr.bf16.mxu0 %v3001
    %4303 = vmatmul.mubr.bf16.gmra.mrb[0].mxu0 %v3000
    %v4304 = vpop.f32.mrb[0].mxu0
    %v4305 = vadd.f32 %v3209, %v4304
    %v4306 = vpop.f32.mrb[0].mxu0
    %v4307 = vadd.f32 %v3213, %v4306
    %v4308 = vpop.f32.mrb[0].mxu0
    %v4309 = vpop.f32.mrb[0].mxu0
    %4310 = vdwg.mxu0
    %4311 = vmatprep.subr.bf16.mxu0 %v3903
    %4312 = vmatpush1.bf16.msra.mxu0 %v3902
    %4313 = vmatprep.subr.bf16.mxu0 %v3909
    %4314 = vmatpush1.bf16.msra.mxu0 %v3908
    %4315 = vmatprep.subr.bf16.mxu0 %v3915
    %4316 = vmatpush1.bf16.msra.mxu0 %v3914
    %4317 = vmatprep.subr.bf16.mxu0 %v3921
    %4318 = vmatpush1.bf16.msra.mxu0 %v3920
    %4319 = vmatprep.subr.bf16.mxu0 %v3927
    %4320 = vmatpush1.bf16.msra.mxu0 %v3926
    %4321 = vmatprep.subr.bf16.mxu0 %v3933
    %4322 = vmatpush1.bf16.msra.mxu0 %v3932
    %4323 = vmatprep.subr.bf16.mxu0 %v3939
    %4324 = vmatpush1.bf16.msra.mxu0 %v3938
    %4325 = vmatprep.subr.bf16.mxu0 %v3945
    %4326 = vmatpush1.bf16.msra.mxu0 %v3944
    %4327 = vmatprep.subr.bf16.mxu0 %v3951
    %4328 = vmatpush1.bf16.msra.mxu0 %v3950
    %4329 = vmatprep.subr.bf16.mxu0 %v3957
    %4330 = vmatpush1.bf16.msra.mxu0 %v3956
    %4331 = vmatprep.subr.bf16.mxu0 %v3963
    %4332 = vmatpush1.bf16.msra.mxu0 %v3962
    %4333 = vmatprep.subr.bf16.mxu0 %v3969
    %4334 = vmatpush1.bf16.msra.mxu0 %v3968
    %4335 = vmatprep.subr.bf16.mxu0 %v3975
    %4336 = vmatpush1.bf16.msra.mxu0 %v3974
    %4337 = vmatprep.subr.bf16.mxu0 %v3981
    %4338 = vmatpush1.bf16.msra.mxu0 %v3980
    %4339 = vmatprep.subr.bf16.mxu0 %v3987
    %4340 = vmatpush1.bf16.msra.mxu0 %v3986
    %4341 = vmatprep.subr.bf16.mxu0 %v3993
    %4342 = vmatpush1.bf16.msra.mxu0 %v3992
    %4343 = vmatprep.mubr.bf16.mxu0 %v3003
    %4344 = vmatmul.mubr.bf16.gmra.mrb[0].mxu0 %v3002
    %v4345 = vpop.f32.mrb[0].mxu0
    %v4346 = vadd.f32 %v4305, %v4345
    %v4347 = vpop.f32.mrb[0].mxu0
    %v4348 = vadd.f32 %v4307, %v4347
    %v4349 = vpop.f32.mrb[0].mxu0
    %v4350 = vpop.f32.mrb[0].mxu0
    %4351 = vdwg.mxu0
    %4352 = vmatprep.subr.bf16.mxu0 %v3809
    %4353 = vmatpush1.bf16.msra.mxu0 %v3808
    %4354 = vmatprep.subr.bf16.mxu0 %v3815
    %4355 = vmatpush1.bf16.msra.mxu0 %v3814
    %4356 = vmatprep.subr.bf16.mxu0 %v3821
    %4357 = vmatpush1.bf16.msra.mxu0 %v3820
    %4358 = vmatprep.subr.bf16.mxu0 %v3827
    %4359 = vmatpush1.bf16.msra.mxu0 %v3826
    %4360 = vmatprep.subr.bf16.mxu0 %v3833
    %4361 = vmatpush1.bf16.msra.mxu0 %v3832
    %4362 = vmatprep.subr.bf16.mxu0 %v3839
    %4363 = vmatpush1.bf16.msra.mxu0 %v3838
    %4364 = vmatprep.subr.bf16.mxu0 %v3845
    %4365 = vmatpush1.bf16.msra.mxu0 %v3844
    %4366 = vmatprep.subr.bf16.mxu0 %v3851
    %4367 = vmatpush1.bf16.msra.mxu0 %v3850
    %4368 = vmatprep.subr.bf16.mxu0 %v3857
    %4369 = vmatpush1.bf16.msra.mxu0 %v3856
    %4370 = vmatprep.subr.bf16.mxu0 %v3863
    %4371 = vmatpush1.bf16.msra.mxu0 %v3862
    %4372 = vmatprep.subr.bf16.mxu0 %v3869
    %4373 = vmatpush1.bf16.msra.mxu0 %v3868
    %4374 = vmatprep.subr.bf16.mxu0 %v3875
    %4375 = vmatpush1.bf16.msra.mxu0 %v3874
    %4376 = vmatprep.subr.bf16.mxu0 %v3881
    %4377 = vmatpush1.bf16.msra.mxu0 %v3880
    %4378 = vmatprep.subr.bf16.mxu0 %v3887
    %4379 = vmatpush1.bf16.msra.mxu0 %v3886
    %4380 = vmatprep.subr.bf16.mxu0 %v3893
    %4381 = vmatpush1.bf16.msra.mxu0 %v3892
    %4382 = vmatprep.subr.bf16.mxu0 %v3899
    %4383 = vmatpush1.bf16.msra.mxu0 %v3898
    %4384 = vmatprep.mubr.bf16.mxu0 %v3001
    %4385 = vmatmul.mubr.bf16.gmra.mrb[0].mxu0 %v3000
    %v4386 = vpop.f32.mrb[0].mxu0
    %v4387 = vadd.f32 %v3217, %v4386
    %v4388 = vpop.f32.mrb[0].mxu0
    %v4389 = vadd.f32 %v3221, %v4388
    %v4390 = vpop.f32.mrb[0].mxu0
    %v4391 = vpop.f32.mrb[0].mxu0
    %4392 = vdwg.mxu0
    %4393 = vmatprep.subr.bf16.mxu0 %v3905
    %4394 = vmatpush1.bf16.msra.mxu0 %v3904
    %4395 = vmatprep.subr.bf16.mxu0 %v3911
    %4396 = vmatpush1.bf16.msra.mxu0 %v3910
    %4397 = vmatprep.subr.bf16.mxu0 %v3917
    %4398 = vmatpush1.bf16.msra.mxu0 %v3916
    %4399 = vmatprep.subr.bf16.mxu0 %v3923
    %4400 = vmatpush1.bf16.msra.mxu0 %v3922
    %4401 = vmatprep.subr.bf16.mxu0 %v3929
    %4402 = vmatpush1.bf16.msra.mxu0 %v3928
    %4403 = vmatprep.subr.bf16.mxu0 %v3935
    %4404 = vmatpush1.bf16.msra.mxu0 %v3934
    %4405 = vmatprep.subr.bf16.mxu0 %v3941
    %4406 = vmatpush1.bf16.msra.mxu0 %v3940
    %4407 = vmatprep.subr.bf16.mxu0 %v3947
    %4408 = vmatpush1.bf16.msra.mxu0 %v3946
    %4409 = vmatprep.subr.bf16.mxu0 %v3953
    %4410 = vmatpush1.bf16.msra.mxu0 %v3952
    %4411 = vmatprep.subr.bf16.mxu0 %v3959
    %4412 = vmatpush1.bf16.msra.mxu0 %v3958
    %4413 = vmatprep.subr.bf16.mxu0 %v3965
    %4414 = vmatpush1.bf16.msra.mxu0 %v3964
    %4415 = vmatprep.subr.bf16.mxu0 %v3971
    %4416 = vmatpush1.bf16.msra.mxu0 %v3970
    %4417 = vmatprep.subr.bf16.mxu0 %v3977
    %4418 = vmatpush1.bf16.msra.mxu0 %v3976
    %4419 = vmatprep.subr.bf16.mxu0 %v3983
    %4420 = vmatpush1.bf16.msra.mxu0 %v3982
    %4421 = vmatprep.subr.bf16.mxu0 %v3989
    %4422 = vmatpush1.bf16.msra.mxu0 %v3988
    %4423 = vmatprep.subr.bf16.mxu0 %v3995
    %4424 = vmatpush1.bf16.msra.mxu0 %v3994
    %4425 = vmatprep.mubr.bf16.mxu0 %v3003
    %4426 = vmatmul.mubr.bf16.gmra.mrb[0].mxu0 %v3002
    %v4427 = vpop.f32.mrb[0].mxu0
    %v4428 = vadd.f32 %v4387, %v4427
    %v4429 = vpop.f32.mrb[0].mxu0
    %v4430 = vadd.f32 %v4389, %v4429
    %v4431 = vpop.f32.mrb[0].mxu0
    %v4432 = vpop.f32.mrb[0].mxu0
    %4433 = vdwg.mxu0
    %v4434 = vtanh.pop %v4264
    %v4435 = vtanh.pop %v4266
    %v4436 = vtanh.pop %v4346
    %v4437 = vtanh.pop %v4348
    %v4438 = vtanh.pop %v4428
    %v4439 = vtanh.pop %v4430
    %v4446 = vcombine.low %v4434, %v4435
    %v4447 = vcombine.low %v4436, %v4437
    %v4449 = vunpack.c.l.s4 1983009808
    %v4450 = vunpack.c.0.s8 %v4449
    %v4451 = vlaneseq
    %v4452 = vshrl.u32 %v4451, 7
    %v4453 = vsub.s32 %v4450, %v4452
    %v4454 = vrot.slane %v4446, %v4453
    %v4456 = vunpack.c.l.s4 1983009808
    %v4457 = vunpack.c.0.s8 %v4456
    %v4458 = vlaneseq
    %v4459 = vshrl.u32 %v4458, 7
    %v4460 = vsub.s32 %v4457, %v4459
    %v4461 = vrot.slane %v4447, %v4460
    %v4462 = vcombine.low %v4454, %v4461
    %v4463 = vcombine.low %v4438, %v4439
    %v4465 = vunpack.c.l.s4 1983009808
    %v4466 = vunpack.c.0.s8 %v4465
    %v4467 = vlaneseq
    %v4468 = vshrl.u32 %v4467, 7
    %v4469 = vsub.s32 %v4466, %v4468
    %v4470 = vrot.slane %v4463, %v4469
    %4473 = vst [vmem:[%s16] sm:$0xff] %v4462
    %4474 = vst [vmem:[%s16 + $0x8] sm:$0xf] %v4470
    %vm4475 = vcmask 123904
    %4476 = vst.msk [vmem:[#allocation10] sm:$0x3] %vm4475, %v2248
    %4477 = vst.msk [vmem:[#allocation11] sm:$0x3] %vm4475, %v2423
    %4478 = vst.msk [vmem:[#allocation13] sm:$0x3] %vm4475, %v2433
    // Predicated region
    $region82: #{generator_forward.1} parent=1 // pred_check
      _
    $region83: #{generator_forward.1} parent=1 // pred_check_branch
      %4480 = sbr.rel (0) target = $region85
    $region84: #{generator_forward.1} parent=1 // pred_region
      _
    $region85: #{generator_forward.1} parent=1 // pred_fallthru
      _
    // Predicated region
    $region86: #{generator_forward.1} parent=1 // pred_check
      _
    $region87: #{generator_forward.1} parent=1 // pred_check_branch
      %4482 = sbr.rel (0) target = $region89
    $region88: #{generator_forward.1} parent=1 // pred_region
      %s4484 = ssub.s32 32, 32
      %4485 = vsyncadd [#allocation4], %s4484
      %s4487 = sshll.u32 [#allocation10], 4
      %s4488 = int_to_ptr.vmem [resolvable:$true] %s4487
      %4490 = dma.vmem_to_hbm [thread:$0]  %s4488, 32, %s17, [#allocation4]
    $region89: #{generator_forward.1} parent=1 // pred_fallthru
      _
    // Predicated region
    $region90: #{generator_forward.1} parent=1 // pred_check
      _
    $region91: #{generator_forward.1} parent=1 // pred_check_branch
      %4492 = sbr.rel (0) target = $region93
    $region92: #{generator_forward.1} parent=1 // pred_region
      %s4494 = ssub.s32 32, 32
      %4495 = vsyncadd [#allocation12], %s4494
      %s4497 = sshll.u32 [#allocation11], 4
      %s4498 = int_to_ptr.vmem [resolvable:$true] %s4497
      %4500 = dma.vmem_to_hbm [thread:$0]  %s4498, 32, %s18, [#allocation12]
    $region93: #{generator_forward.1} parent=1 // pred_fallthru
      _
    // Predicated region
    $region94: #{generator_forward.1} parent=1 // pred_check
      _
    $region95: #{generator_forward.1} parent=1 // pred_check_branch
      %4502 = sbr.rel (0) target = $region97
    $region96: #{generator_forward.1} parent=1 // pred_region
      %s4504 = ssub.s32 32, 32
      %4505 = vsyncadd [#allocation12], %s4504
      %s4507 = sshll.u32 [#allocation13], 4
      %s4508 = int_to_ptr.vmem [resolvable:$true] %s4507
      %4510 = dma.vmem_to_hbm [thread:$0]  %s4508, 32, %s19, [#allocation12]
    $region97: #{generator_forward.1} parent=1 // pred_fallthru
      _
    // Predicated region
    $region98: #{generator_forward.1} parent=1 // pred_check
      _
    $region99: #{generator_forward.1} parent=1 // pred_check_branch
      %4512 = sbr.rel (0) target = $region101
    $region100: #{generator_forward.1} parent=1 // pred_region
      _
    $region101: #{generator_forward.1} parent=1 // pred_fallthru
      _
    // Predicated region
    $region102: #{generator_forward.1} parent=1 // pred_check
      _
    $region103: #{generator_forward.1} parent=1 // pred_check_branch
      %4514 = sbr.rel (0) target = $region105
    $region104: #{generator_forward.1} parent=1 // pred_region
      %4515 = dma.done [#allocation4], 32
    $region105: #{generator_forward.1} parent=1 // pred_fallthru
      _
    // Predicated region
    $region106: #{generator_forward.1} parent=1 // pred_check
      _
    $region107: #{generator_forward.1} parent=1 // pred_check_branch
      %4517 = sbr.rel (0) target = $region109
    $region108: #{generator_forward.1} parent=1 // pred_region
      %4518 = dma.done [#allocation12], 32
    $region109: #{generator_forward.1} parent=1 // pred_fallthru
      _
    // Predicated region
    $region110: #{generator_forward.1} parent=1 // pred_check
      _
    $region111: #{generator_forward.1} parent=1 // pred_check_branch
      %4520 = sbr.rel (0) target = $region113
    $region112: #{generator_forward.1} parent=1 // pred_region
      %4521 = dma.done [#allocation12], 32
    $region113: #{generator_forward.1} parent=1 // pred_fallthru
      _
    %4522 = vsyncpa [#allocation3], 1
    %4523 = vsyncpa [#allocation6], 1
    %4524 = vsyncpa [#allocation9], 1
    %4525 = vsyncpa [#allocation4], 1
    %4526 = vsyncpa [#allocation12], 1

</llo_original>
